<compile_context>
chip_gen: v5e
topology: v5e:2x2
jax: 0.10.0
libtpu: 0.0.40
codegen_flags: <defaults>
</compile_context>

<pallas_src>
import jax
import jax.numpy as jnp
import numpy as np
from jax.experimental import pallas as pl
from jax.experimental.pallas import tpu as pltpu

_KH = _KW = 4
_STRIDE = 2
_PAD = 1
_EPS = 1e-5
_CHANNELS = (3, 32, 64, 128, 256)
_LANE = 128


def _round_up(x, m):
    return ((x + m - 1) // m) * m


# ------------------------------ fused kernel ---------------------------------
def _fused_patch_disc_kernel(p0_ref, w1_ref, g1_ref, b1_ref,
                             G2_ref, w2_ref, g2_ref, b2_ref,
                             G3_ref, w3_ref, g3_ref, b3_ref,
                             G4_ref, w4_ref, g4_ref, b4_ref,
                             out_ref):
    """Whole PatchDiscriminator forward on VMEM-resident data."""

    def bn_relu(y, g_ref, b_ref):
        # BatchNorm2d (training-mode batch stats, biased variance) + ReLU.
        # Two-pass variance avoids the E[y^2]-mean^2 cancellation issue.
        mean = jnp.mean(y, axis=0, keepdims=True)
        d = y - mean
        var = jnp.mean(d * d, axis=0, keepdims=True)
        inv = jax.lax.rsqrt(var + _EPS)
        return jnp.maximum(d * inv * g_ref[...] + b_ref[...], 0.0)

    def im2col(y, G_ref):
        # In-kernel im2col: each tap is an exact 0/1 row-selection matmul
        # (one nonzero per row -> bit-exact gather), laid out tap-major /
        # channel-minor along lanes to match the packed weight matrix.
        yb = y.astype(jnp.bfloat16)
        taps = [jnp.dot(G_ref[t], yb, preferred_element_type=jnp.float32)
                for t in range(_KH * _KW)]
        return jnp.concatenate(taps, axis=-1).astype(jnp.bfloat16)

    # layer 1 (patches of the raw network input were built by XLA -- it's tiny)
    y = bn_relu(
        jnp.dot(p0_ref[...], w1_ref[...], preferred_element_type=jnp.float32),
        g1_ref, b1_ref)

    # layers 2-4: in-kernel im2col -> conv -> BN -> ReLU; nothing leaves VMEM
    for G_ref, w_ref, g_ref, b_ref in (
            (G2_ref, w2_ref, g2_ref, b2_ref),
            (G3_ref, w3_ref, g3_ref, b3_ref),
            (G4_ref, w4_ref, g4_ref, b4_ref)):
        p = im2col(y, G_ref)
        y = bn_relu(
            jnp.dot(p, w_ref[...], preferred_element_type=jnp.float32),
            g_ref, b_ref)

    out_ref[...] = y                                # (N * Hf * Wf, 256) float32


# ------------------------------ host-side glue --------------------------------
def _im2col_input(x):
    """x: (N, H, W, C) -> (N*Ho*Wo, 16*C) patches, tap-major / channel-minor."""
    N, H, W, C = x.shape
    xp = jnp.pad(x, ((0, 0), (_PAD, _PAD), (_PAD, _PAD), (0, 0)))
    Ho = (H + 2 * _PAD - _KH) // _STRIDE + 1
    Wo = (W + 2 * _PAD - _KW) // _STRIDE + 1
    cols = []
    for i in range(_KH):
        for j in range(_KW):
            cols.append(xp[:, i:i + _STRIDE * Ho:_STRIDE,
                           j:j + _STRIDE * Wo:_STRIDE, :])
    p = jnp.stack(cols, axis=3)                     # (N, Ho, Wo, 16, C)
    return p.reshape(N * Ho * Wo, _KH * _KW * C), Ho, Wo


def _gather_matrices(n, h_in, w_in):
    """0/1 selection matrices for one stride-2 4x4 conv with zero padding 1.

    G[t, m_out, r_in] = 1 iff output row m_out's tap t reads input row r_in
    (all-zero row == zero padding).  Rows are flattened as n*H*W + h*W + w.
    """
    h_out = (h_in + 2 * _PAD - _KH) // _STRIDE + 1
    w_out = (w_in + 2 * _PAD - _KW) // _STRIDE + 1
    G = np.zeros((_KH * _KW, n * h_out * w_out, n * h_in * w_in), np.float32)
    for b in range(n):
        for oh in range(h_out):
            for ow in range(w_out):
                m = (b * h_out + oh) * w_out + ow
                for i in range(_KH):
                    for j in range(_KW):
                        hi = _STRIDE * oh - _PAD + i
                        wi = _STRIDE * ow - _PAD + j
                        if 0 <= hi < h_in and 0 <= wi < w_in:
                            r = (b * h_in + hi) * w_in + wi
                            G[i * _KW + j, m, r] = 1.0
    return jnp.asarray(G, jnp.bfloat16), h_out, w_out


def init_params(key):
    """Deterministic synthetic parameters (conv weights + BN gamma/beta)."""
    params = []
    for i in range(4):
        cin, cout = _CHANNELS[i], _CHANNELS[i + 1]
        key, kw_, kg_, kb_ = jax.random.split(key, 4)
        w = jax.random.normal(kw_, (_KH, _KW, cin, cout), jnp.float32)
        w = w / jnp.sqrt(float(_KH * _KW * cin))
        gamma = 1.0 + 0.1 * jax.random.normal(kg_, (cout,), jnp.float32)
        beta = 0.05 * jax.random.normal(kb_, (cout,), jnp.float32)
        params.append((w, gamma, beta))
    return params


def pack_params(params, input_shape):
    """Pad channels to lane multiples, cast MXU operands to bf16, and build the
    per-layer im2col gather matrices for a fixed input shape (done once)."""
    N, _, H, W = input_shape
    packed = []
    h, w = H, W
    for idx, (wgt, gamma, beta) in enumerate(params):
        cin, cout = int(wgt.shape[2]), int(wgt.shape[3])
        cout_pad = _round_up(cout, _LANE)
        if idx == 0:
            # layer 1: K = 16 * 3 (raw input channels), Cout padded to 128 lanes
            wmat = wgt.reshape(_KH * _KW * cin, cout)
            wmat = jnp.pad(wmat, ((0, 0), (0, cout_pad - cout)))
        else:
            cin_pad = _round_up(cin, _LANE)         # == previous layer's padded Cout
            wp = jnp.zeros((_KH, _KW, cin_pad, cout_pad), jnp.float32)
            wp = wp.at[:, :, :cin, :cout].set(wgt)
            wmat = wp.reshape(_KH * _KW * cin_pad, cout_pad)
            G, h, w = _gather_matrices(N, h, w)
            packed.append(G)
        packed.append(wmat.astype(jnp.bfloat16))
        packed.append(jnp.ones((1, cout_pad), jnp.float32).at[0, :cout].set(gamma))
        packed.append(jnp.zeros((1, cout_pad), jnp.float32).at[0, :cout].set(beta))
        if idx == 0:
            h = (h + 2 * _PAD - _KH) // _STRIDE + 1
            w = (w + 2 * _PAD - _KW) // _STRIDE + 1
    return tuple(packed)


@jax.jit
def patch_discriminator_forward(x_nchw, packed):
    """x: (N, 3, H, W) f32 -> (N, 256, H//16, W//16), like the PyTorch module."""
    N, _, H, W = x_nchw.shape
    x = jnp.transpose(x_nchw, (0, 2, 3, 1))         # NCHW -> NHWC
    p0, _, _ = _im2col_input(x)
    p0 = p0.astype(jnp.bfloat16)

    hf, wf = H // 16, W // 16
    n_inputs = 1 + len(packed)
    out = pl.pallas_call(
        _fused_patch_disc_kernel,
        out_shape=jax.ShapeDtypeStruct((N * hf * wf, _CHANNELS[-1]), jnp.float32),
        in_specs=[pl.BlockSpec(memory_space=pltpu.MemorySpace.VMEM)] * n_inputs,
        out_specs=pl.BlockSpec(memory_space=pltpu.MemorySpace.VMEM),
    )(p0, *packed)

    out = out.reshape(N, hf, wf, _CHANNELS[-1])
    return jnp.transpose(out, (0, 3, 1, 2))         # NHWC -> NCHW


if __name__ == "__main__":
    key = jax.random.PRNGKey(0)
    key, kx = jax.random.split(key)
    # PyTorch input convention: NCHW, 3 input channels, 16x16 spatial, batch 2.
    x = jax.random.normal(kx, (2, 3, 16, 16), jnp.float32)
    params = init_params(key)
    packed = pack_params(params, x.shape)

    out = patch_discriminator_forward(x, packed)
    out = jax.block_until_ready(out)
    assert out.shape == (2, 256, 1, 1), out.shape
    assert out.dtype == jnp.float32
    assert bool(jnp.all(jnp.isfinite(out))), "non-finite output"
    print("KERNEL_OK")
</pallas_src>

<mosaic_0001>
module attributes {stable_mosaic.version = 11 : i64} {
  func.func @_fused_patch_disc_kernel(%arg0: memref<128x48xbf16, #tpu.memory_space<vmem>>, %arg1: memref<48x128xbf16, #tpu.memory_space<vmem>>, %arg2: memref<1x128xf32, #tpu.memory_space<vmem>>, %arg3: memref<1x128xf32, #tpu.memory_space<vmem>>, %arg4: memref<16x32x128xbf16, #tpu.memory_space<vmem>>, %arg5: memref<2048x128xbf16, #tpu.memory_space<vmem>>, %arg6: memref<1x128xf32, #tpu.memory_space<vmem>>, %arg7: memref<1x128xf32, #tpu.memory_space<vmem>>, %arg8: memref<16x8x32xbf16, #tpu.memory_space<vmem>>, %arg9: memref<2048x128xbf16, #tpu.memory_space<vmem>>, %arg10: memref<1x128xf32, #tpu.memory_space<vmem>>, %arg11: memref<1x128xf32, #tpu.memory_space<vmem>>, %arg12: memref<16x2x8xbf16, #tpu.memory_space<vmem>>, %arg13: memref<2048x256xbf16, #tpu.memory_space<vmem>>, %arg14: memref<1x256xf32, #tpu.memory_space<vmem>>, %arg15: memref<1x256xf32, #tpu.memory_space<vmem>>, %arg16: memref<2x256xf32, #tpu.memory_space<vmem>>) attributes {dimension_semantics = [], scalar_prefetch = 0 : i64, scratch_operands = 0 : i64, tpu.core_type = #tpu.core_type<tc>} {
    %c0 = arith.constant 0 : index
    %c0_0 = arith.constant 0 : index
    %0 = vector.load %arg0[%c0, %c0_0] : memref<128x48xbf16, #tpu.memory_space<vmem>>, vector<128x48xbf16>
    %c0_1 = arith.constant 0 : index
    %c0_2 = arith.constant 0 : index
    %1 = vector.load %arg1[%c0_1, %c0_2] : memref<48x128xbf16, #tpu.memory_space<vmem>>, vector<48x128xbf16>
    %cst = arith.constant dense<0.000000e+00> : vector<128x128xf32>
    %2 = tpu.matmul %0, %1, %cst {dimension_numbers = #tpu.dot_dimension_numbers<[1], [0], [0], [1], [0, 0, 1, 1], [], []>} : vector<128x48xbf16>, vector<48x128xbf16>, vector<128x128xf32> -> vector<128x128xf32>
    %cst_3 = arith.constant dense<0.000000e+00> : vector<128xf32>
    %3 = vector.multi_reduction <add>, %2, %cst_3 [0] : vector<128x128xf32> to vector<128xf32>
    %4 = vector.shape_cast %3 : vector<128xf32> to vector<1x128xf32>
    %cst_4 = arith.constant 1.280000e+02 : f32
    %5 = vector.broadcast %cst_4 : f32 to vector<1x128xf32>
    %6 = arith.divf %4, %5 : vector<1x128xf32>
    %7 = vector.broadcast %6 : vector<1x128xf32> to vector<128x128xf32>
    %8 = arith.subf %2, %7 : vector<128x128xf32>
    %9 = arith.mulf %8, %8 : vector<128x128xf32>
    %cst_5 = arith.constant dense<0.000000e+00> : vector<128xf32>
    %10 = vector.multi_reduction <add>, %9, %cst_5 [0] : vector<128x128xf32> to vector<128xf32>
    %11 = vector.shape_cast %10 : vector<128xf32> to vector<1x128xf32>
    %cst_6 = arith.constant 1.280000e+02 : f32
    %12 = vector.broadcast %cst_6 : f32 to vector<1x128xf32>
    %13 = arith.divf %11, %12 : vector<1x128xf32>
    %cst_7 = arith.constant 9.99999974E-6 : f32
    %14 = vector.broadcast %cst_7 : f32 to vector<1x128xf32>
    %15 = arith.addf %13, %14 : vector<1x128xf32>
    %16 = math.rsqrt %15 : vector<1x128xf32>
    %17 = vector.broadcast %16 : vector<1x128xf32> to vector<128x128xf32>
    %18 = arith.mulf %8, %17 : vector<128x128xf32>
    %c0_8 = arith.constant 0 : index
    %c0_9 = arith.constant 0 : index
    %19 = vector.load %arg2[%c0_8, %c0_9] : memref<1x128xf32, #tpu.memory_space<vmem>>, vector<1x128xf32>
    %20 = vector.broadcast %19 : vector<1x128xf32> to vector<128x128xf32>
    %21 = arith.mulf %18, %20 : vector<128x128xf32>
    %c0_10 = arith.constant 0 : index
    %c0_11 = arith.constant 0 : index
    %22 = vector.load %arg3[%c0_10, %c0_11] : memref<1x128xf32, #tpu.memory_space<vmem>>, vector<1x128xf32>
    %23 = vector.broadcast %22 : vector<1x128xf32> to vector<128x128xf32>
    %24 = arith.addf %21, %23 : vector<128x128xf32>
    %cst_12 = arith.constant 0.000000e+00 : f32
    %25 = vector.broadcast %cst_12 : f32 to vector<128x128xf32>
    %26 = arith.maximumf %24, %25 : vector<128x128xf32>
    %27 = arith.truncf %26 : vector<128x128xf32> to vector<128x128xbf16>
    %c0_13 = arith.constant 0 : index
    %c0_14 = arith.constant 0 : index
    %c0_15 = arith.constant 0 : index
    %28 = vector.load %arg4[%c0_13, %c0_14, %c0_15] : memref<16x32x128xbf16, #tpu.memory_space<vmem>>, vector<1x32x128xbf16>
    %29 = vector.shape_cast %28 : vector<1x32x128xbf16> to vector<32x128xbf16>
    %cst_16 = arith.constant dense<0.000000e+00> : vector<32x128xf32>
    %30 = tpu.matmul %29, %27, %cst_16 {dimension_numbers = #tpu.dot_dimension_numbers<[1], [0], [0], [1], [0, 0, 1, 1], [], []>} : vector<32x128xbf16>, vector<128x128xbf16>, vector<32x128xf32> -> vector<32x128xf32>
    %c1 = arith.constant 1 : index
    %c0_17 = arith.constant 0 : index
    %c0_18 = arith.constant 0 : index
    %31 = vector.load %arg4[%c1, %c0_17, %c0_18] : memref<16x32x128xbf16, #tpu.memory_space<vmem>>, vector<1x32x128xbf16>
    %32 = vector.shape_cast %31 : vector<1x32x128xbf16> to vector<32x128xbf16>
    %cst_19 = arith.constant dense<0.000000e+00> : vector<32x128xf32>
    %33 = tpu.matmul %32, %27, %cst_19 {dimension_numbers = #tpu.dot_dimension_numbers<[1], [0], [0], [1], [0, 0, 1, 1], [], []>} : vector<32x128xbf16>, vector<128x128xbf16>, vector<32x128xf32> -> vector<32x128xf32>
    %c2 = arith.constant 2 : index
    %c0_20 = arith.constant 0 : index
    %c0_21 = arith.constant 0 : index
    %34 = vector.load %arg4[%c2, %c0_20, %c0_21] : memref<16x32x128xbf16, #tpu.memory_space<vmem>>, vector<1x32x128xbf16>
    %35 = vector.shape_cast %34 : vector<1x32x128xbf16> to vector<32x128xbf16>
    %cst_22 = arith.constant dense<0.000000e+00> : vector<32x128xf32>
    %36 = tpu.matmul %35, %27, %cst_22 {dimension_numbers = #tpu.dot_dimension_numbers<[1], [0], [0], [1], [0, 0, 1, 1], [], []>} : vector<32x128xbf16>, vector<128x128xbf16>, vector<32x128xf32> -> vector<32x128xf32>
    %c3 = arith.constant 3 : index
    %c0_23 = arith.constant 0 : index
    %c0_24 = arith.constant 0 : index
    %37 = vector.load %arg4[%c3, %c0_23, %c0_24] : memref<16x32x128xbf16, #tpu.memory_space<vmem>>, vector<1x32x128xbf16>
    %38 = vector.shape_cast %37 : vector<1x32x128xbf16> to vector<32x128xbf16>
    %cst_25 = arith.constant dense<0.000000e+00> : vector<32x128xf32>
    %39 = tpu.matmul %38, %27, %cst_25 {dimension_numbers = #tpu.dot_dimension_numbers<[1], [0], [0], [1], [0, 0, 1, 1], [], []>} : vector<32x128xbf16>, vector<128x128xbf16>, vector<32x128xf32> -> vector<32x128xf32>
    %c4 = arith.constant 4 : index
    %c0_26 = arith.constant 0 : index
    %c0_27 = arith.constant 0 : index
    %40 = vector.load %arg4[%c4, %c0_26, %c0_27] : memref<16x32x128xbf16, #tpu.memory_space<vmem>>, vector<1x32x128xbf16>
    %41 = vector.shape_cast %40 : vector<1x32x128xbf16> to vector<32x128xbf16>
    %cst_28 = arith.constant dense<0.000000e+00> : vector<32x128xf32>
    %42 = tpu.matmul %41, %27, %cst_28 {dimension_numbers = #tpu.dot_dimension_numbers<[1], [0], [0], [1], [0, 0, 1, 1], [], []>} : vector<32x128xbf16>, vector<128x128xbf16>, vector<32x128xf32> -> vector<32x128xf32>
    %c5 = arith.constant 5 : index
    %c0_29 = arith.constant 0 : index
    %c0_30 = arith.constant 0 : index
    %43 = vector.load %arg4[%c5, %c0_29, %c0_30] : memref<16x32x128xbf16, #tpu.memory_space<vmem>>, vector<1x32x128xbf16>
    %44 = vector.shape_cast %43 : vector<1x32x128xbf16> to vector<32x128xbf16>
    %cst_31 = arith.constant dense<0.000000e+00> : vector<32x128xf32>
    %45 = tpu.matmul %44, %27, %cst_31 {dimension_numbers = #tpu.dot_dimension_numbers<[1], [0], [0], [1], [0, 0, 1, 1], [], []>} : vector<32x128xbf16>, vector<128x128xbf16>, vector<32x128xf32> -> vector<32x128xf32>
    %c6 = arith.constant 6 : index
    %c0_32 = arith.constant 0 : index
    %c0_33 = arith.constant 0 : index
    %46 = vector.load %arg4[%c6, %c0_32, %c0_33] : memref<16x32x128xbf16, #tpu.memory_space<vmem>>, vector<1x32x128xbf16>
    %47 = vector.shape_cast %46 : vector<1x32x128xbf16> to vector<32x128xbf16>
    %cst_34 = arith.constant dense<0.000000e+00> : vector<32x128xf32>
    %48 = tpu.matmul %47, %27, %cst_34 {dimension_numbers = #tpu.dot_dimension_numbers<[1], [0], [0], [1], [0, 0, 1, 1], [], []>} : vector<32x128xbf16>, vector<128x128xbf16>, vector<32x128xf32> -> vector<32x128xf32>
    %c7 = arith.constant 7 : index
    %c0_35 = arith.constant 0 : index
    %c0_36 = arith.constant 0 : index
    %49 = vector.load %arg4[%c7, %c0_35, %c0_36] : memref<16x32x128xbf16, #tpu.memory_space<vmem>>, vector<1x32x128xbf16>
    %50 = vector.shape_cast %49 : vector<1x32x128xbf16> to vector<32x128xbf16>
    %cst_37 = arith.constant dense<0.000000e+00> : vector<32x128xf32>
    %51 = tpu.matmul %50, %27, %cst_37 {dimension_numbers = #tpu.dot_dimension_numbers<[1], [0], [0], [1], [0, 0, 1, 1], [], []>} : vector<32x128xbf16>, vector<128x128xbf16>, vector<32x128xf32> -> vector<32x128xf32>
    %c8 = arith.constant 8 : index
    %c0_38 = arith.constant 0 : index
    %c0_39 = arith.constant 0 : index
    %52 = vector.load %arg4[%c8, %c0_38, %c0_39] : memref<16x32x128xbf16, #tpu.memory_space<vmem>>, vector<1x32x128xbf16>
    %53 = vector.shape_cast %52 : vector<1x32x128xbf16> to vector<32x128xbf16>
    %cst_40 = arith.constant dense<0.000000e+00> : vector<32x128xf32>
    %54 = tpu.matmul %53, %27, %cst_40 {dimension_numbers = #tpu.dot_dimension_numbers<[1], [0], [0], [1], [0, 0, 1, 1], [], []>} : vector<32x128xbf16>, vector<128x128xbf16>, vector<32x128xf32> -> vector<32x128xf32>
    %c9 = arith.constant 9 : index
    %c0_41 = arith.constant 0 : index
    %c0_42 = arith.constant 0 : index
    %55 = vector.load %arg4[%c9, %c0_41, %c0_42] : memref<16x32x128xbf16, #tpu.memory_space<vmem>>, vector<1x32x128xbf16>
    %56 = vector.shape_cast %55 : vector<1x32x128xbf16> to vector<32x128xbf16>
    %cst_43 = arith.constant dense<0.000000e+00> : vector<32x128xf32>
    %57 = tpu.matmul %56, %27, %cst_43 {dimension_numbers = #tpu.dot_dimension_numbers<[1], [0], [0], [1], [0, 0, 1, 1], [], []>} : vector<32x128xbf16>, vector<128x128xbf16>, vector<32x128xf32> -> vector<32x128xf32>
    %c10 = arith.constant 10 : index
    %c0_44 = arith.constant 0 : index
    %c0_45 = arith.constant 0 : index
    %58 = vector.load %arg4[%c10, %c0_44, %c0_45] : memref<16x32x128xbf16, #tpu.memory_space<vmem>>, vector<1x32x128xbf16>
    %59 = vector.shape_cast %58 : vector<1x32x128xbf16> to vector<32x128xbf16>
    %cst_46 = arith.constant dense<0.000000e+00> : vector<32x128xf32>
    %60 = tpu.matmul %59, %27, %cst_46 {dimension_numbers = #tpu.dot_dimension_numbers<[1], [0], [0], [1], [0, 0, 1, 1], [], []>} : vector<32x128xbf16>, vector<128x128xbf16>, vector<32x128xf32> -> vector<32x128xf32>
    %c11 = arith.constant 11 : index
    %c0_47 = arith.constant 0 : index
    %c0_48 = arith.constant 0 : index
    %61 = vector.load %arg4[%c11, %c0_47, %c0_48] : memref<16x32x128xbf16, #tpu.memory_space<vmem>>, vector<1x32x128xbf16>
    %62 = vector.shape_cast %61 : vector<1x32x128xbf16> to vector<32x128xbf16>
    %cst_49 = arith.constant dense<0.000000e+00> : vector<32x128xf32>
    %63 = tpu.matmul %62, %27, %cst_49 {dimension_numbers = #tpu.dot_dimension_numbers<[1], [0], [0], [1], [0, 0, 1, 1], [], []>} : vector<32x128xbf16>, vector<128x128xbf16>, vector<32x128xf32> -> vector<32x128xf32>
    %c12 = arith.constant 12 : index
    %c0_50 = arith.constant 0 : index
    %c0_51 = arith.constant 0 : index
    %64 = vector.load %arg4[%c12, %c0_50, %c0_51] : memref<16x32x128xbf16, #tpu.memory_space<vmem>>, vector<1x32x128xbf16>
    %65 = vector.shape_cast %64 : vector<1x32x128xbf16> to vector<32x128xbf16>
    %cst_52 = arith.constant dense<0.000000e+00> : vector<32x128xf32>
    %66 = tpu.matmul %65, %27, %cst_52 {dimension_numbers = #tpu.dot_dimension_numbers<[1], [0], [0], [1], [0, 0, 1, 1], [], []>} : vector<32x128xbf16>, vector<128x128xbf16>, vector<32x128xf32> -> vector<32x128xf32>
    %c13 = arith.constant 13 : index
    %c0_53 = arith.constant 0 : index
    %c0_54 = arith.constant 0 : index
    %67 = vector.load %arg4[%c13, %c0_53, %c0_54] : memref<16x32x128xbf16, #tpu.memory_space<vmem>>, vector<1x32x128xbf16>
    %68 = vector.shape_cast %67 : vector<1x32x128xbf16> to vector<32x128xbf16>
    %cst_55 = arith.constant dense<0.000000e+00> : vector<32x128xf32>
    %69 = tpu.matmul %68, %27, %cst_55 {dimension_numbers = #tpu.dot_dimension_numbers<[1], [0], [0], [1], [0, 0, 1, 1], [], []>} : vector<32x128xbf16>, vector<128x128xbf16>, vector<32x128xf32> -> vector<32x128xf32>
    %c14 = arith.constant 14 : index
    %c0_56 = arith.constant 0 : index
    %c0_57 = arith.constant 0 : index
    %70 = vector.load %arg4[%c14, %c0_56, %c0_57] : memref<16x32x128xbf16, #tpu.memory_space<vmem>>, vector<1x32x128xbf16>
    %71 = vector.shape_cast %70 : vector<1x32x128xbf16> to vector<32x128xbf16>
    %cst_58 = arith.constant dense<0.000000e+00> : vector<32x128xf32>
    %72 = tpu.matmul %71, %27, %cst_58 {dimension_numbers = #tpu.dot_dimension_numbers<[1], [0], [0], [1], [0, 0, 1, 1], [], []>} : vector<32x128xbf16>, vector<128x128xbf16>, vector<32x128xf32> -> vector<32x128xf32>
    %c15 = arith.constant 15 : index
    %c0_59 = arith.constant 0 : index
    %c0_60 = arith.constant 0 : index
    %73 = vector.load %arg4[%c15, %c0_59, %c0_60] : memref<16x32x128xbf16, #tpu.memory_space<vmem>>, vector<1x32x128xbf16>
    %74 = vector.shape_cast %73 : vector<1x32x128xbf16> to vector<32x128xbf16>
    %cst_61 = arith.constant dense<0.000000e+00> : vector<32x128xf32>
    %75 = tpu.matmul %74, %27, %cst_61 {dimension_numbers = #tpu.dot_dimension_numbers<[1], [0], [0], [1], [0, 0, 1, 1], [], []>} : vector<32x128xbf16>, vector<128x128xbf16>, vector<32x128xf32> -> vector<32x128xf32>
    %76 = tpu.concatenate %30, %33, %36, %39, %42, %45, %48, %51, %54, %57, %60, %63, %66, %69, %72, %75 in 1 : vector<32x128xf32>, vector<32x128xf32>, vector<32x128xf32>, vector<32x128xf32>, vector<32x128xf32>, vector<32x128xf32>, vector<32x128xf32>, vector<32x128xf32>, vector<32x128xf32>, vector<32x128xf32>, vector<32x128xf32>, vector<32x128xf32>, vector<32x128xf32>, vector<32x128xf32>, vector<32x128xf32>, vector<32x128xf32> -> vector<32x2048xf32>
    %77 = arith.truncf %76 : vector<32x2048xf32> to vector<32x2048xbf16>
    %c0_62 = arith.constant 0 : index
    %c0_63 = arith.constant 0 : index
    %78 = vector.load %arg5[%c0_62, %c0_63] : memref<2048x128xbf16, #tpu.memory_space<vmem>>, vector<2048x128xbf16>
    %cst_64 = arith.constant dense<0.000000e+00> : vector<32x128xf32>
    %79 = tpu.matmul %77, %78, %cst_64 {dimension_numbers = #tpu.dot_dimension_numbers<[1], [0], [0], [1], [0, 0, 1, 1], [], []>} : vector<32x2048xbf16>, vector<2048x128xbf16>, vector<32x128xf32> -> vector<32x128xf32>
    %cst_65 = arith.constant dense<0.000000e+00> : vector<128xf32>
    %80 = vector.multi_reduction <add>, %79, %cst_65 [0] : vector<32x128xf32> to vector<128xf32>
    %81 = vector.shape_cast %80 : vector<128xf32> to vector<1x128xf32>
    %cst_66 = arith.constant 3.200000e+01 : f32
    %82 = vector.broadcast %cst_66 : f32 to vector<1x128xf32>
    %83 = arith.divf %81, %82 : vector<1x128xf32>
    %84 = vector.broadcast %83 : vector<1x128xf32> to vector<32x128xf32>
    %85 = arith.subf %79, %84 : vector<32x128xf32>
    %86 = arith.mulf %85, %85 : vector<32x128xf32>
    %cst_67 = arith.constant dense<0.000000e+00> : vector<128xf32>
    %87 = vector.multi_reduction <add>, %86, %cst_67 [0] : vector<32x128xf32> to vector<128xf32>
    %88 = vector.shape_cast %87 : vector<128xf32> to vector<1x128xf32>
    %cst_68 = arith.constant 3.200000e+01 : f32
    %89 = vector.broadcast %cst_68 : f32 to vector<1x128xf32>
    %90 = arith.divf %88, %89 : vector<1x128xf32>
    %cst_69 = arith.constant 9.99999974E-6 : f32
    %91 = vector.broadcast %cst_69 : f32 to vector<1x128xf32>
    %92 = arith.addf %90, %91 : vector<1x128xf32>
    %93 = math.rsqrt %92 : vector<1x128xf32>
    %94 = vector.broadcast %93 : vector<1x128xf32> to vector<32x128xf32>
    %95 = arith.mulf %85, %94 : vector<32x128xf32>
    %c0_70 = arith.constant 0 : index
    %c0_71 = arith.constant 0 : index
    %96 = vector.load %arg6[%c0_70, %c0_71] : memref<1x128xf32, #tpu.memory_space<vmem>>, vector<1x128xf32>
    %97 = vector.broadcast %96 : vector<1x128xf32> to vector<32x128xf32>
    %98 = arith.mulf %95, %97 : vector<32x128xf32>
    %c0_72 = arith.constant 0 : index
    %c0_73 = arith.constant 0 : index
    %99 = vector.load %arg7[%c0_72, %c0_73] : memref<1x128xf32, #tpu.memory_space<vmem>>, vector<1x128xf32>
    %100 = vector.broadcast %99 : vector<1x128xf32> to vector<32x128xf32>
    %101 = arith.addf %98, %100 : vector<32x128xf32>
    %cst_74 = arith.constant 0.000000e+00 : f32
    %102 = vector.broadcast %cst_74 : f32 to vector<32x128xf32>
    %103 = arith.maximumf %101, %102 : vector<32x128xf32>
    %104 = arith.truncf %103 : vector<32x128xf32> to vector<32x128xbf16>
    %c0_75 = arith.constant 0 : index
    %c0_76 = arith.constant 0 : index
    %c0_77 = arith.constant 0 : index
    %105 = vector.load %arg8[%c0_75, %c0_76, %c0_77] : memref<16x8x32xbf16, #tpu.memory_space<vmem>>, vector<1x8x32xbf16>
    %106 = vector.shape_cast %105 : vector<1x8x32xbf16> to vector<8x32xbf16>
    %cst_78 = arith.constant dense<0.000000e+00> : vector<8x128xf32>
    %107 = tpu.matmul %106, %104, %cst_78 {dimension_numbers = #tpu.dot_dimension_numbers<[1], [0], [0], [1], [0, 0, 1, 1], [], []>} : vector<8x32xbf16>, vector<32x128xbf16>, vector<8x128xf32> -> vector<8x128xf32>
    %c1_79 = arith.constant 1 : index
    %c0_80 = arith.constant 0 : index
    %c0_81 = arith.constant 0 : index
    %108 = vector.load %arg8[%c1_79, %c0_80, %c0_81] : memref<16x8x32xbf16, #tpu.memory_space<vmem>>, vector<1x8x32xbf16>
    %109 = vector.shape_cast %108 : vector<1x8x32xbf16> to vector<8x32xbf16>
    %cst_82 = arith.constant dense<0.000000e+00> : vector<8x128xf32>
    %110 = tpu.matmul %109, %104, %cst_82 {dimension_numbers = #tpu.dot_dimension_numbers<[1], [0], [0], [1], [0, 0, 1, 1], [], []>} : vector<8x32xbf16>, vector<32x128xbf16>, vector<8x128xf32> -> vector<8x128xf32>
    %c2_83 = arith.constant 2 : index
    %c0_84 = arith.constant 0 : index
    %c0_85 = arith.constant 0 : index
    %111 = vector.load %arg8[%c2_83, %c0_84, %c0_85] : memref<16x8x32xbf16, #tpu.memory_space<vmem>>, vector<1x8x32xbf16>
    %112 = vector.shape_cast %111 : vector<1x8x32xbf16> to vector<8x32xbf16>
    %cst_86 = arith.constant dense<0.000000e+00> : vector<8x128xf32>
    %113 = tpu.matmul %112, %104, %cst_86 {dimension_numbers = #tpu.dot_dimension_numbers<[1], [0], [0], [1], [0, 0, 1, 1], [], []>} : vector<8x32xbf16>, vector<32x128xbf16>, vector<8x128xf32> -> vector<8x128xf32>
    %c3_87 = arith.constant 3 : index
    %c0_88 = arith.constant 0 : index
    %c0_89 = arith.constant 0 : index
    %114 = vector.load %arg8[%c3_87, %c0_88, %c0_89] : memref<16x8x32xbf16, #tpu.memory_space<vmem>>, vector<1x8x32xbf16>
    %115 = vector.shape_cast %114 : vector<1x8x32xbf16> to vector<8x32xbf16>
    %cst_90 = arith.constant dense<0.000000e+00> : vector<8x128xf32>
    %116 = tpu.matmul %115, %104, %cst_90 {dimension_numbers = #tpu.dot_dimension_numbers<[1], [0], [0], [1], [0, 0, 1, 1], [], []>} : vector<8x32xbf16>, vector<32x128xbf16>, vector<8x128xf32> -> vector<8x128xf32>
    %c4_91 = arith.constant 4 : index
    %c0_92 = arith.constant 0 : index
    %c0_93 = arith.constant 0 : index
    %117 = vector.load %arg8[%c4_91, %c0_92, %c0_93] : memref<16x8x32xbf16, #tpu.memory_space<vmem>>, vector<1x8x32xbf16>
    %118 = vector.shape_cast %117 : vector<1x8x32xbf16> to vector<8x32xbf16>
    %cst_94 = arith.constant dense<0.000000e+00> : vector<8x128xf32>
    %119 = tpu.matmul %118, %104, %cst_94 {dimension_numbers = #tpu.dot_dimension_numbers<[1], [0], [0], [1], [0, 0, 1, 1], [], []>} : vector<8x32xbf16>, vector<32x128xbf16>, vector<8x128xf32> -> vector<8x128xf32>
    %c5_95 = arith.constant 5 : index
    %c0_96 = arith.constant 0 : index
    %c0_97 = arith.constant 0 : index
    %120 = vector.load %arg8[%c5_95, %c0_96, %c0_97] : memref<16x8x32xbf16, #tpu.memory_space<vmem>>, vector<1x8x32xbf16>
    %121 = vector.shape_cast %120 : vector<1x8x32xbf16> to vector<8x32xbf16>
    %cst_98 = arith.constant dense<0.000000e+00> : vector<8x128xf32>
    %122 = tpu.matmul %121, %104, %cst_98 {dimension_numbers = #tpu.dot_dimension_numbers<[1], [0], [0], [1], [0, 0, 1, 1], [], []>} : vector<8x32xbf16>, vector<32x128xbf16>, vector<8x128xf32> -> vector<8x128xf32>
    %c6_99 = arith.constant 6 : index
    %c0_100 = arith.constant 0 : index
    %c0_101 = arith.constant 0 : index
    %123 = vector.load %arg8[%c6_99, %c0_100, %c0_101] : memref<16x8x32xbf16, #tpu.memory_space<vmem>>, vector<1x8x32xbf16>
    %124 = vector.shape_cast %123 : vector<1x8x32xbf16> to vector<8x32xbf16>
    %cst_102 = arith.constant dense<0.000000e+00> : vector<8x128xf32>
    %125 = tpu.matmul %124, %104, %cst_102 {dimension_numbers = #tpu.dot_dimension_numbers<[1], [0], [0], [1], [0, 0, 1, 1], [], []>} : vector<8x32xbf16>, vector<32x128xbf16>, vector<8x128xf32> -> vector<8x128xf32>
    %c7_103 = arith.constant 7 : index
    %c0_104 = arith.constant 0 : index
    %c0_105 = arith.constant 0 : index
    %126 = vector.load %arg8[%c7_103, %c0_104, %c0_105] : memref<16x8x32xbf16, #tpu.memory_space<vmem>>, vector<1x8x32xbf16>
    %127 = vector.shape_cast %126 : vector<1x8x32xbf16> to vector<8x32xbf16>
    %cst_106 = arith.constant dense<0.000000e+00> : vector<8x128xf32>
    %128 = tpu.matmul %127, %104, %cst_106 {dimension_numbers = #tpu.dot_dimension_numbers<[1], [0], [0], [1], [0, 0, 1, 1], [], []>} : vector<8x32xbf16>, vector<32x128xbf16>, vector<8x128xf32> -> vector<8x128xf32>
    %c8_107 = arith.constant 8 : index
    %c0_108 = arith.constant 0 : index
    %c0_109 = arith.constant 0 : index
    %129 = vector.load %arg8[%c8_107, %c0_108, %c0_109] : memref<16x8x32xbf16, #tpu.memory_space<vmem>>, vector<1x8x32xbf16>
    %130 = vector.shape_cast %129 : vector<1x8x32xbf16> to vector<8x32xbf16>
    %cst_110 = arith.constant dense<0.000000e+00> : vector<8x128xf32>
    %131 = tpu.matmul %130, %104, %cst_110 {dimension_numbers = #tpu.dot_dimension_numbers<[1], [0], [0], [1], [0, 0, 1, 1], [], []>} : vector<8x32xbf16>, vector<32x128xbf16>, vector<8x128xf32> -> vector<8x128xf32>
    %c9_111 = arith.constant 9 : index
    %c0_112 = arith.constant 0 : index
    %c0_113 = arith.constant 0 : index
    %132 = vector.load %arg8[%c9_111, %c0_112, %c0_113] : memref<16x8x32xbf16, #tpu.memory_space<vmem>>, vector<1x8x32xbf16>
    %133 = vector.shape_cast %132 : vector<1x8x32xbf16> to vector<8x32xbf16>
    %cst_114 = arith.constant dense<0.000000e+00> : vector<8x128xf32>
    %134 = tpu.matmul %133, %104, %cst_114 {dimension_numbers = #tpu.dot_dimension_numbers<[1], [0], [0], [1], [0, 0, 1, 1], [], []>} : vector<8x32xbf16>, vector<32x128xbf16>, vector<8x128xf32> -> vector<8x128xf32>
    %c10_115 = arith.constant 10 : index
    %c0_116 = arith.constant 0 : index
    %c0_117 = arith.constant 0 : index
    %135 = vector.load %arg8[%c10_115, %c0_116, %c0_117] : memref<16x8x32xbf16, #tpu.memory_space<vmem>>, vector<1x8x32xbf16>
    %136 = vector.shape_cast %135 : vector<1x8x32xbf16> to vector<8x32xbf16>
    %cst_118 = arith.constant dense<0.000000e+00> : vector<8x128xf32>
    %137 = tpu.matmul %136, %104, %cst_118 {dimension_numbers = #tpu.dot_dimension_numbers<[1], [0], [0], [1], [0, 0, 1, 1], [], []>} : vector<8x32xbf16>, vector<32x128xbf16>, vector<8x128xf32> -> vector<8x128xf32>
    %c11_119 = arith.constant 11 : index
    %c0_120 = arith.constant 0 : index
    %c0_121 = arith.constant 0 : index
    %138 = vector.load %arg8[%c11_119, %c0_120, %c0_121] : memref<16x8x32xbf16, #tpu.memory_space<vmem>>, vector<1x8x32xbf16>
    %139 = vector.shape_cast %138 : vector<1x8x32xbf16> to vector<8x32xbf16>
    %cst_122 = arith.constant dense<0.000000e+00> : vector<8x128xf32>
    %140 = tpu.matmul %139, %104, %cst_122 {dimension_numbers = #tpu.dot_dimension_numbers<[1], [0], [0], [1], [0, 0, 1, 1], [], []>} : vector<8x32xbf16>, vector<32x128xbf16>, vector<8x128xf32> -> vector<8x128xf32>
    %c12_123 = arith.constant 12 : index
    %c0_124 = arith.constant 0 : index
    %c0_125 = arith.constant 0 : index
    %141 = vector.load %arg8[%c12_123, %c0_124, %c0_125] : memref<16x8x32xbf16, #tpu.memory_space<vmem>>, vector<1x8x32xbf16>
    %142 = vector.shape_cast %141 : vector<1x8x32xbf16> to vector<8x32xbf16>
    %cst_126 = arith.constant dense<0.000000e+00> : vector<8x128xf32>
    %143 = tpu.matmul %142, %104, %cst_126 {dimension_numbers = #tpu.dot_dimension_numbers<[1], [0], [0], [1], [0, 0, 1, 1], [], []>} : vector<8x32xbf16>, vector<32x128xbf16>, vector<8x128xf32> -> vector<8x128xf32>
    %c13_127 = arith.constant 13 : index
    %c0_128 = arith.constant 0 : index
    %c0_129 = arith.constant 0 : index
    %144 = vector.load %arg8[%c13_127, %c0_128, %c0_129] : memref<16x8x32xbf16, #tpu.memory_space<vmem>>, vector<1x8x32xbf16>
    %145 = vector.shape_cast %144 : vector<1x8x32xbf16> to vector<8x32xbf16>
    %cst_130 = arith.constant dense<0.000000e+00> : vector<8x128xf32>
    %146 = tpu.matmul %145, %104, %cst_130 {dimension_numbers = #tpu.dot_dimension_numbers<[1], [0], [0], [1], [0, 0, 1, 1], [], []>} : vector<8x32xbf16>, vector<32x128xbf16>, vector<8x128xf32> -> vector<8x128xf32>
    %c14_131 = arith.constant 14 : index
    %c0_132 = arith.constant 0 : index
    %c0_133 = arith.constant 0 : index
    %147 = vector.load %arg8[%c14_131, %c0_132, %c0_133] : memref<16x8x32xbf16, #tpu.memory_space<vmem>>, vector<1x8x32xbf16>
    %148 = vector.shape_cast %147 : vector<1x8x32xbf16> to vector<8x32xbf16>
    %cst_134 = arith.constant dense<0.000000e+00> : vector<8x128xf32>
    %149 = tpu.matmul %148, %104, %cst_134 {dimension_numbers = #tpu.dot_dimension_numbers<[1], [0], [0], [1], [0, 0, 1, 1], [], []>} : vector<8x32xbf16>, vector<32x128xbf16>, vector<8x128xf32> -> vector<8x128xf32>
    %c15_135 = arith.constant 15 : index
    %c0_136 = arith.constant 0 : index
    %c0_137 = arith.constant 0 : index
    %150 = vector.load %arg8[%c15_135, %c0_136, %c0_137] : memref<16x8x32xbf16, #tpu.memory_space<vmem>>, vector<1x8x32xbf16>
    %151 = vector.shape_cast %150 : vector<1x8x32xbf16> to vector<8x32xbf16>
    %cst_138 = arith.constant dense<0.000000e+00> : vector<8x128xf32>
    %152 = tpu.matmul %151, %104, %cst_138 {dimension_numbers = #tpu.dot_dimension_numbers<[1], [0], [0], [1], [0, 0, 1, 1], [], []>} : vector<8x32xbf16>, vector<32x128xbf16>, vector<8x128xf32> -> vector<8x128xf32>
    %153 = tpu.concatenate %107, %110, %113, %116, %119, %122, %125, %128, %131, %134, %137, %140, %143, %146, %149, %152 in 1 : vector<8x128xf32>, vector<8x128xf32>, vector<8x128xf32>, vector<8x128xf32>, vector<8x128xf32>, vector<8x128xf32>, vector<8x128xf32>, vector<8x128xf32>, vector<8x128xf32>, vector<8x128xf32>, vector<8x128xf32>, vector<8x128xf32>, vector<8x128xf32>, vector<8x128xf32>, vector<8x128xf32>, vector<8x128xf32> -> vector<8x2048xf32>
    %154 = arith.truncf %153 : vector<8x2048xf32> to vector<8x2048xbf16>
    %c0_139 = arith.constant 0 : index
    %c0_140 = arith.constant 0 : index
    %155 = vector.load %arg9[%c0_139, %c0_140] : memref<2048x128xbf16, #tpu.memory_space<vmem>>, vector<2048x128xbf16>
    %cst_141 = arith.constant dense<0.000000e+00> : vector<8x128xf32>
    %156 = tpu.matmul %154, %155, %cst_141 {dimension_numbers = #tpu.dot_dimension_numbers<[1], [0], [0], [1], [0, 0, 1, 1], [], []>} : vector<8x2048xbf16>, vector<2048x128xbf16>, vector<8x128xf32> -> vector<8x128xf32>
    %cst_142 = arith.constant dense<0.000000e+00> : vector<128xf32>
    %157 = vector.multi_reduction <add>, %156, %cst_142 [0] : vector<8x128xf32> to vector<128xf32>
    %158 = vector.shape_cast %157 : vector<128xf32> to vector<1x128xf32>
    %cst_143 = arith.constant 8.000000e+00 : f32
    %159 = vector.broadcast %cst_143 : f32 to vector<1x128xf32>
    %160 = arith.divf %158, %159 : vector<1x128xf32>
    %161 = vector.broadcast %160 : vector<1x128xf32> to vector<8x128xf32>
    %162 = arith.subf %156, %161 : vector<8x128xf32>
    %163 = arith.mulf %162, %162 : vector<8x128xf32>
    %cst_144 = arith.constant dense<0.000000e+00> : vector<128xf32>
    %164 = vector.multi_reduction <add>, %163, %cst_144 [0] : vector<8x128xf32> to vector<128xf32>
    %165 = vector.shape_cast %164 : vector<128xf32> to vector<1x128xf32>
    %cst_145 = arith.constant 8.000000e+00 : f32
    %166 = vector.broadcast %cst_145 : f32 to vector<1x128xf32>
    %167 = arith.divf %165, %166 : vector<1x128xf32>
    %cst_146 = arith.constant 9.99999974E-6 : f32
    %168 = vector.broadcast %cst_146 : f32 to vector<1x128xf32>
    %169 = arith.addf %167, %168 : vector<1x128xf32>
    %170 = math.rsqrt %169 : vector<1x128xf32>
    %171 = vector.broadcast %170 : vector<1x128xf32> to vector<8x128xf32>
    %172 = arith.mulf %162, %171 : vector<8x128xf32>
    %c0_147 = arith.constant 0 : index
    %c0_148 = arith.constant 0 : index
    %173 = vector.load %arg10[%c0_147, %c0_148] : memref<1x128xf32, #tpu.memory_space<vmem>>, vector<1x128xf32>
    %174 = vector.broadcast %173 : vector<1x128xf32> to vector<8x128xf32>
    %175 = arith.mulf %172, %174 : vector<8x128xf32>
    %c0_149 = arith.constant 0 : index
    %c0_150 = arith.constant 0 : index
    %176 = vector.load %arg11[%c0_149, %c0_150] : memref<1x128xf32, #tpu.memory_space<vmem>>, vector<1x128xf32>
    %177 = vector.broadcast %176 : vector<1x128xf32> to vector<8x128xf32>
    %178 = arith.addf %175, %177 : vector<8x128xf32>
    %cst_151 = arith.constant 0.000000e+00 : f32
    %179 = vector.broadcast %cst_151 : f32 to vector<8x128xf32>
    %180 = arith.maximumf %178, %179 : vector<8x128xf32>
    %181 = arith.truncf %180 : vector<8x128xf32> to vector<8x128xbf16>
    %c0_152 = arith.constant 0 : index
    %c0_153 = arith.constant 0 : index
    %c0_154 = arith.constant 0 : index
    %182 = vector.load %arg12[%c0_152, %c0_153, %c0_154] : memref<16x2x8xbf16, #tpu.memory_space<vmem>>, vector<1x2x8xbf16>
    %183 = vector.shape_cast %182 : vector<1x2x8xbf16> to vector<2x8xbf16>
    %cst_155 = arith.constant dense<0.000000e+00> : vector<2x128xf32>
    %184 = tpu.matmul %183, %181, %cst_155 {dimension_numbers = #tpu.dot_dimension_numbers<[1], [0], [0], [1], [0, 0, 1, 1], [], []>} : vector<2x8xbf16>, vector<8x128xbf16>, vector<2x128xf32> -> vector<2x128xf32>
    %c1_156 = arith.constant 1 : index
    %c0_157 = arith.constant 0 : index
    %c0_158 = arith.constant 0 : index
    %185 = vector.load %arg12[%c1_156, %c0_157, %c0_158] : memref<16x2x8xbf16, #tpu.memory_space<vmem>>, vector<1x2x8xbf16>
    %186 = vector.shape_cast %185 : vector<1x2x8xbf16> to vector<2x8xbf16>
    %cst_159 = arith.constant dense<0.000000e+00> : vector<2x128xf32>
    %187 = tpu.matmul %186, %181, %cst_159 {dimension_numbers = #tpu.dot_dimension_numbers<[1], [0], [0], [1], [0, 0, 1, 1], [], []>} : vector<2x8xbf16>, vector<8x128xbf16>, vector<2x128xf32> -> vector<2x128xf32>
    %c2_160 = arith.constant 2 : index
    %c0_161 = arith.constant 0 : index
    %c0_162 = arith.constant 0 : index
    %188 = vector.load %arg12[%c2_160, %c0_161, %c0_162] : memref<16x2x8xbf16, #tpu.memory_space<vmem>>, vector<1x2x8xbf16>
    %189 = vector.shape_cast %188 : vector<1x2x8xbf16> to vector<2x8xbf16>
    %cst_163 = arith.constant dense<0.000000e+00> : vector<2x128xf32>
    %190 = tpu.matmul %189, %181, %cst_163 {dimension_numbers = #tpu.dot_dimension_numbers<[1], [0], [0], [1], [0, 0, 1, 1], [], []>} : vector<2x8xbf16>, vector<8x128xbf16>, vector<2x128xf32> -> vector<2x128xf32>
    %c3_164 = arith.constant 3 : index
    %c0_165 = arith.constant 0 : index
    %c0_166 = arith.constant 0 : index
    %191 = vector.load %arg12[%c3_164, %c0_165, %c0_166] : memref<16x2x8xbf16, #tpu.memory_space<vmem>>, vector<1x2x8xbf16>
    %192 = vector.shape_cast %191 : vector<1x2x8xbf16> to vector<2x8xbf16>
    %cst_167 = arith.constant dense<0.000000e+00> : vector<2x128xf32>
    %193 = tpu.matmul %192, %181, %cst_167 {dimension_numbers = #tpu.dot_dimension_numbers<[1], [0], [0], [1], [0, 0, 1, 1], [], []>} : vector<2x8xbf16>, vector<8x128xbf16>, vector<2x128xf32> -> vector<2x128xf32>
    %c4_168 = arith.constant 4 : index
    %c0_169 = arith.constant 0 : index
    %c0_170 = arith.constant 0 : index
    %194 = vector.load %arg12[%c4_168, %c0_169, %c0_170] : memref<16x2x8xbf16, #tpu.memory_space<vmem>>, vector<1x2x8xbf16>
    %195 = vector.shape_cast %194 : vector<1x2x8xbf16> to vector<2x8xbf16>
    %cst_171 = arith.constant dense<0.000000e+00> : vector<2x128xf32>
    %196 = tpu.matmul %195, %181, %cst_171 {dimension_numbers = #tpu.dot_dimension_numbers<[1], [0], [0], [1], [0, 0, 1, 1], [], []>} : vector<2x8xbf16>, vector<8x128xbf16>, vector<2x128xf32> -> vector<2x128xf32>
    %c5_172 = arith.constant 5 : index
    %c0_173 = arith.constant 0 : index
    %c0_174 = arith.constant 0 : index
    %197 = vector.load %arg12[%c5_172, %c0_173, %c0_174] : memref<16x2x8xbf16, #tpu.memory_space<vmem>>, vector<1x2x8xbf16>
    %198 = vector.shape_cast %197 : vector<1x2x8xbf16> to vector<2x8xbf16>
    %cst_175 = arith.constant dense<0.000000e+00> : vector<2x128xf32>
    %199 = tpu.matmul %198, %181, %cst_175 {dimension_numbers = #tpu.dot_dimension_numbers<[1], [0], [0], [1], [0, 0, 1, 1], [], []>} : vector<2x8xbf16>, vector<8x128xbf16>, vector<2x128xf32> -> vector<2x128xf32>
    %c6_176 = arith.constant 6 : index
    %c0_177 = arith.constant 0 : index
    %c0_178 = arith.constant 0 : index
    %200 = vector.load %arg12[%c6_176, %c0_177, %c0_178] : memref<16x2x8xbf16, #tpu.memory_space<vmem>>, vector<1x2x8xbf16>
    %201 = vector.shape_cast %200 : vector<1x2x8xbf16> to vector<2x8xbf16>
    %cst_179 = arith.constant dense<0.000000e+00> : vector<2x128xf32>
    %202 = tpu.matmul %201, %181, %cst_179 {dimension_numbers = #tpu.dot_dimension_numbers<[1], [0], [0], [1], [0, 0, 1, 1], [], []>} : vector<2x8xbf16>, vector<8x128xbf16>, vector<2x128xf32> -> vector<2x128xf32>
    %c7_180 = arith.constant 7 : index
    %c0_181 = arith.constant 0 : index
    %c0_182 = arith.constant 0 : index
    %203 = vector.load %arg12[%c7_180, %c0_181, %c0_182] : memref<16x2x8xbf16, #tpu.memory_space<vmem>>, vector<1x2x8xbf16>
    %204 = vector.shape_cast %203 : vector<1x2x8xbf16> to vector<2x8xbf16>
    %cst_183 = arith.constant dense<0.000000e+00> : vector<2x128xf32>
    %205 = tpu.matmul %204, %181, %cst_183 {dimension_numbers = #tpu.dot_dimension_numbers<[1], [0], [0], [1], [0, 0, 1, 1], [], []>} : vector<2x8xbf16>, vector<8x128xbf16>, vector<2x128xf32> -> vector<2x128xf32>
    %c8_184 = arith.constant 8 : index
    %c0_185 = arith.constant 0 : index
    %c0_186 = arith.constant 0 : index
    %206 = vector.load %arg12[%c8_184, %c0_185, %c0_186] : memref<16x2x8xbf16, #tpu.memory_space<vmem>>, vector<1x2x8xbf16>
    %207 = vector.shape_cast %206 : vector<1x2x8xbf16> to vector<2x8xbf16>
    %cst_187 = arith.constant dense<0.000000e+00> : vector<2x128xf32>
    %208 = tpu.matmul %207, %181, %cst_187 {dimension_numbers = #tpu.dot_dimension_numbers<[1], [0], [0], [1], [0, 0, 1, 1], [], []>} : vector<2x8xbf16>, vector<8x128xbf16>, vector<2x128xf32> -> vector<2x128xf32>
    %c9_188 = arith.constant 9 : index
    %c0_189 = arith.constant 0 : index
    %c0_190 = arith.constant 0 : index
    %209 = vector.load %arg12[%c9_188, %c0_189, %c0_190] : memref<16x2x8xbf16, #tpu.memory_space<vmem>>, vector<1x2x8xbf16>
    %210 = vector.shape_cast %209 : vector<1x2x8xbf16> to vector<2x8xbf16>
    %cst_191 = arith.constant dense<0.000000e+00> : vector<2x128xf32>
    %211 = tpu.matmul %210, %181, %cst_191 {dimension_numbers = #tpu.dot_dimension_numbers<[1], [0], [0], [1], [0, 0, 1, 1], [], []>} : vector<2x8xbf16>, vector<8x128xbf16>, vector<2x128xf32> -> vector<2x128xf32>
    %c10_192 = arith.constant 10 : index
    %c0_193 = arith.constant 0 : index
    %c0_194 = arith.constant 0 : index
    %212 = vector.load %arg12[%c10_192, %c0_193, %c0_194] : memref<16x2x8xbf16, #tpu.memory_space<vmem>>, vector<1x2x8xbf16>
    %213 = vector.shape_cast %212 : vector<1x2x8xbf16> to vector<2x8xbf16>
    %cst_195 = arith.constant dense<0.000000e+00> : vector<2x128xf32>
    %214 = tpu.matmul %213, %181, %cst_195 {dimension_numbers = #tpu.dot_dimension_numbers<[1], [0], [0], [1], [0, 0, 1, 1], [], []>} : vector<2x8xbf16>, vector<8x128xbf16>, vector<2x128xf32> -> vector<2x128xf32>
    %c11_196 = arith.constant 11 : index
    %c0_197 = arith.constant 0 : index
    %c0_198 = arith.constant 0 : index
    %215 = vector.load %arg12[%c11_196, %c0_197, %c0_198] : memref<16x2x8xbf16, #tpu.memory_space<vmem>>, vector<1x2x8xbf16>
    %216 = vector.shape_cast %215 : vector<1x2x8xbf16> to vector<2x8xbf16>
    %cst_199 = arith.constant dense<0.000000e+00> : vector<2x128xf32>
    %217 = tpu.matmul %216, %181, %cst_199 {dimension_numbers = #tpu.dot_dimension_numbers<[1], [0], [0], [1], [0, 0, 1, 1], [], []>} : vector<2x8xbf16>, vector<8x128xbf16>, vector<2x128xf32> -> vector<2x128xf32>
    %c12_200 = arith.constant 12 : index
    %c0_201 = arith.constant 0 : index
    %c0_202 = arith.constant 0 : index
    %218 = vector.load %arg12[%c12_200, %c0_201, %c0_202] : memref<16x2x8xbf16, #tpu.memory_space<vmem>>, vector<1x2x8xbf16>
    %219 = vector.shape_cast %218 : vector<1x2x8xbf16> to vector<2x8xbf16>
    %cst_203 = arith.constant dense<0.000000e+00> : vector<2x128xf32>
    %220 = tpu.matmul %219, %181, %cst_203 {dimension_numbers = #tpu.dot_dimension_numbers<[1], [0], [0], [1], [0, 0, 1, 1], [], []>} : vector<2x8xbf16>, vector<8x128xbf16>, vector<2x128xf32> -> vector<2x128xf32>
    %c13_204 = arith.constant 13 : index
    %c0_205 = arith.constant 0 : index
    %c0_206 = arith.constant 0 : index
    %221 = vector.load %arg12[%c13_204, %c0_205, %c0_206] : memref<16x2x8xbf16, #tpu.memory_space<vmem>>, vector<1x2x8xbf16>
    %222 = vector.shape_cast %221 : vector<1x2x8xbf16> to vector<2x8xbf16>
    %cst_207 = arith.constant dense<0.000000e+00> : vector<2x128xf32>
    %223 = tpu.matmul %222, %181, %cst_207 {dimension_numbers = #tpu.dot_dimension_numbers<[1], [0], [0], [1], [0, 0, 1, 1], [], []>} : vector<2x8xbf16>, vector<8x128xbf16>, vector<2x128xf32> -> vector<2x128xf32>
    %c14_208 = arith.constant 14 : index
    %c0_209 = arith.constant 0 : index
    %c0_210 = arith.constant 0 : index
    %224 = vector.load %arg12[%c14_208, %c0_209, %c0_210] : memref<16x2x8xbf16, #tpu.memory_space<vmem>>, vector<1x2x8xbf16>
    %225 = vector.shape_cast %224 : vector<1x2x8xbf16> to vector<2x8xbf16>
    %cst_211 = arith.constant dense<0.000000e+00> : vector<2x128xf32>
    %226 = tpu.matmul %225, %181, %cst_211 {dimension_numbers = #tpu.dot_dimension_numbers<[1], [0], [0], [1], [0, 0, 1, 1], [], []>} : vector<2x8xbf16>, vector<8x128xbf16>, vector<2x128xf32> -> vector<2x128xf32>
    %c15_212 = arith.constant 15 : index
    %c0_213 = arith.constant 0 : index
    %c0_214 = arith.constant 0 : index
    %227 = vector.load %arg12[%c15_212, %c0_213, %c0_214] : memref<16x2x8xbf16, #tpu.memory_space<vmem>>, vector<1x2x8xbf16>
    %228 = vector.shape_cast %227 : vector<1x2x8xbf16> to vector<2x8xbf16>
    %cst_215 = arith.constant dense<0.000000e+00> : vector<2x128xf32>
    %229 = tpu.matmul %228, %181, %cst_215 {dimension_numbers = #tpu.dot_dimension_numbers<[1], [0], [0], [1], [0, 0, 1, 1], [], []>} : vector<2x8xbf16>, vector<8x128xbf16>, vector<2x128xf32> -> vector<2x128xf32>
    %230 = tpu.concatenate %184, %187, %190, %193, %196, %199, %202, %205, %208, %211, %214, %217, %220, %223, %226, %229 in 1 : vector<2x128xf32>, vector<2x128xf32>, vector<2x128xf32>, vector<2x128xf32>, vector<2x128xf32>, vector<2x128xf32>, vector<2x128xf32>, vector<2x128xf32>, vector<2x128xf32>, vector<2x128xf32>, vector<2x128xf32>, vector<2x128xf32>, vector<2x128xf32>, vector<2x128xf32>, vector<2x128xf32>, vector<2x128xf32> -> vector<2x2048xf32>
    %231 = arith.truncf %230 : vector<2x2048xf32> to vector<2x2048xbf16>
    %c0_216 = arith.constant 0 : index
    %c0_217 = arith.constant 0 : index
    %232 = vector.load %arg13[%c0_216, %c0_217] : memref<2048x256xbf16, #tpu.memory_space<vmem>>, vector<2048x256xbf16>
    %cst_218 = arith.constant dense<0.000000e+00> : vector<2x256xf32>
    %233 = tpu.matmul %231, %232, %cst_218 {dimension_numbers = #tpu.dot_dimension_numbers<[1], [0], [0], [1], [0, 0, 1, 1], [], []>} : vector<2x2048xbf16>, vector<2048x256xbf16>, vector<2x256xf32> -> vector<2x256xf32>
    %cst_219 = arith.constant dense<0.000000e+00> : vector<256xf32>
    %234 = vector.multi_reduction <add>, %233, %cst_219 [0] : vector<2x256xf32> to vector<256xf32>
    %235 = vector.shape_cast %234 : vector<256xf32> to vector<1x256xf32>
    %cst_220 = arith.constant 2.000000e+00 : f32
    %236 = vector.broadcast %cst_220 : f32 to vector<1x256xf32>
    %237 = arith.divf %235, %236 : vector<1x256xf32>
    %238 = vector.broadcast %237 : vector<1x256xf32> to vector<2x256xf32>
    %239 = arith.subf %233, %238 : vector<2x256xf32>
    %240 = arith.mulf %239, %239 : vector<2x256xf32>
    %cst_221 = arith.constant dense<0.000000e+00> : vector<256xf32>
    %241 = vector.multi_reduction <add>, %240, %cst_221 [0] : vector<2x256xf32> to vector<256xf32>
    %242 = vector.shape_cast %241 : vector<256xf32> to vector<1x256xf32>
    %cst_222 = arith.constant 2.000000e+00 : f32
    %243 = vector.broadcast %cst_222 : f32 to vector<1x256xf32>
    %244 = arith.divf %242, %243 : vector<1x256xf32>
    %cst_223 = arith.constant 9.99999974E-6 : f32
    %245 = vector.broadcast %cst_223 : f32 to vector<1x256xf32>
    %246 = arith.addf %244, %245 : vector<1x256xf32>
    %247 = math.rsqrt %246 : vector<1x256xf32>
    %248 = vector.broadcast %247 : vector<1x256xf32> to vector<2x256xf32>
    %249 = arith.mulf %239, %248 : vector<2x256xf32>
    %c0_224 = arith.constant 0 : index
    %c0_225 = arith.constant 0 : index
    %250 = vector.load %arg14[%c0_224, %c0_225] : memref<1x256xf32, #tpu.memory_space<vmem>>, vector<1x256xf32>
    %251 = vector.broadcast %250 : vector<1x256xf32> to vector<2x256xf32>
    %252 = arith.mulf %249, %251 : vector<2x256xf32>
    %c0_226 = arith.constant 0 : index
    %c0_227 = arith.constant 0 : index
    %253 = vector.load %arg15[%c0_226, %c0_227] : memref<1x256xf32, #tpu.memory_space<vmem>>, vector<1x256xf32>
    %254 = vector.broadcast %253 : vector<1x256xf32> to vector<2x256xf32>
    %255 = arith.addf %252, %254 : vector<2x256xf32>
    %cst_228 = arith.constant 0.000000e+00 : f32
    %256 = vector.broadcast %cst_228 : f32 to vector<2x256xf32>
    %257 = arith.maximumf %255, %256 : vector<2x256xf32>
    %c0_229 = arith.constant 0 : index
    %c0_230 = arith.constant 0 : index
    %258 = vector.load %arg16[%c0_229, %c0_230] : memref<2x256xf32, #tpu.memory_space<vmem>>, vector<2x256xf32>
    tpu.vector_store %arg16[%c0_229, %c0_230], %257 {strides = array<i32>} : memref<2x256xf32, #tpu.memory_space<vmem>>, vector<2x256xf32>,
    return
  }
}

</mosaic_0001>

<llo_original>
// kernel: patch_discriminator_forward.1
$region0: #{patch_discriminator_forward.1}
  #allocation0 [shape = 'u32[]', space=smem, size = 0x4, offset = 0x4, fixed_abs, tag = 'smem constant byte address 0x4 - core index']
  #allocation1 [shape = 'u32[72,128]{1,0:T(1,128)}', space=vmem, size = 0x9000, scoped, tag = 'internal scratch']
  %s0 = inlined_call_operand.vmem [shape: bf16[128,48], index: 0, kind: input, shape index: {}]
  %s1 = inlined_call_operand.vmem [shape: bf16[48,128], index: 1, kind: input, shape index: {}]
  %s2 = inlined_call_operand.vmem [shape: f32[1,128], index: 2, kind: input, shape index: {}]
  %s3 = inlined_call_operand.vmem [shape: f32[1,128], index: 3, kind: input, shape index: {}]
  %s4 = inlined_call_operand.vmem [shape: bf16[16,32,128], index: 4, kind: input, shape index: {}]
  %s5 = inlined_call_operand.hbm [shape: bf16[2048,128], index: 5, kind: input, shape index: {}]
  %s6 = inlined_call_operand.vmem [shape: f32[1,128], index: 6, kind: input, shape index: {}]
  %s7 = inlined_call_operand.vmem [shape: f32[1,128], index: 7, kind: input, shape index: {}]
  %s8 = inlined_call_operand.vmem [shape: bf16[16,8,32], index: 8, kind: input, shape index: {}]
  %s9 = inlined_call_operand.hbm [shape: bf16[2048,128], index: 9, kind: input, shape index: {}]
  %s10 = inlined_call_operand.vmem [shape: f32[1,128], index: 10, kind: input, shape index: {}]
  %s11 = inlined_call_operand.vmem [shape: f32[1,128], index: 11, kind: input, shape index: {}]
  %s12 = inlined_call_operand.vmem [shape: bf16[16,2,8], index: 12, kind: input, shape index: {}]
  %s13 = inlined_call_operand.vmem [shape: bf16[2048,256], index: 13, kind: input, shape index: {}]
  %s14 = inlined_call_operand.vmem [shape: f32[1,256], index: 14, kind: input, shape index: {}]
  %s15 = inlined_call_operand.vmem [shape: f32[1,256], index: 15, kind: input, shape index: {}]
  %s16 = inlined_call_operand.vmem [shape: f32[2,256], index: 16, kind: output, shape index: {}]
  %s17 = sld [smem:[#allocation0]]
  $region82: #{patch_discriminator_forward.1} parent=0
    _
  %s19 = ssub.s32 1, %s17
  %s20 = scalar_select 0, %s19, %s17
  $region1: #{patch_discriminator_forward.1} parent=0
    #allocation2 [shape = 'u8[524288]{0}', space=vmem, size = 0x80000, scoped, tag = 'input window, operand 5, single buffered']
    #allocation3 [shape = 's32[1]{0}', space=sflag, size = 0x4, scoped, tag = 'scoped memory for patch_discriminator_forward.1']
    #allocation4 [shape = 'u8[524288]{0}', space=vmem, size = 0x80000, scoped, tag = 'input window, operand 9, single buffered']
    #allocation5 [shape = 's32[1]{0}', space=sflag, size = 0x4, scoped, tag = 'scoped memory for patch_discriminator_forward.1']
    %21 = vsyncpa [#allocation3], 0
    %22 = vsyncpa [#allocation5], 0
    // Predicated region
    $region2: #{patch_discriminator_forward.1} parent=1 // pred_check
      _
    $region3: #{patch_discriminator_forward.1} parent=1 // pred_check_branch
      %24 = sbr.rel (0) target = $region5
    $region4: #{patch_discriminator_forward.1} parent=1 // pred_region
      _
    $region5: #{patch_discriminator_forward.1} parent=1 // pred_fallthru
      _
    // Predicated region
    $region6: #{patch_discriminator_forward.1} parent=1 // pred_check
      _
    $region7: #{patch_discriminator_forward.1} parent=1 // pred_check_branch
      %26 = sbr.rel (0) target = $region9
    $region8: #{patch_discriminator_forward.1} parent=1 // pred_region
      _
    $region9: #{patch_discriminator_forward.1} parent=1 // pred_fallthru
      _
    // Predicated region
    $region10: #{patch_discriminator_forward.1} parent=1 // pred_check
      _
    $region11: #{patch_discriminator_forward.1} parent=1 // pred_check_branch
      %28 = sbr.rel (0) target = $region13
    $region12: #{patch_discriminator_forward.1} parent=1 // pred_region
      _
    $region13: #{patch_discriminator_forward.1} parent=1 // pred_fallthru
      _
    // Predicated region
    $region14: #{patch_discriminator_forward.1} parent=1 // pred_check
      _
    $region15: #{patch_discriminator_forward.1} parent=1 // pred_check_branch
      %30 = sbr.rel (0) target = $region17
    $region16: #{patch_discriminator_forward.1} parent=1 // pred_region
      _
    $region17: #{patch_discriminator_forward.1} parent=1 // pred_fallthru
      _
    // Predicated region
    $region18: #{patch_discriminator_forward.1} parent=1 // pred_check
      _
    $region19: #{patch_discriminator_forward.1} parent=1 // pred_check_branch
      %32 = sbr.rel (0) target = $region21
    $region20: #{patch_discriminator_forward.1} parent=1 // pred_region
      _
    $region21: #{patch_discriminator_forward.1} parent=1 // pred_fallthru
      _
    // Predicated region
    $region22: #{patch_discriminator_forward.1} parent=1 // pred_check
      _
    $region23: #{patch_discriminator_forward.1} parent=1 // pred_check_branch
      %34 = sbr.rel (0) target = $region25
    $region24: #{patch_discriminator_forward.1} parent=1 // pred_region
      %36 = vsyncadd [#allocation3], 0
      %s37 = sshll.u32 %s5, 4
      %s38 = int_to_ptr.hbm [resolvable:$true] %s37
      %s39 = sshll.u32 [#allocation2], 4
      %s40 = int_to_ptr.vmem [resolvable:$true] %s39
      %45 = dma.hbm_to_vmem [thread:$0]  %s38, 16384, %s40, [#allocation3], 64, 64, 4
    $region25: #{patch_discriminator_forward.1} parent=1 // pred_fallthru
      _
    // Predicated region
    $region26: #{patch_discriminator_forward.1} parent=1 // pred_check
      _
    $region27: #{patch_discriminator_forward.1} parent=1 // pred_check_branch
      %47 = sbr.rel (0) target = $region29
    $region28: #{patch_discriminator_forward.1} parent=1 // pred_region
      _
    $region29: #{patch_discriminator_forward.1} parent=1 // pred_fallthru
      _
    // Predicated region
    $region30: #{patch_discriminator_forward.1} parent=1 // pred_check
      _
    $region31: #{patch_discriminator_forward.1} parent=1 // pred_check_branch
      %49 = sbr.rel (0) target = $region33
    $region32: #{patch_discriminator_forward.1} parent=1 // pred_region
      _
    $region33: #{patch_discriminator_forward.1} parent=1 // pred_fallthru
      _
    // Predicated region
    $region34: #{patch_discriminator_forward.1} parent=1 // pred_check
      _
    $region35: #{patch_discriminator_forward.1} parent=1 // pred_check_branch
      %51 = sbr.rel (0) target = $region37
    $region36: #{patch_discriminator_forward.1} parent=1 // pred_region
      _
    $region37: #{patch_discriminator_forward.1} parent=1 // pred_fallthru
      _
    // Predicated region
    $region38: #{patch_discriminator_forward.1} parent=1 // pred_check
      _
    $region39: #{patch_discriminator_forward.1} parent=1 // pred_check_branch
      %53 = sbr.rel (0) target = $region41
    $region40: #{patch_discriminator_forward.1} parent=1 // pred_region
      %55 = vsyncadd [#allocation5], 0
      %s56 = sshll.u32 %s9, 4
      %s57 = int_to_ptr.hbm [resolvable:$true] %s56
      %s58 = sshll.u32 [#allocation4], 4
      %s59 = int_to_ptr.vmem [resolvable:$true] %s58
      %64 = dma.hbm_to_vmem [thread:$0]  %s57, 16384, %s59, [#allocation5], 64, 64, 4
    $region41: #{patch_discriminator_forward.1} parent=1 // pred_fallthru
      _
    // Predicated region
    $region42: #{patch_discriminator_forward.1} parent=1 // pred_check
      _
    $region43: #{patch_discriminator_forward.1} parent=1 // pred_check_branch
      %66 = sbr.rel (0) target = $region45
    $region44: #{patch_discriminator_forward.1} parent=1 // pred_region
      _
    $region45: #{patch_discriminator_forward.1} parent=1 // pred_fallthru
      _
    // Predicated region
    $region46: #{patch_discriminator_forward.1} parent=1 // pred_check
      _
    $region47: #{patch_discriminator_forward.1} parent=1 // pred_check_branch
      %68 = sbr.rel (0) target = $region49
    $region48: #{patch_discriminator_forward.1} parent=1 // pred_region
      _
    $region49: #{patch_discriminator_forward.1} parent=1 // pred_fallthru
      _
    // Predicated region
    $region50: #{patch_discriminator_forward.1} parent=1 // pred_check
      _
    $region51: #{patch_discriminator_forward.1} parent=1 // pred_check_branch
      %70 = sbr.rel (0) target = $region53
    $region52: #{patch_discriminator_forward.1} parent=1 // pred_region
      _
    $region53: #{patch_discriminator_forward.1} parent=1 // pred_fallthru
      _
    // Predicated region
    $region54: #{patch_discriminator_forward.1} parent=1 // pred_check
      _
    $region55: #{patch_discriminator_forward.1} parent=1 // pred_check_branch
      %72 = sbr.rel (0) target = $region57
    $region56: #{patch_discriminator_forward.1} parent=1 // pred_region
      _
    $region57: #{patch_discriminator_forward.1} parent=1 // pred_fallthru
      _
    // Predicated region
    $region58: #{patch_discriminator_forward.1} parent=1 // pred_check
      _
    $region59: #{patch_discriminator_forward.1} parent=1 // pred_check_branch
      %74 = sbr.rel (0) target = $region61
    $region60: #{patch_discriminator_forward.1} parent=1 // pred_region
      _
    $region61: #{patch_discriminator_forward.1} parent=1 // pred_fallthru
      _
    // Predicated region
    $region62: #{patch_discriminator_forward.1} parent=1 // pred_check
      _
    $region63: #{patch_discriminator_forward.1} parent=1 // pred_check_branch
      %76 = sbr.rel (0) target = $region65
    $region64: #{patch_discriminator_forward.1} parent=1 // pred_region
      _
    $region65: #{patch_discriminator_forward.1} parent=1 // pred_fallthru
      _
    // Predicated region
    $region66: #{patch_discriminator_forward.1} parent=1 // pred_check
      _
    $region67: #{patch_discriminator_forward.1} parent=1 // pred_check_branch
      %78 = sbr.rel (0) target = $region69
    $region68: #{patch_discriminator_forward.1} parent=1 // pred_region
      %80 = dma.done [#allocation3], 16384
    $region69: #{patch_discriminator_forward.1} parent=1 // pred_fallthru
      _
    // Predicated region
    $region70: #{patch_discriminator_forward.1} parent=1 // pred_check
      _
    $region71: #{patch_discriminator_forward.1} parent=1 // pred_check_branch
      %82 = sbr.rel (0) target = $region73
    $region72: #{patch_discriminator_forward.1} parent=1 // pred_region
      %84 = dma.done [#allocation5], 16384
    $region73: #{patch_discriminator_forward.1} parent=1 // pred_fallthru
      _
    %v86 = vld [vmem:[%s0] sm:$0xf]
    %v87 = vld [vmem:[%s0 + $0x4] sm:$0xf]
    %v88 = vld [vmem:[%s0 + $0x8] sm:$0xf]
    %v89 = vld [vmem:[%s0 + $0xc] sm:$0xf]
    %v90 = vld [vmem:[%s0 + $0x10] sm:$0xf]
    %v91 = vld [vmem:[%s0 + $0x14] sm:$0xf]
    %v92 = vld [vmem:[%s0 + $0x18] sm:$0xf]
    %v93 = vld [vmem:[%s0 + $0x1c] sm:$0xf]
    %v94 = vld [vmem:[%s0 + $0x20] sm:$0xf]
    %v95 = vld [vmem:[%s0 + $0x24] sm:$0xf]
    %v96 = vld [vmem:[%s0 + $0x28] sm:$0xf]
    %v97 = vld [vmem:[%s0 + $0x2c] sm:$0xf]
    %v98 = vld [vmem:[%s0 + $0x30] sm:$0xf]
    %v99 = vld [vmem:[%s0 + $0x34] sm:$0xf]
    %v100 = vld [vmem:[%s0 + $0x38] sm:$0xf]
    %v101 = vld [vmem:[%s0 + $0x3c] sm:$0xf]
    %v102 = vld [vmem:[%s1] sm:$0xf]
    %v103 = vld [vmem:[%s1 + $0x4] sm:$0xf]
    %v104 = vld [vmem:[%s1 + $0x8] sm:$0xf]
    %v105 = vld [vmem:[%s1 + $0xc] sm:$0xf]
    %v106 = vld [vmem:[%s1 + $0x10] sm:$0xf]
    %v107 = vld [vmem:[%s1 + $0x14] sm:$0xf]
    %v124 = vunpack.c.l.b16 %v86
    %v125 = vunpack.c.l.b16 %v87
    %v126 = vunpack.c.l.b16 %v88
    %v127 = vunpack.c.l.b16 %v89
    %v128 = vunpack.c.l.b16 %v90
    %v129 = vunpack.c.l.b16 %v91
    %v130 = vunpack.c.l.b16 %v92
    %v131 = vunpack.c.l.b16 %v93
    %v132 = vunpack.c.l.b16 %v94
    %v133 = vunpack.c.l.b16 %v95
    %v134 = vunpack.c.l.b16 %v96
    %v135 = vunpack.c.l.b16 %v97
    %v136 = vunpack.c.l.b16 %v98
    %v137 = vunpack.c.l.b16 %v99
    %v138 = vunpack.c.l.b16 %v100
    %v139 = vunpack.c.l.b16 %v101
    %v140 = vpack.c.b16 %v125, %v124
    %v141 = vpack.c.b16 %v127, %v126
    %v142 = vpack.c.b16 %v129, %v128
    %v143 = vpack.c.b16 %v131, %v130
    %v144 = vpack.c.b16 %v133, %v132
    %v145 = vpack.c.b16 %v135, %v134
    %v146 = vpack.c.b16 %v137, %v136
    %v147 = vpack.c.b16 %v139, %v138
    %v154 = vunpack.c.l.b16 %v102
    %v155 = vunpack.c.l.b16 %v103
    %v156 = vunpack.c.l.b16 %v104
    %v157 = vunpack.c.l.b16 %v105
    %v158 = vunpack.c.l.b16 %v106
    %v159 = vunpack.c.l.b16 %v107
    %v160 = vpack.c.b16 %v155, %v154
    %v161 = vpack.c.b16 %v157, %v156
    %v162 = vpack.c.b16 %v159, %v158
    %vm166 = vcmask 392192
    %v168 = vsel %vm166, %v140, 0
    %v171 = vsel %vm166, %v141, 0
    %v174 = vsel %vm166, %v142, 0
    %v177 = vsel %vm166, %v143, 0
    %v180 = vsel %vm166, %v144, 0
    %v183 = vsel %vm166, %v145, 0
    %v186 = vsel %vm166, %v146, 0
    %v189 = vsel %vm166, %v147, 0
    %191 = vmatpush.bf16.msra.mxu0 0
    %192 = vmatpush.bf16.msra.mxu0 0
    %193 = vmatpush.bf16.msra.mxu0 0
    %194 = vmatpush.bf16.msra.mxu0 0
    %195 = vmatpush.bf16.msra.mxu0 0
    %196 = vmatpush.bf16.msra.mxu0 %v162
    %197 = vmatpush.bf16.msra.mxu0 %v161
    %198 = vmatpush.bf16.msra.mxu0 %v160
    %199 = vmatmul.bf16.gmra.mxu0 %v168
    %v200 = vpop.f32.mrf.mxu0
    %v201 = vadd.f32 0.0, %v200
    %v202 = vpop.f32.mrf.mxu0
    %v203 = vadd.f32 0.0, %v202
    %204 = vmatmul.bf16.gmra.mxu0 %v171
    %v205 = vpop.f32.mrf.mxu0
    %v206 = vadd.f32 0.0, %v205
    %v207 = vpop.f32.mrf.mxu0
    %v208 = vadd.f32 0.0, %v207
    %209 = vmatmul.bf16.gmra.mxu0 %v174
    %v210 = vpop.f32.mrf.mxu0
    %v211 = vadd.f32 0.0, %v210
    %v212 = vpop.f32.mrf.mxu0
    %v213 = vadd.f32 0.0, %v212
    %214 = vmatmul.bf16.gmra.mxu0 %v177
    %v215 = vpop.f32.mrf.mxu0
    %v216 = vadd.f32 0.0, %v215
    %v217 = vpop.f32.mrf.mxu0
    %v218 = vadd.f32 0.0, %v217
    %219 = vmatmul.bf16.gmra.mxu0 %v180
    %v220 = vpop.f32.mrf.mxu0
    %v221 = vadd.f32 0.0, %v220
    %v222 = vpop.f32.mrf.mxu0
    %v223 = vadd.f32 0.0, %v222
    %224 = vmatmul.bf16.gmra.mxu0 %v183
    %v225 = vpop.f32.mrf.mxu0
    %v226 = vadd.f32 0.0, %v225
    %v227 = vpop.f32.mrf.mxu0
    %v228 = vadd.f32 0.0, %v227
    %229 = vmatmul.bf16.gmra.mxu0 %v186
    %v230 = vpop.f32.mrf.mxu0
    %v231 = vadd.f32 0.0, %v230
    %v232 = vpop.f32.mrf.mxu0
    %v233 = vadd.f32 0.0, %v232
    %234 = vmatmul.bf16.gmra.mxu0 %v189
    %v235 = vpop.f32.mrf.mxu0
    %v236 = vadd.f32 0.0, %v235
    %v237 = vpop.f32.mrf.mxu0
    %v238 = vadd.f32 0.0, %v237
    %239 = vdwg.mxu0
    %v240 = vadd.f32 %v201, %v203
    %v241 = vadd.f32 %v240, %v206
    %v242 = vadd.f32 %v241, %v208
    %v243 = vadd.f32 %v242, %v211
    %v244 = vadd.f32 %v243, %v213
    %v245 = vadd.f32 %v244, %v216
    %v246 = vadd.f32 %v245, %v218
    %v247 = vadd.f32 %v246, %v221
    %v248 = vadd.f32 %v247, %v223
    %v249 = vadd.f32 %v248, %v226
    %v250 = vadd.f32 %v249, %v228
    %v251 = vadd.f32 %v250, %v231
    %v252 = vadd.f32 %v251, %v233
    %v253 = vadd.f32 %v252, %v236
    %v254 = vadd.f32 %v253, %v238
    %v255 = vrot.slane %v254, 4
    %v256 = vadd.f32 %v254, %v255
    %v257 = vrot.slane %v256, 2
    %v258 = vadd.f32 %v256, %v257
    %v259 = vrot.slane %v258, 1
    %v260 = vadd.f32 %v258, %v259
    %v261 = vrcp.pop 128.0
    %v262 = vmul.f32 128.0, %v261
    %v263 = vsub.f32 1.0, %v262
    %v264 = vmul.f32 %v261, %v263
    %v265 = vadd.f32 %v261, %v264
    %vm266 = vweird.f32 %v261
    %v267 = vsel %vm266, %v261, %v265
    %v268 = vmul.f32 %v260, %v267
    %v269 = vsub.f32 %v201, %v268
    %v270 = vsub.f32 %v203, %v268
    %v271 = vsub.f32 %v206, %v268
    %v272 = vsub.f32 %v208, %v268
    %v273 = vsub.f32 %v211, %v268
    %v274 = vsub.f32 %v213, %v268
    %v275 = vsub.f32 %v216, %v268
    %v276 = vsub.f32 %v218, %v268
    %v277 = vsub.f32 %v221, %v268
    %v278 = vsub.f32 %v223, %v268
    %v279 = vsub.f32 %v226, %v268
    %v280 = vsub.f32 %v228, %v268
    %v281 = vsub.f32 %v231, %v268
    %v282 = vsub.f32 %v233, %v268
    %v283 = vsub.f32 %v236, %v268
    %v284 = vsub.f32 %v238, %v268
    %v285 = vmul.f32 %v269, %v269
    %v286 = vmul.f32 %v270, %v270
    %v287 = vmul.f32 %v271, %v271
    %v288 = vmul.f32 %v272, %v272
    %v289 = vmul.f32 %v273, %v273
    %v290 = vmul.f32 %v274, %v274
    %v291 = vmul.f32 %v275, %v275
    %v292 = vmul.f32 %v276, %v276
    %v293 = vmul.f32 %v277, %v277
    %v294 = vmul.f32 %v278, %v278
    %v295 = vmul.f32 %v279, %v279
    %v296 = vmul.f32 %v280, %v280
    %v297 = vmul.f32 %v281, %v281
    %v298 = vmul.f32 %v282, %v282
    %v299 = vmul.f32 %v283, %v283
    %v300 = vmul.f32 %v284, %v284
    %v301 = vadd.f32 %v285, %v286
    %v302 = vadd.f32 %v301, %v287
    %v303 = vadd.f32 %v302, %v288
    %v304 = vadd.f32 %v303, %v289
    %v305 = vadd.f32 %v304, %v290
    %v306 = vadd.f32 %v305, %v291
    %v307 = vadd.f32 %v306, %v292
    %v308 = vadd.f32 %v307, %v293
    %v309 = vadd.f32 %v308, %v294
    %v310 = vadd.f32 %v309, %v295
    %v311 = vadd.f32 %v310, %v296
    %v312 = vadd.f32 %v311, %v297
    %v313 = vadd.f32 %v312, %v298
    %v314 = vadd.f32 %v313, %v299
    %v315 = vadd.f32 %v314, %v300
    %v316 = vrot.slane %v315, 4
    %v317 = vadd.f32 %v315, %v316
    %v318 = vrot.slane %v317, 2
    %v319 = vadd.f32 %v317, %v318
    %v320 = vrot.slane %v319, 1
    %v321 = vadd.f32 %v319, %v320
    %v322 = vmul.f32 %v321, %v267
    %v323 = vadd.f32 %v322, 1e-05
    %v324 = vrsqrt.pop %v323
    %v325 = vmul.f32 %v324, %v323
    %v326 = vmul.f32 %v325, %v324
    %v327 = vmul.f32 0.5, %v326
    %v328 = vsub.f32 1.5, %v327
    %v329 = vmul.f32 %v324, %v328
    %vm330 = vweird.f32 %v323
    %vm331 = vweird.f32 %v324
    %vm332 = vmor %vm330, %vm331
    %v333 = vsel %vm332, %v324, %v329
    %v334 = vmul.f32 %v269, %v333
    %v335 = vmul.f32 %v270, %v333
    %v336 = vmul.f32 %v271, %v333
    %v337 = vmul.f32 %v272, %v333
    %v338 = vmul.f32 %v273, %v333
    %v339 = vmul.f32 %v274, %v333
    %v340 = vmul.f32 %v275, %v333
    %v341 = vmul.f32 %v276, %v333
    %v342 = vmul.f32 %v277, %v333
    %v343 = vmul.f32 %v278, %v333
    %v344 = vmul.f32 %v279, %v333
    %v345 = vmul.f32 %v280, %v333
    %v346 = vmul.f32 %v281, %v333
    %v347 = vmul.f32 %v282, %v333
    %v348 = vmul.f32 %v283, %v333
    %v349 = vmul.f32 %v284, %v333
    %v350 = vld [vmem:[%s2] sm:$0x1]
    %v352 = vperm.slane %v350, 0
    %v354 = vmul.f32 %v334, %v352
    %v355 = vmul.f32 %v335, %v352
    %v356 = vmul.f32 %v336, %v352
    %v357 = vmul.f32 %v337, %v352
    %v358 = vmul.f32 %v338, %v352
    %v359 = vmul.f32 %v339, %v352
    %v360 = vmul.f32 %v340, %v352
    %v361 = vmul.f32 %v341, %v352
    %v362 = vmul.f32 %v342, %v352
    %v363 = vmul.f32 %v343, %v352
    %v364 = vmul.f32 %v344, %v352
    %v365 = vmul.f32 %v345, %v352
    %v366 = vmul.f32 %v346, %v352
    %v367 = vmul.f32 %v347, %v352
    %v368 = vmul.f32 %v348, %v352
    %v369 = vmul.f32 %v349, %v352
    %v370 = vld [vmem:[%s3] sm:$0x1]
    %v372 = vperm.slane %v370, 0
    %v374 = vadd.f32 %v354, %v372
    %v375 = vadd.f32 %v355, %v372
    %v376 = vadd.f32 %v356, %v372
    %v377 = vadd.f32 %v357, %v372
    %v378 = vadd.f32 %v358, %v372
    %v379 = vadd.f32 %v359, %v372
    %v380 = vadd.f32 %v360, %v372
    %v381 = vadd.f32 %v361, %v372
    %v382 = vadd.f32 %v362, %v372
    %v383 = vadd.f32 %v363, %v372
    %v384 = vadd.f32 %v364, %v372
    %v385 = vadd.f32 %v365, %v372
    %v386 = vadd.f32 %v366, %v372
    %v387 = vadd.f32 %v367, %v372
    %v388 = vadd.f32 %v368, %v372
    %v389 = vadd.f32 %v369, %v372
    %v390 = vmax.f32 %v374, 0.0
    %v391 = vmax.f32 %v375, 0.0
    %v392 = vmax.f32 %v376, 0.0
    %v393 = vmax.f32 %v377, 0.0
    %v394 = vmax.f32 %v378, 0.0
    %v395 = vmax.f32 %v379, 0.0
    %v396 = vmax.f32 %v380, 0.0
    %v397 = vmax.f32 %v381, 0.0
    %v398 = vmax.f32 %v382, 0.0
    %v399 = vmax.f32 %v383, 0.0
    %v400 = vmax.f32 %v384, 0.0
    %v401 = vmax.f32 %v385, 0.0
    %v402 = vmax.f32 %v386, 0.0
    %v403 = vmax.f32 %v387, 0.0
    %v404 = vmax.f32 %v388, 0.0
    %v405 = vmax.f32 %v389, 0.0
    %v406 = vpack.c.bf16 %v391, %v390
    %v407 = vpack.c.bf16 %v393, %v392
    %v408 = vpack.c.bf16 %v395, %v394
    %v409 = vpack.c.bf16 %v397, %v396
    %v410 = vpack.c.bf16 %v399, %v398
    %v411 = vpack.c.bf16 %v401, %v400
    %v412 = vpack.c.bf16 %v403, %v402
    %v413 = vpack.c.bf16 %v405, %v404
    %v414 = vld [vmem:[%s4] sm:$0xf]
    %v415 = vld [vmem:[%s4 + $0x4] sm:$0xf]
    %v416 = vld [vmem:[%s4 + $0x8] sm:$0xf]
    %v417 = vld [vmem:[%s4 + $0xc] sm:$0xf]
    %v422 = vunpack.c.l.b16 %v414
    %v423 = vunpack.c.l.b16 %v415
    %v424 = vunpack.c.l.b16 %v416
    %v425 = vunpack.c.l.b16 %v417
    %v426 = vpack.c.b16 %v423, %v422
    %v427 = vpack.c.b16 %v425, %v424
    %430 = vmatpush.bf16.msra.mxu0 %v413
    %431 = vmatpush.bf16.msra.mxu0 %v412
    %432 = vmatpush.bf16.msra.mxu0 %v411
    %433 = vmatpush.bf16.msra.mxu0 %v410
    %434 = vmatpush.bf16.msra.mxu0 %v409
    %435 = vmatpush.bf16.msra.mxu0 %v408
    %436 = vmatpush.bf16.msra.mxu0 %v407
    %437 = vmatpush.bf16.msra.mxu0 %v406
    %438 = vmatmul.bf16.gmra.mxu0 %v426
    %v439 = vpop.f32.mrf.mxu0
    %v440 = vadd.f32 0.0, %v439
    %v441 = vpop.f32.mrf.mxu0
    %v442 = vadd.f32 0.0, %v441
    %443 = vmatmul.bf16.gmra.mxu0 %v427
    %v444 = vpop.f32.mrf.mxu0
    %v445 = vadd.f32 0.0, %v444
    %v446 = vpop.f32.mrf.mxu0
    %v447 = vadd.f32 0.0, %v446
    %448 = vdwg.mxu0
    %s449 = scalar_lea.vmem %s4, 16
    %v450 = vld [vmem:[%s449] sm:$0xf]
    %v451 = vld [vmem:[%s449 + $0x4] sm:$0xf]
    %v452 = vld [vmem:[%s449 + $0x8] sm:$0xf]
    %v453 = vld [vmem:[%s449 + $0xc] sm:$0xf]
    %v458 = vunpack.c.l.b16 %v450
    %v459 = vunpack.c.l.b16 %v451
    %v460 = vunpack.c.l.b16 %v452
    %v461 = vunpack.c.l.b16 %v453
    %v462 = vpack.c.b16 %v459, %v458
    %v463 = vpack.c.b16 %v461, %v460
    %466 = vmatpush.bf16.msra.mxu0 %v413
    %467 = vmatpush.bf16.msra.mxu0 %v412
    %468 = vmatpush.bf16.msra.mxu0 %v411
    %469 = vmatpush.bf16.msra.mxu0 %v410
    %470 = vmatpush.bf16.msra.mxu0 %v409
    %471 = vmatpush.bf16.msra.mxu0 %v408
    %472 = vmatpush.bf16.msra.mxu0 %v407
    %473 = vmatpush.bf16.msra.mxu0 %v406
    %474 = vmatmul.bf16.gmra.mxu0 %v462
    %v475 = vpop.f32.mrf.mxu0
    %v476 = vadd.f32 0.0, %v475
    %v477 = vpop.f32.mrf.mxu0
    %v478 = vadd.f32 0.0, %v477
    %479 = vmatmul.bf16.gmra.mxu0 %v463
    %v480 = vpop.f32.mrf.mxu0
    %v481 = vadd.f32 0.0, %v480
    %v482 = vpop.f32.mrf.mxu0
    %v483 = vadd.f32 0.0, %v482
    %484 = vdwg.mxu0
    %s485 = scalar_lea.vmem %s4, 32
    %v486 = vld [vmem:[%s485] sm:$0xf]
    %v487 = vld [vmem:[%s485 + $0x4] sm:$0xf]
    %v488 = vld [vmem:[%s485 + $0x8] sm:$0xf]
    %v489 = vld [vmem:[%s485 + $0xc] sm:$0xf]
    %v494 = vunpack.c.l.b16 %v486
    %v495 = vunpack.c.l.b16 %v487
    %v496 = vunpack.c.l.b16 %v488
    %v497 = vunpack.c.l.b16 %v489
    %v498 = vpack.c.b16 %v495, %v494
    %v499 = vpack.c.b16 %v497, %v496
    %502 = vmatpush.bf16.msra.mxu0 %v413
    %503 = vmatpush.bf16.msra.mxu0 %v412
    %504 = vmatpush.bf16.msra.mxu0 %v411
    %505 = vmatpush.bf16.msra.mxu0 %v410
    %506 = vmatpush.bf16.msra.mxu0 %v409
    %507 = vmatpush.bf16.msra.mxu0 %v408
    %508 = vmatpush.bf16.msra.mxu0 %v407
    %509 = vmatpush.bf16.msra.mxu0 %v406
    %510 = vmatmul.bf16.gmra.mxu0 %v498
    %v511 = vpop.f32.mrf.mxu0
    %v512 = vadd.f32 0.0, %v511
    %v513 = vpop.f32.mrf.mxu0
    %v514 = vadd.f32 0.0, %v513
    %515 = vmatmul.bf16.gmra.mxu0 %v499
    %v516 = vpop.f32.mrf.mxu0
    %v517 = vadd.f32 0.0, %v516
    %v518 = vpop.f32.mrf.mxu0
    %v519 = vadd.f32 0.0, %v518
    %520 = vdwg.mxu0
    %s521 = scalar_lea.vmem %s4, 48
    %v522 = vld [vmem:[%s521] sm:$0xf]
    %v523 = vld [vmem:[%s521 + $0x4] sm:$0xf]
    %v524 = vld [vmem:[%s521 + $0x8] sm:$0xf]
    %v525 = vld [vmem:[%s521 + $0xc] sm:$0xf]
    %v530 = vunpack.c.l.b16 %v522
    %v531 = vunpack.c.l.b16 %v523
    %v532 = vunpack.c.l.b16 %v524
    %v533 = vunpack.c.l.b16 %v525
    %v534 = vpack.c.b16 %v531, %v530
    %v535 = vpack.c.b16 %v533, %v532
    %538 = vmatpush.bf16.msra.mxu0 %v413
    %539 = vmatpush.bf16.msra.mxu0 %v412
    %540 = vmatpush.bf16.msra.mxu0 %v411
    %541 = vmatpush.bf16.msra.mxu0 %v410
    %542 = vmatpush.bf16.msra.mxu0 %v409
    %543 = vmatpush.bf16.msra.mxu0 %v408
    %544 = vmatpush.bf16.msra.mxu0 %v407
    %545 = vmatpush.bf16.msra.mxu0 %v406
    %546 = vmatmul.bf16.gmra.mxu0 %v534
    %v547 = vpop.f32.mrf.mxu0
    %v548 = vadd.f32 0.0, %v547
    %v549 = vpop.f32.mrf.mxu0
    %v550 = vadd.f32 0.0, %v549
    %551 = vmatmul.bf16.gmra.mxu0 %v535
    %v552 = vpop.f32.mrf.mxu0
    %v553 = vadd.f32 0.0, %v552
    %v554 = vpop.f32.mrf.mxu0
    %v555 = vadd.f32 0.0, %v554
    %556 = vdwg.mxu0
    %s557 = scalar_lea.vmem %s4, 64
    %v558 = vld [vmem:[%s557] sm:$0xf]
    %v559 = vld [vmem:[%s557 + $0x4] sm:$0xf]
    %v560 = vld [vmem:[%s557 + $0x8] sm:$0xf]
    %v561 = vld [vmem:[%s557 + $0xc] sm:$0xf]
    %v566 = vunpack.c.l.b16 %v558
    %v567 = vunpack.c.l.b16 %v559
    %v568 = vunpack.c.l.b16 %v560
    %v569 = vunpack.c.l.b16 %v561
    %v570 = vpack.c.b16 %v567, %v566
    %v571 = vpack.c.b16 %v569, %v568
    %574 = vmatpush.bf16.msra.mxu0 %v413
    %575 = vmatpush.bf16.msra.mxu0 %v412
    %576 = vmatpush.bf16.msra.mxu0 %v411
    %577 = vmatpush.bf16.msra.mxu0 %v410
    %578 = vmatpush.bf16.msra.mxu0 %v409
    %579 = vmatpush.bf16.msra.mxu0 %v408
    %580 = vmatpush.bf16.msra.mxu0 %v407
    %581 = vmatpush.bf16.msra.mxu0 %v406
    %582 = vmatmul.bf16.gmra.mxu0 %v570
    %v583 = vpop.f32.mrf.mxu0
    %v584 = vadd.f32 0.0, %v583
    %v585 = vpop.f32.mrf.mxu0
    %v586 = vadd.f32 0.0, %v585
    %587 = vmatmul.bf16.gmra.mxu0 %v571
    %v588 = vpop.f32.mrf.mxu0
    %v589 = vadd.f32 0.0, %v588
    %v590 = vpop.f32.mrf.mxu0
    %v591 = vadd.f32 0.0, %v590
    %592 = vdwg.mxu0
    %s593 = scalar_lea.vmem %s4, 80
    %v594 = vld [vmem:[%s593] sm:$0xf]
    %v595 = vld [vmem:[%s593 + $0x4] sm:$0xf]
    %v596 = vld [vmem:[%s593 + $0x8] sm:$0xf]
    %v597 = vld [vmem:[%s593 + $0xc] sm:$0xf]
    %v602 = vunpack.c.l.b16 %v594
    %v603 = vunpack.c.l.b16 %v595
    %v604 = vunpack.c.l.b16 %v596
    %v605 = vunpack.c.l.b16 %v597
    %v606 = vpack.c.b16 %v603, %v602
    %v607 = vpack.c.b16 %v605, %v604
    %610 = vmatpush.bf16.msra.mxu0 %v413
    %611 = vmatpush.bf16.msra.mxu0 %v412
    %612 = vmatpush.bf16.msra.mxu0 %v411
    %613 = vmatpush.bf16.msra.mxu0 %v410
    %614 = vmatpush.bf16.msra.mxu0 %v409
    %615 = vmatpush.bf16.msra.mxu0 %v408
    %616 = vmatpush.bf16.msra.mxu0 %v407
    %617 = vmatpush.bf16.msra.mxu0 %v406
    %618 = vmatmul.bf16.gmra.mxu0 %v606
    %v619 = vpop.f32.mrf.mxu0
    %v620 = vadd.f32 0.0, %v619
    %v621 = vpop.f32.mrf.mxu0
    %v622 = vadd.f32 0.0, %v621
    %623 = vmatmul.bf16.gmra.mxu0 %v607
    %v624 = vpop.f32.mrf.mxu0
    %v625 = vadd.f32 0.0, %v624
    %v626 = vpop.f32.mrf.mxu0
    %v627 = vadd.f32 0.0, %v626
    %628 = vdwg.mxu0
    %s629 = scalar_lea.vmem %s4, 96
    %v630 = vld [vmem:[%s629] sm:$0xf]
    %v631 = vld [vmem:[%s629 + $0x4] sm:$0xf]
    %v632 = vld [vmem:[%s629 + $0x8] sm:$0xf]
    %v633 = vld [vmem:[%s629 + $0xc] sm:$0xf]
    %v638 = vunpack.c.l.b16 %v630
    %v639 = vunpack.c.l.b16 %v631
    %v640 = vunpack.c.l.b16 %v632
    %v641 = vunpack.c.l.b16 %v633
    %v642 = vpack.c.b16 %v639, %v638
    %v643 = vpack.c.b16 %v641, %v640
    %646 = vmatpush.bf16.msra.mxu0 %v413
    %647 = vmatpush.bf16.msra.mxu0 %v412
    %648 = vmatpush.bf16.msra.mxu0 %v411
    %649 = vmatpush.bf16.msra.mxu0 %v410
    %650 = vmatpush.bf16.msra.mxu0 %v409
    %651 = vmatpush.bf16.msra.mxu0 %v408
    %652 = vmatpush.bf16.msra.mxu0 %v407
    %653 = vmatpush.bf16.msra.mxu0 %v406
    %654 = vmatmul.bf16.gmra.mxu0 %v642
    %v655 = vpop.f32.mrf.mxu0
    %v656 = vadd.f32 0.0, %v655
    %v657 = vpop.f32.mrf.mxu0
    %v658 = vadd.f32 0.0, %v657
    %659 = vmatmul.bf16.gmra.mxu0 %v643
    %v660 = vpop.f32.mrf.mxu0
    %v661 = vadd.f32 0.0, %v660
    %v662 = vpop.f32.mrf.mxu0
    %v663 = vadd.f32 0.0, %v662
    %664 = vdwg.mxu0
    %s665 = scalar_lea.vmem %s4, 112
    %v666 = vld [vmem:[%s665] sm:$0xf]
    %v667 = vld [vmem:[%s665 + $0x4] sm:$0xf]
    %v668 = vld [vmem:[%s665 + $0x8] sm:$0xf]
    %v669 = vld [vmem:[%s665 + $0xc] sm:$0xf]
    %v674 = vunpack.c.l.b16 %v666
    %v675 = vunpack.c.l.b16 %v667
    %v676 = vunpack.c.l.b16 %v668
    %v677 = vunpack.c.l.b16 %v669
    %v678 = vpack.c.b16 %v675, %v674
    %v679 = vpack.c.b16 %v677, %v676
    %682 = vmatpush.bf16.msra.mxu0 %v413
    %683 = vmatpush.bf16.msra.mxu0 %v412
    %684 = vmatpush.bf16.msra.mxu0 %v411
    %685 = vmatpush.bf16.msra.mxu0 %v410
    %686 = vmatpush.bf16.msra.mxu0 %v409
    %687 = vmatpush.bf16.msra.mxu0 %v408
    %688 = vmatpush.bf16.msra.mxu0 %v407
    %689 = vmatpush.bf16.msra.mxu0 %v406
    %690 = vmatmul.bf16.gmra.mxu0 %v678
    %v691 = vpop.f32.mrf.mxu0
    %v692 = vadd.f32 0.0, %v691
    %v693 = vpop.f32.mrf.mxu0
    %v694 = vadd.f32 0.0, %v693
    %695 = vmatmul.bf16.gmra.mxu0 %v679
    %v696 = vpop.f32.mrf.mxu0
    %v697 = vadd.f32 0.0, %v696
    %v698 = vpop.f32.mrf.mxu0
    %v699 = vadd.f32 0.0, %v698
    %700 = vdwg.mxu0
    %s701 = scalar_lea.vmem %s4, 128
    %v702 = vld [vmem:[%s701] sm:$0xf]
    %v703 = vld [vmem:[%s701 + $0x4] sm:$0xf]
    %v704 = vld [vmem:[%s701 + $0x8] sm:$0xf]
    %v705 = vld [vmem:[%s701 + $0xc] sm:$0xf]
    %v710 = vunpack.c.l.b16 %v702
    %v711 = vunpack.c.l.b16 %v703
    %v712 = vunpack.c.l.b16 %v704
    %v713 = vunpack.c.l.b16 %v705
    %v714 = vpack.c.b16 %v711, %v710
    %v715 = vpack.c.b16 %v713, %v712
    %718 = vmatpush.bf16.msra.mxu0 %v413
    %719 = vmatpush.bf16.msra.mxu0 %v412
    %720 = vmatpush.bf16.msra.mxu0 %v411
    %721 = vmatpush.bf16.msra.mxu0 %v410
    %722 = vmatpush.bf16.msra.mxu0 %v409
    %723 = vmatpush.bf16.msra.mxu0 %v408
    %724 = vmatpush.bf16.msra.mxu0 %v407
    %725 = vmatpush.bf16.msra.mxu0 %v406
    %726 = vmatmul.bf16.gmra.mxu0 %v714
    %v727 = vpop.f32.mrf.mxu0
    %v728 = vadd.f32 0.0, %v727
    %v729 = vpop.f32.mrf.mxu0
    %v730 = vadd.f32 0.0, %v729
    %731 = vmatmul.bf16.gmra.mxu0 %v715
    %v732 = vpop.f32.mrf.mxu0
    %v733 = vadd.f32 0.0, %v732
    %v734 = vpop.f32.mrf.mxu0
    %v735 = vadd.f32 0.0, %v734
    %736 = vdwg.mxu0
    %s737 = scalar_lea.vmem %s4, 144
    %v738 = vld [vmem:[%s737] sm:$0xf]
    %v739 = vld [vmem:[%s737 + $0x4] sm:$0xf]
    %v740 = vld [vmem:[%s737 + $0x8] sm:$0xf]
    %v741 = vld [vmem:[%s737 + $0xc] sm:$0xf]
    %v746 = vunpack.c.l.b16 %v738
    %v747 = vunpack.c.l.b16 %v739
    %v748 = vunpack.c.l.b16 %v740
    %v749 = vunpack.c.l.b16 %v741
    %v750 = vpack.c.b16 %v747, %v746
    %v751 = vpack.c.b16 %v749, %v748
    %754 = vmatpush.bf16.msra.mxu0 %v413
    %755 = vmatpush.bf16.msra.mxu0 %v412
    %756 = vmatpush.bf16.msra.mxu0 %v411
    %757 = vmatpush.bf16.msra.mxu0 %v410
    %758 = vmatpush.bf16.msra.mxu0 %v409
    %759 = vmatpush.bf16.msra.mxu0 %v408
    %760 = vmatpush.bf16.msra.mxu0 %v407
    %761 = vmatpush.bf16.msra.mxu0 %v406
    %762 = vmatmul.bf16.gmra.mxu0 %v750
    %v763 = vpop.f32.mrf.mxu0
    %v764 = vadd.f32 0.0, %v763
    %v765 = vpop.f32.mrf.mxu0
    %v766 = vadd.f32 0.0, %v765
    %767 = vmatmul.bf16.gmra.mxu0 %v751
    %v768 = vpop.f32.mrf.mxu0
    %v769 = vadd.f32 0.0, %v768
    %v770 = vpop.f32.mrf.mxu0
    %v771 = vadd.f32 0.0, %v770
    %772 = vdwg.mxu0
    %s773 = scalar_lea.vmem %s4, 160
    %v774 = vld [vmem:[%s773] sm:$0xf]
    %v775 = vld [vmem:[%s773 + $0x4] sm:$0xf]
    %v776 = vld [vmem:[%s773 + $0x8] sm:$0xf]
    %v777 = vld [vmem:[%s773 + $0xc] sm:$0xf]
    %v782 = vunpack.c.l.b16 %v774
    %v783 = vunpack.c.l.b16 %v775
    %v784 = vunpack.c.l.b16 %v776
    %v785 = vunpack.c.l.b16 %v777
    %v786 = vpack.c.b16 %v783, %v782
    %v787 = vpack.c.b16 %v785, %v784
    %790 = vmatpush.bf16.msra.mxu0 %v413
    %791 = vmatpush.bf16.msra.mxu0 %v412
    %792 = vmatpush.bf16.msra.mxu0 %v411
    %793 = vmatpush.bf16.msra.mxu0 %v410
    %794 = vmatpush.bf16.msra.mxu0 %v409
    %795 = vmatpush.bf16.msra.mxu0 %v408
    %796 = vmatpush.bf16.msra.mxu0 %v407
    %797 = vmatpush.bf16.msra.mxu0 %v406
    %798 = vmatmul.bf16.gmra.mxu0 %v786
    %v799 = vpop.f32.mrf.mxu0
    %v800 = vadd.f32 0.0, %v799
    %v801 = vpop.f32.mrf.mxu0
    %v802 = vadd.f32 0.0, %v801
    %803 = vmatmul.bf16.gmra.mxu0 %v787
    %v804 = vpop.f32.mrf.mxu0
    %v805 = vadd.f32 0.0, %v804
    %v806 = vpop.f32.mrf.mxu0
    %v807 = vadd.f32 0.0, %v806
    %808 = vdwg.mxu0
    %s809 = scalar_lea.vmem %s4, 176
    %v810 = vld [vmem:[%s809] sm:$0xf]
    %v811 = vld [vmem:[%s809 + $0x4] sm:$0xf]
    %v812 = vld [vmem:[%s809 + $0x8] sm:$0xf]
    %v813 = vld [vmem:[%s809 + $0xc] sm:$0xf]
    %v818 = vunpack.c.l.b16 %v810
    %v819 = vunpack.c.l.b16 %v811
    %v820 = vunpack.c.l.b16 %v812
    %v821 = vunpack.c.l.b16 %v813
    %v822 = vpack.c.b16 %v819, %v818
    %v823 = vpack.c.b16 %v821, %v820
    %826 = vmatpush.bf16.msra.mxu0 %v413
    %827 = vmatpush.bf16.msra.mxu0 %v412
    %828 = vmatpush.bf16.msra.mxu0 %v411
    %829 = vmatpush.bf16.msra.mxu0 %v410
    %830 = vmatpush.bf16.msra.mxu0 %v409
    %831 = vmatpush.bf16.msra.mxu0 %v408
    %832 = vmatpush.bf16.msra.mxu0 %v407
    %833 = vmatpush.bf16.msra.mxu0 %v406
    %834 = vmatmul.bf16.gmra.mxu0 %v822
    %v835 = vpop.f32.mrf.mxu0
    %v836 = vadd.f32 0.0, %v835
    %v837 = vpop.f32.mrf.mxu0
    %v838 = vadd.f32 0.0, %v837
    %839 = vmatmul.bf16.gmra.mxu0 %v823
    %v840 = vpop.f32.mrf.mxu0
    %v841 = vadd.f32 0.0, %v840
    %v842 = vpop.f32.mrf.mxu0
    %v843 = vadd.f32 0.0, %v842
    %844 = vdwg.mxu0
    %s845 = scalar_lea.vmem %s4, 192
    %v846 = vld [vmem:[%s845] sm:$0xf]
    %v847 = vld [vmem:[%s845 + $0x4] sm:$0xf]
    %v848 = vld [vmem:[%s845 + $0x8] sm:$0xf]
    %v849 = vld [vmem:[%s845 + $0xc] sm:$0xf]
    %v854 = vunpack.c.l.b16 %v846
    %v855 = vunpack.c.l.b16 %v847
    %v856 = vunpack.c.l.b16 %v848
    %v857 = vunpack.c.l.b16 %v849
    %v858 = vpack.c.b16 %v855, %v854
    %v859 = vpack.c.b16 %v857, %v856
    %862 = vmatpush.bf16.msra.mxu0 %v413
    %863 = vmatpush.bf16.msra.mxu0 %v412
    %864 = vmatpush.bf16.msra.mxu0 %v411
    %865 = vmatpush.bf16.msra.mxu0 %v410
    %866 = vmatpush.bf16.msra.mxu0 %v409
    %867 = vmatpush.bf16.msra.mxu0 %v408
    %868 = vmatpush.bf16.msra.mxu0 %v407
    %869 = vmatpush.bf16.msra.mxu0 %v406
    %870 = vmatmul.bf16.gmra.mxu0 %v858
    %v871 = vpop.f32.mrf.mxu0
    %v872 = vadd.f32 0.0, %v871
    %v873 = vpop.f32.mrf.mxu0
    %v874 = vadd.f32 0.0, %v873
    %875 = vmatmul.bf16.gmra.mxu0 %v859
    %v876 = vpop.f32.mrf.mxu0
    %v877 = vadd.f32 0.0, %v876
    %v878 = vpop.f32.mrf.mxu0
    %v879 = vadd.f32 0.0, %v878
    %880 = vdwg.mxu0
    %s881 = scalar_lea.vmem %s4, 208
    %v882 = vld [vmem:[%s881] sm:$0xf]
    %v883 = vld [vmem:[%s881 + $0x4] sm:$0xf]
    %v884 = vld [vmem:[%s881 + $0x8] sm:$0xf]
    %v885 = vld [vmem:[%s881 + $0xc] sm:$0xf]
    %v890 = vunpack.c.l.b16 %v882
    %v891 = vunpack.c.l.b16 %v883
    %v892 = vunpack.c.l.b16 %v884
    %v893 = vunpack.c.l.b16 %v885
    %v894 = vpack.c.b16 %v891, %v890
    %v895 = vpack.c.b16 %v893, %v892
    %898 = vmatpush.bf16.msra.mxu0 %v413
    %899 = vmatpush.bf16.msra.mxu0 %v412
    %900 = vmatpush.bf16.msra.mxu0 %v411
    %901 = vmatpush.bf16.msra.mxu0 %v410
    %902 = vmatpush.bf16.msra.mxu0 %v409
    %903 = vmatpush.bf16.msra.mxu0 %v408
    %904 = vmatpush.bf16.msra.mxu0 %v407
    %905 = vmatpush.bf16.msra.mxu0 %v406
    %906 = vmatmul.bf16.gmra.mxu0 %v894
    %v907 = vpop.f32.mrf.mxu0
    %v908 = vadd.f32 0.0, %v907
    %v909 = vpop.f32.mrf.mxu0
    %v910 = vadd.f32 0.0, %v909
    %911 = vmatmul.bf16.gmra.mxu0 %v895
    %v912 = vpop.f32.mrf.mxu0
    %v913 = vadd.f32 0.0, %v912
    %v914 = vpop.f32.mrf.mxu0
    %v915 = vadd.f32 0.0, %v914
    %916 = vdwg.mxu0
    %s917 = scalar_lea.vmem %s4, 224
    %v918 = vld [vmem:[%s917] sm:$0xf]
    %v919 = vld [vmem:[%s917 + $0x4] sm:$0xf]
    %v920 = vld [vmem:[%s917 + $0x8] sm:$0xf]
    %v921 = vld [vmem:[%s917 + $0xc] sm:$0xf]
    %v926 = vunpack.c.l.b16 %v918
    %v927 = vunpack.c.l.b16 %v919
    %v928 = vunpack.c.l.b16 %v920
    %v929 = vunpack.c.l.b16 %v921
    %v930 = vpack.c.b16 %v927, %v926
    %v931 = vpack.c.b16 %v929, %v928
    %934 = vmatpush.bf16.msra.mxu0 %v413
    %935 = vmatpush.bf16.msra.mxu0 %v412
    %936 = vmatpush.bf16.msra.mxu0 %v411
    %937 = vmatpush.bf16.msra.mxu0 %v410
    %938 = vmatpush.bf16.msra.mxu0 %v409
    %939 = vmatpush.bf16.msra.mxu0 %v408
    %940 = vmatpush.bf16.msra.mxu0 %v407
    %941 = vmatpush.bf16.msra.mxu0 %v406
    %942 = vmatmul.bf16.gmra.mxu0 %v930
    %v943 = vpop.f32.mrf.mxu0
    %v944 = vadd.f32 0.0, %v943
    %v945 = vpop.f32.mrf.mxu0
    %v946 = vadd.f32 0.0, %v945
    %947 = vmatmul.bf16.gmra.mxu0 %v931
    %v948 = vpop.f32.mrf.mxu0
    %v949 = vadd.f32 0.0, %v948
    %v950 = vpop.f32.mrf.mxu0
    %v951 = vadd.f32 0.0, %v950
    %952 = vdwg.mxu0
    %s953 = scalar_lea.vmem %s4, 240
    %v954 = vld [vmem:[%s953] sm:$0xf]
    %v955 = vld [vmem:[%s953 + $0x4] sm:$0xf]
    %v956 = vld [vmem:[%s953 + $0x8] sm:$0xf]
    %v957 = vld [vmem:[%s953 + $0xc] sm:$0xf]
    %v962 = vunpack.c.l.b16 %v954
    %v963 = vunpack.c.l.b16 %v955
    %v964 = vunpack.c.l.b16 %v956
    %v965 = vunpack.c.l.b16 %v957
    %v966 = vpack.c.b16 %v963, %v962
    %v967 = vpack.c.b16 %v965, %v964
    %970 = vmatpush.bf16.msra.mxu0 %v413
    %971 = vmatpush.bf16.msra.mxu0 %v412
    %972 = vmatpush.bf16.msra.mxu0 %v411
    %973 = vmatpush.bf16.msra.mxu0 %v410
    %974 = vmatpush.bf16.msra.mxu0 %v409
    %975 = vmatpush.bf16.msra.mxu0 %v408
    %976 = vmatpush.bf16.msra.mxu0 %v407
    %977 = vmatpush.bf16.msra.mxu0 %v406
    %978 = vmatmul.bf16.gmra.mxu0 %v966
    %v979 = vpop.f32.mrf.mxu0
    %v980 = vadd.f32 0.0, %v979
    %v981 = vpop.f32.mrf.mxu0
    %v982 = vadd.f32 0.0, %v981
    %983 = vmatmul.bf16.gmra.mxu0 %v967
    %v984 = vpop.f32.mrf.mxu0
    %v985 = vadd.f32 0.0, %v984
    %v986 = vpop.f32.mrf.mxu0
    %v987 = vadd.f32 0.0, %v986
    %988 = vdwg.mxu0
    %v989 = vpack.c.bf16 %v442, %v440
    %v990 = vpack.c.bf16 %v478, %v476
    %v991 = vpack.c.bf16 %v514, %v512
    %v992 = vpack.c.bf16 %v550, %v548
    %v993 = vpack.c.bf16 %v586, %v584
    %v994 = vpack.c.bf16 %v622, %v620
    %v995 = vpack.c.bf16 %v658, %v656
    %v996 = vpack.c.bf16 %v694, %v692
    %v997 = vpack.c.bf16 %v730, %v728
    %v998 = vpack.c.bf16 %v766, %v764
    %v999 = vpack.c.bf16 %v802, %v800
    %v1000 = vpack.c.bf16 %v838, %v836
    %v1001 = vpack.c.bf16 %v874, %v872
    %v1002 = vpack.c.bf16 %v910, %v908
    %v1003 = vpack.c.bf16 %v946, %v944
    %v1004 = vpack.c.bf16 %v982, %v980
    %v1005 = vpack.c.bf16 %v447, %v445
    %v1006 = vpack.c.bf16 %v483, %v481
    %v1007 = vpack.c.bf16 %v519, %v517
    %v1008 = vpack.c.bf16 %v555, %v553
    %v1009 = vpack.c.bf16 %v591, %v589
    %v1010 = vpack.c.bf16 %v627, %v625
    %v1011 = vpack.c.bf16 %v663, %v661
    %v1012 = vpack.c.bf16 %v699, %v697
    %v1013 = vpack.c.bf16 %v735, %v733
    %v1014 = vpack.c.bf16 %v771, %v769
    %v1015 = vpack.c.bf16 %v807, %v805
    %v1016 = vpack.c.bf16 %v843, %v841
    %v1017 = vpack.c.bf16 %v879, %v877
    %v1018 = vpack.c.bf16 %v915, %v913
    %v1019 = vpack.c.bf16 %v951, %v949
    %v1020 = vpack.c.bf16 %v987, %v985
    %v1021 = vld [vmem:[#allocation2] sm:$0xf]
    %v1022 = vld [vmem:[#allocation2 + $0x4] sm:$0xf]
    %v1023 = vld [vmem:[#allocation2 + $0x8] sm:$0xf]
    %v1024 = vld [vmem:[#allocation2 + $0xc] sm:$0xf]
    %v1025 = vld [vmem:[#allocation2 + $0x10] sm:$0xf]
    %v1026 = vld [vmem:[#allocation2 + $0x14] sm:$0xf]
    %v1027 = vld [vmem:[#allocation2 + $0x18] sm:$0xf]
    %v1028 = vld [vmem:[#allocation2 + $0x1c] sm:$0xf]
    %v1029 = vld [vmem:[#allocation2 + $0x20] sm:$0xf]
    %v1030 = vld [vmem:[#allocation2 + $0x24] sm:$0xf]
    %v1031 = vld [vmem:[#allocation2 + $0x28] sm:$0xf]
    %v1032 = vld [vmem:[#allocation2 + $0x2c] sm:$0xf]
    %v1033 = vld [vmem:[#allocation2 + $0x30] sm:$0xf]
    %v1034 = vld [vmem:[#allocation2 + $0x34] sm:$0xf]
    %v1035 = vld [vmem:[#allocation2 + $0x38] sm:$0xf]
    %v1036 = vld [vmem:[#allocation2 + $0x3c] sm:$0xf]
    %v1037 = vld [vmem:[#allocation2 + $0x40] sm:$0xf]
    %v1038 = vld [vmem:[#allocation2 + $0x44] sm:$0xf]
    %v1039 = vld [vmem:[#allocation2 + $0x48] sm:$0xf]
    %v1040 = vld [vmem:[#allocation2 + $0x4c] sm:$0xf]
    %v1041 = vld [vmem:[#allocation2 + $0x50] sm:$0xf]
    %v1042 = vld [vmem:[#allocation2 + $0x54] sm:$0xf]
    %v1043 = vld [vmem:[#allocation2 + $0x58] sm:$0xf]
    %v1044 = vld [vmem:[#allocation2 + $0x5c] sm:$0xf]
    %v1045 = vld [vmem:[#allocation2 + $0x60] sm:$0xf]
    %v1046 = vld [vmem:[#allocation2 + $0x64] sm:$0xf]
    %v1047 = vld [vmem:[#allocation2 + $0x68] sm:$0xf]
    %v1048 = vld [vmem:[#allocation2 + $0x6c] sm:$0xf]
    %v1049 = vld [vmem:[#allocation2 + $0x70] sm:$0xf]
    %v1050 = vld [vmem:[#allocation2 + $0x74] sm:$0xf]
    %v1051 = vld [vmem:[#allocation2 + $0x78] sm:$0xf]
    %v1052 = vld [vmem:[#allocation2 + $0x7c] sm:$0xf]
    %v1053 = vld [vmem:[#allocation2 + $0x80] sm:$0xf]
    %v1054 = vld [vmem:[#allocation2 + $0x84] sm:$0xf]
    %v1055 = vld [vmem:[#allocation2 + $0x88] sm:$0xf]
    %v1056 = vld [vmem:[#allocation2 + $0x8c] sm:$0xf]
    %v1057 = vld [vmem:[#allocation2 + $0x90] sm:$0xf]
    %v1058 = vld [vmem:[#allocation2 + $0x94] sm:$0xf]
    %v1059 = vld [vmem:[#allocation2 + $0x98] sm:$0xf]
    %v1060 = vld [vmem:[#allocation2 + $0x9c] sm:$0xf]
    %v1061 = vld [vmem:[#allocation2 + $0xa0] sm:$0xf]
    %v1062 = vld [vmem:[#allocation2 + $0xa4] sm:$0xf]
    %v1063 = vld [vmem:[#allocation2 + $0xa8] sm:$0xf]
    %v1064 = vld [vmem:[#allocation2 + $0xac] sm:$0xf]
    %v1065 = vld [vmem:[#allocation2 + $0xb0] sm:$0xf]
    %v1066 = vld [vmem:[#allocation2 + $0xb4] sm:$0xf]
    %v1067 = vld [vmem:[#allocation2 + $0xb8] sm:$0xf]
    %v1068 = vld [vmem:[#allocation2 + $0xbc] sm:$0xf]
    %v1069 = vld [vmem:[#allocation2 + $0xc0] sm:$0xf]
    %v1070 = vld [vmem:[#allocation2 + $0xc4] sm:$0xf]
    %v1071 = vld [vmem:[#allocation2 + $0xc8] sm:$0xf]
    %v1072 = vld [vmem:[#allocation2 + $0xcc] sm:$0xf]
    %v1073 = vld [vmem:[#allocation2 + $0xd0] sm:$0xf]
    %v1074 = vld [vmem:[#allocation2 + $0xd4] sm:$0xf]
    %v1075 = vld [vmem:[#allocation2 + $0xd8] sm:$0xf]
    %v1076 = vld [vmem:[#allocation2 + $0xdc] sm:$0xf]
    %v1077 = vld [vmem:[#allocation2 + $0xe0] sm:$0xf]
    %v1078 = vld [vmem:[#allocation2 + $0xe4] sm:$0xf]
    %v1079 = vld [vmem:[#allocation2 + $0xe8] sm:$0xf]
    %v1080 = vld [vmem:[#allocation2 + $0xec] sm:$0xf]
    %v1081 = vld [vmem:[#allocation2 + $0xf0] sm:$0xf]
    %v1082 = vld [vmem:[#allocation2 + $0xf4] sm:$0xf]
    %v1083 = vld [vmem:[#allocation2 + $0xf8] sm:$0xf]
    %v1084 = vld [vmem:[#allocation2 + $0xfc] sm:$0xf]
    %v1085 = vld [vmem:[#allocation2 + $0x100] sm:$0xf]
    %v1086 = vld [vmem:[#allocation2 + $0x104] sm:$0xf]
    %v1087 = vld [vmem:[#allocation2 + $0x108] sm:$0xf]
    %v1088 = vld [vmem:[#allocation2 + $0x10c] sm:$0xf]
    %v1089 = vld [vmem:[#allocation2 + $0x110] sm:$0xf]
    %v1090 = vld [vmem:[#allocation2 + $0x114] sm:$0xf]
    %v1091 = vld [vmem:[#allocation2 + $0x118] sm:$0xf]
    %v1092 = vld [vmem:[#allocation2 + $0x11c] sm:$0xf]
    %v1093 = vld [vmem:[#allocation2 + $0x120] sm:$0xf]
    %v1094 = vld [vmem:[#allocation2 + $0x124] sm:$0xf]
    %v1095 = vld [vmem:[#allocation2 + $0x128] sm:$0xf]
    %v1096 = vld [vmem:[#allocation2 + $0x12c] sm:$0xf]
    %v1097 = vld [vmem:[#allocation2 + $0x130] sm:$0xf]
    %v1098 = vld [vmem:[#allocation2 + $0x134] sm:$0xf]
    %v1099 = vld [vmem:[#allocation2 + $0x138] sm:$0xf]
    %v1100 = vld [vmem:[#allocation2 + $0x13c] sm:$0xf]
    %v1101 = vld [vmem:[#allocation2 + $0x140] sm:$0xf]
    %v1102 = vld [vmem:[#allocation2 + $0x144] sm:$0xf]
    %v1103 = vld [vmem:[#allocation2 + $0x148] sm:$0xf]
    %v1104 = vld [vmem:[#allocation2 + $0x14c] sm:$0xf]
    %v1105 = vld [vmem:[#allocation2 + $0x150] sm:$0xf]
    %v1106 = vld [vmem:[#allocation2 + $0x154] sm:$0xf]
    %v1107 = vld [vmem:[#allocation2 + $0x158] sm:$0xf]
    %v1108 = vld [vmem:[#allocation2 + $0x15c] sm:$0xf]
    %v1109 = vld [vmem:[#allocation2 + $0x160] sm:$0xf]
    %v1110 = vld [vmem:[#allocation2 + $0x164] sm:$0xf]
    %v1111 = vld [vmem:[#allocation2 + $0x168] sm:$0xf]
    %v1112 = vld [vmem:[#allocation2 + $0x16c] sm:$0xf]
    %v1113 = vld [vmem:[#allocation2 + $0x170] sm:$0xf]
    %v1114 = vld [vmem:[#allocation2 + $0x174] sm:$0xf]
    %v1115 = vld [vmem:[#allocation2 + $0x178] sm:$0xf]
    %v1116 = vld [vmem:[#allocation2 + $0x17c] sm:$0xf]
    %v1117 = vld [vmem:[#allocation2 + $0x180] sm:$0xf]
    %v1118 = vld [vmem:[#allocation2 + $0x184] sm:$0xf]
    %v1119 = vld [vmem:[#allocation2 + $0x188] sm:$0xf]
    %v1120 = vld [vmem:[#allocation2 + $0x18c] sm:$0xf]
    %v1121 = vld [vmem:[#allocation2 + $0x190] sm:$0xf]
    %v1122 = vld [vmem:[#allocation2 + $0x194] sm:$0xf]
    %v1123 = vld [vmem:[#allocation2 + $0x198] sm:$0xf]
    %v1124 = vld [vmem:[#allocation2 + $0x19c] sm:$0xf]
    %v1125 = vld [vmem:[#allocation2 + $0x1a0] sm:$0xf]
    %v1126 = vld [vmem:[#allocation2 + $0x1a4] sm:$0xf]
    %v1127 = vld [vmem:[#allocation2 + $0x1a8] sm:$0xf]
    %v1128 = vld [vmem:[#allocation2 + $0x1ac] sm:$0xf]
    %v1129 = vld [vmem:[#allocation2 + $0x1b0] sm:$0xf]
    %v1130 = vld [vmem:[#allocation2 + $0x1b4] sm:$0xf]
    %v1131 = vld [vmem:[#allocation2 + $0x1b8] sm:$0xf]
    %v1132 = vld [vmem:[#allocation2 + $0x1bc] sm:$0xf]
    %v1133 = vld [vmem:[#allocation2 + $0x1c0] sm:$0xf]
    %v1134 = vld [vmem:[#allocation2 + $0x1c4] sm:$0xf]
    %v1135 = vld [vmem:[#allocation2 + $0x1c8] sm:$0xf]
    %v1136 = vld [vmem:[#allocation2 + $0x1cc] sm:$0xf]
    %v1137 = vld [vmem:[#allocation2 + $0x1d0] sm:$0xf]
    %v1138 = vld [vmem:[#allocation2 + $0x1d4] sm:$0xf]
    %v1139 = vld [vmem:[#allocation2 + $0x1d8] sm:$0xf]
    %v1140 = vld [vmem:[#allocation2 + $0x1dc] sm:$0xf]
    %v1141 = vld [vmem:[#allocation2 + $0x1e0] sm:$0xf]
    %v1142 = vld [vmem:[#allocation2 + $0x1e4] sm:$0xf]
    %v1143 = vld [vmem:[#allocation2 + $0x1e8] sm:$0xf]
    %v1144 = vld [vmem:[#allocation2 + $0x1ec] sm:$0xf]
    %v1145 = vld [vmem:[#allocation2 + $0x1f0] sm:$0xf]
    %v1146 = vld [vmem:[#allocation2 + $0x1f4] sm:$0xf]
    %v1147 = vld [vmem:[#allocation2 + $0x1f8] sm:$0xf]
    %v1148 = vld [vmem:[#allocation2 + $0x1fc] sm:$0xf]
    %v1149 = vld [vmem:[#allocation2 + $0x200] sm:$0xf]
    %v1150 = vld [vmem:[#allocation2 + $0x204] sm:$0xf]
    %v1151 = vld [vmem:[#allocation2 + $0x208] sm:$0xf]
    %v1152 = vld [vmem:[#allocation2 + $0x20c] sm:$0xf]
    %v1153 = vld [vmem:[#allocation2 + $0x210] sm:$0xf]
    %v1154 = vld [vmem:[#allocation2 + $0x214] sm:$0xf]
    %v1155 = vld [vmem:[#allocation2 + $0x218] sm:$0xf]
    %v1156 = vld [vmem:[#allocation2 + $0x21c] sm:$0xf]
    %v1157 = vld [vmem:[#allocation2 + $0x220] sm:$0xf]
    %v1158 = vld [vmem:[#allocation2 + $0x224] sm:$0xf]
    %v1159 = vld [vmem:[#allocation2 + $0x228] sm:$0xf]
    %v1160 = vld [vmem:[#allocation2 + $0x22c] sm:$0xf]
    %v1161 = vld [vmem:[#allocation2 + $0x230] sm:$0xf]
    %v1162 = vld [vmem:[#allocation2 + $0x234] sm:$0xf]
    %v1163 = vld [vmem:[#allocation2 + $0x238] sm:$0xf]
    %v1164 = vld [vmem:[#allocation2 + $0x23c] sm:$0xf]
    %v1165 = vld [vmem:[#allocation2 + $0x240] sm:$0xf]
    %v1166 = vld [vmem:[#allocation2 + $0x244] sm:$0xf]
    %v1167 = vld [vmem:[#allocation2 + $0x248] sm:$0xf]
    %v1168 = vld [vmem:[#allocation2 + $0x24c] sm:$0xf]
    %v1169 = vld [vmem:[#allocation2 + $0x250] sm:$0xf]
    %v1170 = vld [vmem:[#allocation2 + $0x254] sm:$0xf]
    %v1171 = vld [vmem:[#allocation2 + $0x258] sm:$0xf]
    %v1172 = vld [vmem:[#allocation2 + $0x25c] sm:$0xf]
    %v1173 = vld [vmem:[#allocation2 + $0x260] sm:$0xf]
    %v1174 = vld [vmem:[#allocation2 + $0x264] sm:$0xf]
    %v1175 = vld [vmem:[#allocation2 + $0x268] sm:$0xf]
    %v1176 = vld [vmem:[#allocation2 + $0x26c] sm:$0xf]
    %v1177 = vld [vmem:[#allocation2 + $0x270] sm:$0xf]
    %v1178 = vld [vmem:[#allocation2 + $0x274] sm:$0xf]
    %v1179 = vld [vmem:[#allocation2 + $0x278] sm:$0xf]
    %v1180 = vld [vmem:[#allocation2 + $0x27c] sm:$0xf]
    %v1181 = vld [vmem:[#allocation2 + $0x280] sm:$0xf]
    %v1182 = vld [vmem:[#allocation2 + $0x284] sm:$0xf]
    %v1183 = vld [vmem:[#allocation2 + $0x288] sm:$0xf]
    %v1184 = vld [vmem:[#allocation2 + $0x28c] sm:$0xf]
    %v1185 = vld [vmem:[#allocation2 + $0x290] sm:$0xf]
    %v1186 = vld [vmem:[#allocation2 + $0x294] sm:$0xf]
    %v1187 = vld [vmem:[#allocation2 + $0x298] sm:$0xf]
    %v1188 = vld [vmem:[#allocation2 + $0x29c] sm:$0xf]
    %v1189 = vld [vmem:[#allocation2 + $0x2a0] sm:$0xf]
    %v1190 = vld [vmem:[#allocation2 + $0x2a4] sm:$0xf]
    %v1191 = vld [vmem:[#allocation2 + $0x2a8] sm:$0xf]
    %v1192 = vld [vmem:[#allocation2 + $0x2ac] sm:$0xf]
    %v1193 = vld [vmem:[#allocation2 + $0x2b0] sm:$0xf]
    %v1194 = vld [vmem:[#allocation2 + $0x2b4] sm:$0xf]
    %v1195 = vld [vmem:[#allocation2 + $0x2b8] sm:$0xf]
    %v1196 = vld [vmem:[#allocation2 + $0x2bc] sm:$0xf]
    %v1197 = vld [vmem:[#allocation2 + $0x2c0] sm:$0xf]
    %v1198 = vld [vmem:[#allocation2 + $0x2c4] sm:$0xf]
    %v1199 = vld [vmem:[#allocation2 + $0x2c8] sm:$0xf]
    %v1200 = vld [vmem:[#allocation2 + $0x2cc] sm:$0xf]
    %v1201 = vld [vmem:[#allocation2 + $0x2d0] sm:$0xf]
    %v1202 = vld [vmem:[#allocation2 + $0x2d4] sm:$0xf]
    %v1203 = vld [vmem:[#allocation2 + $0x2d8] sm:$0xf]
    %v1204 = vld [vmem:[#allocation2 + $0x2dc] sm:$0xf]
    %v1205 = vld [vmem:[#allocation2 + $0x2e0] sm:$0xf]
    %v1206 = vld [vmem:[#allocation2 + $0x2e4] sm:$0xf]
    %v1207 = vld [vmem:[#allocation2 + $0x2e8] sm:$0xf]
    %v1208 = vld [vmem:[#allocation2 + $0x2ec] sm:$0xf]
    %v1209 = vld [vmem:[#allocation2 + $0x2f0] sm:$0xf]
    %v1210 = vld [vmem:[#allocation2 + $0x2f4] sm:$0xf]
    %v1211 = vld [vmem:[#allocation2 + $0x2f8] sm:$0xf]
    %v1212 = vld [vmem:[#allocation2 + $0x2fc] sm:$0xf]
    %v1213 = vld [vmem:[#allocation2 + $0x300] sm:$0xf]
    %v1214 = vld [vmem:[#allocation2 + $0x304] sm:$0xf]
    %v1215 = vld [vmem:[#allocation2 + $0x308] sm:$0xf]
    %v1216 = vld [vmem:[#allocation2 + $0x30c] sm:$0xf]
    %v1217 = vld [vmem:[#allocation2 + $0x310] sm:$0xf]
    %v1218 = vld [vmem:[#allocation2 + $0x314] sm:$0xf]
    %v1219 = vld [vmem:[#allocation2 + $0x318] sm:$0xf]
    %v1220 = vld [vmem:[#allocation2 + $0x31c] sm:$0xf]
    %v1221 = vld [vmem:[#allocation2 + $0x320] sm:$0xf]
    %v1222 = vld [vmem:[#allocation2 + $0x324] sm:$0xf]
    %v1223 = vld [vmem:[#allocation2 + $0x328] sm:$0xf]
    %v1224 = vld [vmem:[#allocation2 + $0x32c] sm:$0xf]
    %v1225 = vld [vmem:[#allocation2 + $0x330] sm:$0xf]
    %v1226 = vld [vmem:[#allocation2 + $0x334] sm:$0xf]
    %v1227 = vld [vmem:[#allocation2 + $0x338] sm:$0xf]
    %v1228 = vld [vmem:[#allocation2 + $0x33c] sm:$0xf]
    %v1229 = vld [vmem:[#allocation2 + $0x340] sm:$0xf]
    %v1230 = vld [vmem:[#allocation2 + $0x344] sm:$0xf]
    %v1231 = vld [vmem:[#allocation2 + $0x348] sm:$0xf]
    %v1232 = vld [vmem:[#allocation2 + $0x34c] sm:$0xf]
    %v1233 = vld [vmem:[#allocation2 + $0x350] sm:$0xf]
    %v1234 = vld [vmem:[#allocation2 + $0x354] sm:$0xf]
    %v1235 = vld [vmem:[#allocation2 + $0x358] sm:$0xf]
    %v1236 = vld [vmem:[#allocation2 + $0x35c] sm:$0xf]
    %v1237 = vld [vmem:[#allocation2 + $0x360] sm:$0xf]
    %v1238 = vld [vmem:[#allocation2 + $0x364] sm:$0xf]
    %v1239 = vld [vmem:[#allocation2 + $0x368] sm:$0xf]
    %v1240 = vld [vmem:[#allocation2 + $0x36c] sm:$0xf]
    %v1241 = vld [vmem:[#allocation2 + $0x370] sm:$0xf]
    %v1242 = vld [vmem:[#allocation2 + $0x374] sm:$0xf]
    %v1243 = vld [vmem:[#allocation2 + $0x378] sm:$0xf]
    %v1244 = vld [vmem:[#allocation2 + $0x37c] sm:$0xf]
    %v1245 = vld [vmem:[#allocation2 + $0x380] sm:$0xf]
    %v1246 = vld [vmem:[#allocation2 + $0x384] sm:$0xf]
    %v1247 = vld [vmem:[#allocation2 + $0x388] sm:$0xf]
    %v1248 = vld [vmem:[#allocation2 + $0x38c] sm:$0xf]
    %v1249 = vld [vmem:[#allocation2 + $0x390] sm:$0xf]
    %v1250 = vld [vmem:[#allocation2 + $0x394] sm:$0xf]
    %v1251 = vld [vmem:[#allocation2 + $0x398] sm:$0xf]
    %v1252 = vld [vmem:[#allocation2 + $0x39c] sm:$0xf]
    %v1253 = vld [vmem:[#allocation2 + $0x3a0] sm:$0xf]
    %v1254 = vld [vmem:[#allocation2 + $0x3a4] sm:$0xf]
    %v1255 = vld [vmem:[#allocation2 + $0x3a8] sm:$0xf]
    %v1256 = vld [vmem:[#allocation2 + $0x3ac] sm:$0xf]
    %v1257 = vld [vmem:[#allocation2 + $0x3b0] sm:$0xf]
    %v1258 = vld [vmem:[#allocation2 + $0x3b4] sm:$0xf]
    %v1259 = vld [vmem:[#allocation2 + $0x3b8] sm:$0xf]
    %v1260 = vld [vmem:[#allocation2 + $0x3bc] sm:$0xf]
    %v1261 = vld [vmem:[#allocation2 + $0x3c0] sm:$0xf]
    %v1262 = vld [vmem:[#allocation2 + $0x3c4] sm:$0xf]
    %v1263 = vld [vmem:[#allocation2 + $0x3c8] sm:$0xf]
    %v1264 = vld [vmem:[#allocation2 + $0x3cc] sm:$0xf]
    %v1265 = vld [vmem:[#allocation2 + $0x3d0] sm:$0xf]
    %v1266 = vld [vmem:[#allocation2 + $0x3d4] sm:$0xf]
    %v1267 = vld [vmem:[#allocation2 + $0x3d8] sm:$0xf]
    %v1268 = vld [vmem:[#allocation2 + $0x3dc] sm:$0xf]
    %v1269 = vld [vmem:[#allocation2 + $0x3e0] sm:$0xf]
    %v1270 = vld [vmem:[#allocation2 + $0x3e4] sm:$0xf]
    %v1271 = vld [vmem:[#allocation2 + $0x3e8] sm:$0xf]
    %v1272 = vld [vmem:[#allocation2 + $0x3ec] sm:$0xf]
    %v1273 = vld [vmem:[#allocation2 + $0x3f0] sm:$0xf]
    %v1274 = vld [vmem:[#allocation2 + $0x3f4] sm:$0xf]
    %v1275 = vld [vmem:[#allocation2 + $0x3f8] sm:$0xf]
    %v1276 = vld [vmem:[#allocation2 + $0x3fc] sm:$0xf]
    %v1533 = vunpack.c.l.b16 %v1021
    %v1534 = vunpack.c.l.b16 %v1022
    %v1535 = vunpack.c.l.b16 %v1023
    %v1536 = vunpack.c.l.b16 %v1024
    %v1537 = vunpack.c.l.b16 %v1025
    %v1538 = vunpack.c.l.b16 %v1026
    %v1539 = vunpack.c.l.b16 %v1027
    %v1540 = vunpack.c.l.b16 %v1028
    %v1541 = vunpack.c.l.b16 %v1029
    %v1542 = vunpack.c.l.b16 %v1030
    %v1543 = vunpack.c.l.b16 %v1031
    %v1544 = vunpack.c.l.b16 %v1032
    %v1545 = vunpack.c.l.b16 %v1033
    %v1546 = vunpack.c.l.b16 %v1034
    %v1547 = vunpack.c.l.b16 %v1035
    %v1548 = vunpack.c.l.b16 %v1036
    %v1549 = vunpack.c.l.b16 %v1037
    %v1550 = vunpack.c.l.b16 %v1038
    %v1551 = vunpack.c.l.b16 %v1039
    %v1552 = vunpack.c.l.b16 %v1040
    %v1553 = vunpack.c.l.b16 %v1041
    %v1554 = vunpack.c.l.b16 %v1042
    %v1555 = vunpack.c.l.b16 %v1043
    %v1556 = vunpack.c.l.b16 %v1044
    %v1557 = vunpack.c.l.b16 %v1045
    %v1558 = vunpack.c.l.b16 %v1046
    %v1559 = vunpack.c.l.b16 %v1047
    %v1560 = vunpack.c.l.b16 %v1048
    %v1561 = vunpack.c.l.b16 %v1049
    %v1562 = vunpack.c.l.b16 %v1050
    %v1563 = vunpack.c.l.b16 %v1051
    %v1564 = vunpack.c.l.b16 %v1052
    %v1565 = vunpack.c.l.b16 %v1053
    %v1566 = vunpack.c.l.b16 %v1054
    %v1567 = vunpack.c.l.b16 %v1055
    %v1568 = vunpack.c.l.b16 %v1056
    %v1569 = vunpack.c.l.b16 %v1057
    %v1570 = vunpack.c.l.b16 %v1058
    %v1571 = vunpack.c.l.b16 %v1059
    %v1572 = vunpack.c.l.b16 %v1060
    %v1573 = vunpack.c.l.b16 %v1061
    %v1574 = vunpack.c.l.b16 %v1062
    %v1575 = vunpack.c.l.b16 %v1063
    %v1576 = vunpack.c.l.b16 %v1064
    %v1577 = vunpack.c.l.b16 %v1065
    %v1578 = vunpack.c.l.b16 %v1066
    %v1579 = vunpack.c.l.b16 %v1067
    %v1580 = vunpack.c.l.b16 %v1068
    %v1581 = vunpack.c.l.b16 %v1069
    %v1582 = vunpack.c.l.b16 %v1070
    %v1583 = vunpack.c.l.b16 %v1071
    %v1584 = vunpack.c.l.b16 %v1072
    %v1585 = vunpack.c.l.b16 %v1073
    %v1586 = vunpack.c.l.b16 %v1074
    %v1587 = vunpack.c.l.b16 %v1075
    %v1588 = vunpack.c.l.b16 %v1076
    %v1589 = vunpack.c.l.b16 %v1077
    %v1590 = vunpack.c.l.b16 %v1078
    %v1591 = vunpack.c.l.b16 %v1079
    %v1592 = vunpack.c.l.b16 %v1080
    %v1593 = vunpack.c.l.b16 %v1081
    %v1594 = vunpack.c.l.b16 %v1082
    %v1595 = vunpack.c.l.b16 %v1083
    %v1596 = vunpack.c.l.b16 %v1084
    %v1597 = vunpack.c.l.b16 %v1085
    %v1598 = vunpack.c.l.b16 %v1086
    %v1599 = vunpack.c.l.b16 %v1087
    %v1600 = vunpack.c.l.b16 %v1088
    %v1601 = vunpack.c.l.b16 %v1089
    %v1602 = vunpack.c.l.b16 %v1090
    %v1603 = vunpack.c.l.b16 %v1091
    %v1604 = vunpack.c.l.b16 %v1092
    %v1605 = vunpack.c.l.b16 %v1093
    %v1606 = vunpack.c.l.b16 %v1094
    %v1607 = vunpack.c.l.b16 %v1095
    %v1608 = vunpack.c.l.b16 %v1096
    %v1609 = vunpack.c.l.b16 %v1097
    %v1610 = vunpack.c.l.b16 %v1098
    %v1611 = vunpack.c.l.b16 %v1099
    %v1612 = vunpack.c.l.b16 %v1100
    %v1613 = vunpack.c.l.b16 %v1101
    %v1614 = vunpack.c.l.b16 %v1102
    %v1615 = vunpack.c.l.b16 %v1103
    %v1616 = vunpack.c.l.b16 %v1104
    %v1617 = vunpack.c.l.b16 %v1105
    %v1618 = vunpack.c.l.b16 %v1106
    %v1619 = vunpack.c.l.b16 %v1107
    %v1620 = vunpack.c.l.b16 %v1108
    %v1621 = vunpack.c.l.b16 %v1109
    %v1622 = vunpack.c.l.b16 %v1110
    %v1623 = vunpack.c.l.b16 %v1111
    %v1624 = vunpack.c.l.b16 %v1112
    %v1625 = vunpack.c.l.b16 %v1113
    %v1626 = vunpack.c.l.b16 %v1114
    %v1627 = vunpack.c.l.b16 %v1115
    %v1628 = vunpack.c.l.b16 %v1116
    %v1629 = vunpack.c.l.b16 %v1117
    %v1630 = vunpack.c.l.b16 %v1118
    %v1631 = vunpack.c.l.b16 %v1119
    %v1632 = vunpack.c.l.b16 %v1120
    %v1633 = vunpack.c.l.b16 %v1121
    %v1634 = vunpack.c.l.b16 %v1122
    %v1635 = vunpack.c.l.b16 %v1123
    %v1636 = vunpack.c.l.b16 %v1124
    %v1637 = vunpack.c.l.b16 %v1125
    %v1638 = vunpack.c.l.b16 %v1126
    %v1639 = vunpack.c.l.b16 %v1127
    %v1640 = vunpack.c.l.b16 %v1128
    %v1641 = vunpack.c.l.b16 %v1129
    %v1642 = vunpack.c.l.b16 %v1130
    %v1643 = vunpack.c.l.b16 %v1131
    %v1644 = vunpack.c.l.b16 %v1132
    %v1645 = vunpack.c.l.b16 %v1133
    %v1646 = vunpack.c.l.b16 %v1134
    %v1647 = vunpack.c.l.b16 %v1135
    %v1648 = vunpack.c.l.b16 %v1136
    %v1649 = vunpack.c.l.b16 %v1137
    %v1650 = vunpack.c.l.b16 %v1138
    %v1651 = vunpack.c.l.b16 %v1139
    %v1652 = vunpack.c.l.b16 %v1140
    %v1653 = vunpack.c.l.b16 %v1141
    %v1654 = vunpack.c.l.b16 %v1142
    %v1655 = vunpack.c.l.b16 %v1143
    %v1656 = vunpack.c.l.b16 %v1144
    %v1657 = vunpack.c.l.b16 %v1145
    %v1658 = vunpack.c.l.b16 %v1146
    %v1659 = vunpack.c.l.b16 %v1147
    %v1660 = vunpack.c.l.b16 %v1148
    %v1661 = vunpack.c.l.b16 %v1149
    %v1662 = vunpack.c.l.b16 %v1150
    %v1663 = vunpack.c.l.b16 %v1151
    %v1664 = vunpack.c.l.b16 %v1152
    %v1665 = vunpack.c.l.b16 %v1153
    %v1666 = vunpack.c.l.b16 %v1154
    %v1667 = vunpack.c.l.b16 %v1155
    %v1668 = vunpack.c.l.b16 %v1156
    %v1669 = vunpack.c.l.b16 %v1157
    %v1670 = vunpack.c.l.b16 %v1158
    %v1671 = vunpack.c.l.b16 %v1159
    %v1672 = vunpack.c.l.b16 %v1160
    %v1673 = vunpack.c.l.b16 %v1161
    %v1674 = vunpack.c.l.b16 %v1162
    %v1675 = vunpack.c.l.b16 %v1163
    %v1676 = vunpack.c.l.b16 %v1164
    %v1677 = vunpack.c.l.b16 %v1165
    %v1678 = vunpack.c.l.b16 %v1166
    %v1679 = vunpack.c.l.b16 %v1167
    %v1680 = vunpack.c.l.b16 %v1168
    %v1681 = vunpack.c.l.b16 %v1169
    %v1682 = vunpack.c.l.b16 %v1170
    %v1683 = vunpack.c.l.b16 %v1171
    %v1684 = vunpack.c.l.b16 %v1172
    %v1685 = vunpack.c.l.b16 %v1173
    %v1686 = vunpack.c.l.b16 %v1174
    %v1687 = vunpack.c.l.b16 %v1175
    %v1688 = vunpack.c.l.b16 %v1176
    %v1689 = vunpack.c.l.b16 %v1177
    %v1690 = vunpack.c.l.b16 %v1178
    %v1691 = vunpack.c.l.b16 %v1179
    %v1692 = vunpack.c.l.b16 %v1180
    %v1693 = vunpack.c.l.b16 %v1181
    %v1694 = vunpack.c.l.b16 %v1182
    %v1695 = vunpack.c.l.b16 %v1183
    %v1696 = vunpack.c.l.b16 %v1184
    %v1697 = vunpack.c.l.b16 %v1185
    %v1698 = vunpack.c.l.b16 %v1186
    %v1699 = vunpack.c.l.b16 %v1187
    %v1700 = vunpack.c.l.b16 %v1188
    %v1701 = vunpack.c.l.b16 %v1189
    %v1702 = vunpack.c.l.b16 %v1190
    %v1703 = vunpack.c.l.b16 %v1191
    %v1704 = vunpack.c.l.b16 %v1192
    %v1705 = vunpack.c.l.b16 %v1193
    %v1706 = vunpack.c.l.b16 %v1194
    %v1707 = vunpack.c.l.b16 %v1195
    %v1708 = vunpack.c.l.b16 %v1196
    %v1709 = vunpack.c.l.b16 %v1197
    %v1710 = vunpack.c.l.b16 %v1198
    %v1711 = vunpack.c.l.b16 %v1199
    %v1712 = vunpack.c.l.b16 %v1200
    %v1713 = vunpack.c.l.b16 %v1201
    %v1714 = vunpack.c.l.b16 %v1202
    %v1715 = vunpack.c.l.b16 %v1203
    %v1716 = vunpack.c.l.b16 %v1204
    %v1717 = vunpack.c.l.b16 %v1205
    %v1718 = vunpack.c.l.b16 %v1206
    %v1719 = vunpack.c.l.b16 %v1207
    %v1720 = vunpack.c.l.b16 %v1208
    %v1721 = vunpack.c.l.b16 %v1209
    %v1722 = vunpack.c.l.b16 %v1210
    %v1723 = vunpack.c.l.b16 %v1211
    %v1724 = vunpack.c.l.b16 %v1212
    %v1725 = vunpack.c.l.b16 %v1213
    %v1726 = vunpack.c.l.b16 %v1214
    %v1727 = vunpack.c.l.b16 %v1215
    %v1728 = vunpack.c.l.b16 %v1216
    %v1729 = vunpack.c.l.b16 %v1217
    %v1730 = vunpack.c.l.b16 %v1218
    %v1731 = vunpack.c.l.b16 %v1219
    %v1732 = vunpack.c.l.b16 %v1220
    %v1733 = vunpack.c.l.b16 %v1221
    %v1734 = vunpack.c.l.b16 %v1222
    %v1735 = vunpack.c.l.b16 %v1223
    %v1736 = vunpack.c.l.b16 %v1224
    %v1737 = vunpack.c.l.b16 %v1225
    %v1738 = vunpack.c.l.b16 %v1226
    %v1739 = vunpack.c.l.b16 %v1227
    %v1740 = vunpack.c.l.b16 %v1228
    %v1741 = vunpack.c.l.b16 %v1229
    %v1742 = vunpack.c.l.b16 %v1230
    %v1743 = vunpack.c.l.b16 %v1231
    %v1744 = vunpack.c.l.b16 %v1232
    %v1745 = vunpack.c.l.b16 %v1233
    %v1746 = vunpack.c.l.b16 %v1234
    %v1747 = vunpack.c.l.b16 %v1235
    %v1748 = vunpack.c.l.b16 %v1236
    %v1749 = vunpack.c.l.b16 %v1237
    %v1750 = vunpack.c.l.b16 %v1238
    %v1751 = vunpack.c.l.b16 %v1239
    %v1752 = vunpack.c.l.b16 %v1240
    %v1753 = vunpack.c.l.b16 %v1241
    %v1754 = vunpack.c.l.b16 %v1242
    %v1755 = vunpack.c.l.b16 %v1243
    %v1756 = vunpack.c.l.b16 %v1244
    %v1757 = vunpack.c.l.b16 %v1245
    %v1758 = vunpack.c.l.b16 %v1246
    %v1759 = vunpack.c.l.b16 %v1247
    %v1760 = vunpack.c.l.b16 %v1248
    %v1761 = vunpack.c.l.b16 %v1249
    %v1762 = vunpack.c.l.b16 %v1250
    %v1763 = vunpack.c.l.b16 %v1251
    %v1764 = vunpack.c.l.b16 %v1252
    %v1765 = vunpack.c.l.b16 %v1253
    %v1766 = vunpack.c.l.b16 %v1254
    %v1767 = vunpack.c.l.b16 %v1255
    %v1768 = vunpack.c.l.b16 %v1256
    %v1769 = vunpack.c.l.b16 %v1257
    %v1770 = vunpack.c.l.b16 %v1258
    %v1771 = vunpack.c.l.b16 %v1259
    %v1772 = vunpack.c.l.b16 %v1260
    %v1773 = vunpack.c.l.b16 %v1261
    %v1774 = vunpack.c.l.b16 %v1262
    %v1775 = vunpack.c.l.b16 %v1263
    %v1776 = vunpack.c.l.b16 %v1264
    %v1777 = vunpack.c.l.b16 %v1265
    %v1778 = vunpack.c.l.b16 %v1266
    %v1779 = vunpack.c.l.b16 %v1267
    %v1780 = vunpack.c.l.b16 %v1268
    %v1781 = vunpack.c.l.b16 %v1269
    %v1782 = vunpack.c.l.b16 %v1270
    %v1783 = vunpack.c.l.b16 %v1271
    %v1784 = vunpack.c.l.b16 %v1272
    %v1785 = vunpack.c.l.b16 %v1273
    %v1786 = vunpack.c.l.b16 %v1274
    %v1787 = vunpack.c.l.b16 %v1275
    %v1788 = vunpack.c.l.b16 %v1276
    %v1789 = vpack.c.b16 %v1534, %v1533
    %v1790 = vpack.c.b16 %v1536, %v1535
    %v1791 = vpack.c.b16 %v1538, %v1537
    %v1792 = vpack.c.b16 %v1540, %v1539
    %v1793 = vpack.c.b16 %v1542, %v1541
    %v1794 = vpack.c.b16 %v1544, %v1543
    %v1795 = vpack.c.b16 %v1546, %v1545
    %v1796 = vpack.c.b16 %v1548, %v1547
    %v1797 = vpack.c.b16 %v1550, %v1549
    %v1798 = vpack.c.b16 %v1552, %v1551
    %v1799 = vpack.c.b16 %v1554, %v1553
    %v1800 = vpack.c.b16 %v1556, %v1555
    %v1801 = vpack.c.b16 %v1558, %v1557
    %v1802 = vpack.c.b16 %v1560, %v1559
    %v1803 = vpack.c.b16 %v1562, %v1561
    %v1804 = vpack.c.b16 %v1564, %v1563
    %v1805 = vpack.c.b16 %v1566, %v1565
    %v1806 = vpack.c.b16 %v1568, %v1567
    %v1807 = vpack.c.b16 %v1570, %v1569
    %v1808 = vpack.c.b16 %v1572, %v1571
    %v1809 = vpack.c.b16 %v1574, %v1573
    %v1810 = vpack.c.b16 %v1576, %v1575
    %v1811 = vpack.c.b16 %v1578, %v1577
    %v1812 = vpack.c.b16 %v1580, %v1579
    %v1813 = vpack.c.b16 %v1582, %v1581
    %v1814 = vpack.c.b16 %v1584, %v1583
    %v1815 = vpack.c.b16 %v1586, %v1585
    %v1816 = vpack.c.b16 %v1588, %v1587
    %v1817 = vpack.c.b16 %v1590, %v1589
    %v1818 = vpack.c.b16 %v1592, %v1591
    %v1819 = vpack.c.b16 %v1594, %v1593
    %v1820 = vpack.c.b16 %v1596, %v1595
    %v1821 = vpack.c.b16 %v1598, %v1597
    %v1822 = vpack.c.b16 %v1600, %v1599
    %v1823 = vpack.c.b16 %v1602, %v1601
    %v1824 = vpack.c.b16 %v1604, %v1603
    %v1825 = vpack.c.b16 %v1606, %v1605
    %v1826 = vpack.c.b16 %v1608, %v1607
    %v1827 = vpack.c.b16 %v1610, %v1609
    %v1828 = vpack.c.b16 %v1612, %v1611
    %v1829 = vpack.c.b16 %v1614, %v1613
    %v1830 = vpack.c.b16 %v1616, %v1615
    %v1831 = vpack.c.b16 %v1618, %v1617
    %v1832 = vpack.c.b16 %v1620, %v1619
    %v1833 = vpack.c.b16 %v1622, %v1621
    %v1834 = vpack.c.b16 %v1624, %v1623
    %v1835 = vpack.c.b16 %v1626, %v1625
    %v1836 = vpack.c.b16 %v1628, %v1627
    %v1837 = vpack.c.b16 %v1630, %v1629
    %v1838 = vpack.c.b16 %v1632, %v1631
    %v1839 = vpack.c.b16 %v1634, %v1633
    %v1840 = vpack.c.b16 %v1636, %v1635
    %v1841 = vpack.c.b16 %v1638, %v1637
    %v1842 = vpack.c.b16 %v1640, %v1639
    %v1843 = vpack.c.b16 %v1642, %v1641
    %v1844 = vpack.c.b16 %v1644, %v1643
    %v1845 = vpack.c.b16 %v1646, %v1645
    %v1846 = vpack.c.b16 %v1648, %v1647
    %v1847 = vpack.c.b16 %v1650, %v1649
    %v1848 = vpack.c.b16 %v1652, %v1651
    %v1849 = vpack.c.b16 %v1654, %v1653
    %v1850 = vpack.c.b16 %v1656, %v1655
    %v1851 = vpack.c.b16 %v1658, %v1657
    %v1852 = vpack.c.b16 %v1660, %v1659
    %v1853 = vpack.c.b16 %v1662, %v1661
    %v1854 = vpack.c.b16 %v1664, %v1663
    %v1855 = vpack.c.b16 %v1666, %v1665
    %v1856 = vpack.c.b16 %v1668, %v1667
    %v1857 = vpack.c.b16 %v1670, %v1669
    %v1858 = vpack.c.b16 %v1672, %v1671
    %v1859 = vpack.c.b16 %v1674, %v1673
    %v1860 = vpack.c.b16 %v1676, %v1675
    %v1861 = vpack.c.b16 %v1678, %v1677
    %v1862 = vpack.c.b16 %v1680, %v1679
    %v1863 = vpack.c.b16 %v1682, %v1681
    %v1864 = vpack.c.b16 %v1684, %v1683
    %v1865 = vpack.c.b16 %v1686, %v1685
    %v1866 = vpack.c.b16 %v1688, %v1687
    %v1867 = vpack.c.b16 %v1690, %v1689
    %v1868 = vpack.c.b16 %v1692, %v1691
    %v1869 = vpack.c.b16 %v1694, %v1693
    %v1870 = vpack.c.b16 %v1696, %v1695
    %v1871 = vpack.c.b16 %v1698, %v1697
    %v1872 = vpack.c.b16 %v1700, %v1699
    %v1873 = vpack.c.b16 %v1702, %v1701
    %v1874 = vpack.c.b16 %v1704, %v1703
    %v1875 = vpack.c.b16 %v1706, %v1705
    %v1876 = vpack.c.b16 %v1708, %v1707
    %v1877 = vpack.c.b16 %v1710, %v1709
    %v1878 = vpack.c.b16 %v1712, %v1711
    %v1879 = vpack.c.b16 %v1714, %v1713
    %v1880 = vpack.c.b16 %v1716, %v1715
    %v1881 = vpack.c.b16 %v1718, %v1717
    %v1882 = vpack.c.b16 %v1720, %v1719
    %v1883 = vpack.c.b16 %v1722, %v1721
    %v1884 = vpack.c.b16 %v1724, %v1723
    %v1885 = vpack.c.b16 %v1726, %v1725
    %v1886 = vpack.c.b16 %v1728, %v1727
    %v1887 = vpack.c.b16 %v1730, %v1729
    %v1888 = vpack.c.b16 %v1732, %v1731
    %v1889 = vpack.c.b16 %v1734, %v1733
    %v1890 = vpack.c.b16 %v1736, %v1735
    %v1891 = vpack.c.b16 %v1738, %v1737
    %v1892 = vpack.c.b16 %v1740, %v1739
    %v1893 = vpack.c.b16 %v1742, %v1741
    %v1894 = vpack.c.b16 %v1744, %v1743
    %v1895 = vpack.c.b16 %v1746, %v1745
    %v1896 = vpack.c.b16 %v1748, %v1747
    %v1897 = vpack.c.b16 %v1750, %v1749
    %v1898 = vpack.c.b16 %v1752, %v1751
    %v1899 = vpack.c.b16 %v1754, %v1753
    %v1900 = vpack.c.b16 %v1756, %v1755
    %v1901 = vpack.c.b16 %v1758, %v1757
    %v1902 = vpack.c.b16 %v1760, %v1759
    %v1903 = vpack.c.b16 %v1762, %v1761
    %v1904 = vpack.c.b16 %v1764, %v1763
    %v1905 = vpack.c.b16 %v1766, %v1765
    %v1906 = vpack.c.b16 %v1768, %v1767
    %v1907 = vpack.c.b16 %v1770, %v1769
    %v1908 = vpack.c.b16 %v1772, %v1771
    %v1909 = vpack.c.b16 %v1774, %v1773
    %v1910 = vpack.c.b16 %v1776, %v1775
    %v1911 = vpack.c.b16 %v1778, %v1777
    %v1912 = vpack.c.b16 %v1780, %v1779
    %v1913 = vpack.c.b16 %v1782, %v1781
    %v1914 = vpack.c.b16 %v1784, %v1783
    %v1915 = vpack.c.b16 %v1786, %v1785
    %v1916 = vpack.c.b16 %v1788, %v1787
    %2045 = vmatpush.bf16.msra.mxu0 %v1796
    %2046 = vmatpush.bf16.msra.mxu0 %v1795
    %2047 = vmatpush.bf16.msra.mxu0 %v1794
    %2048 = vmatpush.bf16.msra.mxu0 %v1793
    %2049 = vmatpush.bf16.msra.mxu0 %v1792
    %2050 = vmatpush.bf16.msra.mxu0 %v1791
    %2051 = vmatpush.bf16.msra.mxu0 %v1790
    %2052 = vmatpush.bf16.msra.mxu0 %v1789
    %2053 = vmatmul.bf16.gmra.mxu0 %v989
    %v2054 = vpop.f32.mrf.mxu0
    %v2055 = vadd.f32 0.0, %v2054
    %v2056 = vpop.f32.mrf.mxu0
    %v2057 = vadd.f32 0.0, %v2056
    %2058 = vmatmul.bf16.gmra.mxu0 %v1005
    %v2059 = vpop.f32.mrf.mxu0
    %v2060 = vadd.f32 0.0, %v2059
    %v2061 = vpop.f32.mrf.mxu0
    %v2062 = vadd.f32 0.0, %v2061
    %2063 = vdwg.mxu0
    %2064 = vmatpush.bf16.msra.mxu0 %v1804
    %2065 = vmatpush.bf16.msra.mxu0 %v1803
    %2066 = vmatpush.bf16.msra.mxu0 %v1802
    %2067 = vmatpush.bf16.msra.mxu0 %v1801
    %2068 = vmatpush.bf16.msra.mxu0 %v1800
    %2069 = vmatpush.bf16.msra.mxu0 %v1799
    %2070 = vmatpush.bf16.msra.mxu0 %v1798
    %2071 = vmatpush.bf16.msra.mxu0 %v1797
    %2072 = vmatmul.bf16.gmra.mxu0 %v990
    %v2073 = vpop.f32.mrf.mxu0
    %v2074 = vadd.f32 %v2055, %v2073
    %v2075 = vpop.f32.mrf.mxu0
    %v2076 = vadd.f32 %v2057, %v2075
    %2077 = vmatmul.bf16.gmra.mxu0 %v1006
    %v2078 = vpop.f32.mrf.mxu0
    %v2079 = vadd.f32 %v2060, %v2078
    %v2080 = vpop.f32.mrf.mxu0
    %v2081 = vadd.f32 %v2062, %v2080
    %2082 = vdwg.mxu0
    %2083 = vmatpush.bf16.msra.mxu0 %v1812
    %2084 = vmatpush.bf16.msra.mxu0 %v1811
    %2085 = vmatpush.bf16.msra.mxu0 %v1810
    %2086 = vmatpush.bf16.msra.mxu0 %v1809
    %2087 = vmatpush.bf16.msra.mxu0 %v1808
    %2088 = vmatpush.bf16.msra.mxu0 %v1807
    %2089 = vmatpush.bf16.msra.mxu0 %v1806
    %2090 = vmatpush.bf16.msra.mxu0 %v1805
    %2091 = vmatmul.bf16.gmra.mxu0 %v991
    %v2092 = vpop.f32.mrf.mxu0
    %v2093 = vadd.f32 %v2074, %v2092
    %v2094 = vpop.f32.mrf.mxu0
    %v2095 = vadd.f32 %v2076, %v2094
    %2096 = vmatmul.bf16.gmra.mxu0 %v1007
    %v2097 = vpop.f32.mrf.mxu0
    %v2098 = vadd.f32 %v2079, %v2097
    %v2099 = vpop.f32.mrf.mxu0
    %v2100 = vadd.f32 %v2081, %v2099
    %2101 = vdwg.mxu0
    %2102 = vmatpush.bf16.msra.mxu0 %v1820
    %2103 = vmatpush.bf16.msra.mxu0 %v1819
    %2104 = vmatpush.bf16.msra.mxu0 %v1818
    %2105 = vmatpush.bf16.msra.mxu0 %v1817
    %2106 = vmatpush.bf16.msra.mxu0 %v1816
    %2107 = vmatpush.bf16.msra.mxu0 %v1815
    %2108 = vmatpush.bf16.msra.mxu0 %v1814
    %2109 = vmatpush.bf16.msra.mxu0 %v1813
    %2110 = vmatmul.bf16.gmra.mxu0 %v992
    %v2111 = vpop.f32.mrf.mxu0
    %v2112 = vadd.f32 %v2093, %v2111
    %v2113 = vpop.f32.mrf.mxu0
    %v2114 = vadd.f32 %v2095, %v2113
    %2115 = vmatmul.bf16.gmra.mxu0 %v1008
    %v2116 = vpop.f32.mrf.mxu0
    %v2117 = vadd.f32 %v2098, %v2116
    %v2118 = vpop.f32.mrf.mxu0
    %v2119 = vadd.f32 %v2100, %v2118
    %2120 = vdwg.mxu0
    %2121 = vmatpush.bf16.msra.mxu0 %v1828
    %2122 = vmatpush.bf16.msra.mxu0 %v1827
    %2123 = vmatpush.bf16.msra.mxu0 %v1826
    %2124 = vmatpush.bf16.msra.mxu0 %v1825
    %2125 = vmatpush.bf16.msra.mxu0 %v1824
    %2126 = vmatpush.bf16.msra.mxu0 %v1823
    %2127 = vmatpush.bf16.msra.mxu0 %v1822
    %2128 = vmatpush.bf16.msra.mxu0 %v1821
    %2129 = vmatmul.bf16.gmra.mxu0 %v993
    %v2130 = vpop.f32.mrf.mxu0
    %v2131 = vadd.f32 %v2112, %v2130
    %v2132 = vpop.f32.mrf.mxu0
    %v2133 = vadd.f32 %v2114, %v2132
    %2134 = vmatmul.bf16.gmra.mxu0 %v1009
    %v2135 = vpop.f32.mrf.mxu0
    %v2136 = vadd.f32 %v2117, %v2135
    %v2137 = vpop.f32.mrf.mxu0
    %v2138 = vadd.f32 %v2119, %v2137
    %2139 = vdwg.mxu0
    %2140 = vmatpush.bf16.msra.mxu0 %v1836
    %2141 = vmatpush.bf16.msra.mxu0 %v1835
    %2142 = vmatpush.bf16.msra.mxu0 %v1834
    %2143 = vmatpush.bf16.msra.mxu0 %v1833
    %2144 = vmatpush.bf16.msra.mxu0 %v1832
    %2145 = vmatpush.bf16.msra.mxu0 %v1831
    %2146 = vmatpush.bf16.msra.mxu0 %v1830
    %2147 = vmatpush.bf16.msra.mxu0 %v1829
    %2148 = vmatmul.bf16.gmra.mxu0 %v994
    %v2149 = vpop.f32.mrf.mxu0
    %v2150 = vadd.f32 %v2131, %v2149
    %v2151 = vpop.f32.mrf.mxu0
    %v2152 = vadd.f32 %v2133, %v2151
    %2153 = vmatmul.bf16.gmra.mxu0 %v1010
    %v2154 = vpop.f32.mrf.mxu0
    %v2155 = vadd.f32 %v2136, %v2154
    %v2156 = vpop.f32.mrf.mxu0
    %v2157 = vadd.f32 %v2138, %v2156
    %2158 = vdwg.mxu0
    %2159 = vmatpush.bf16.msra.mxu0 %v1844
    %2160 = vmatpush.bf16.msra.mxu0 %v1843
    %2161 = vmatpush.bf16.msra.mxu0 %v1842
    %2162 = vmatpush.bf16.msra.mxu0 %v1841
    %2163 = vmatpush.bf16.msra.mxu0 %v1840
    %2164 = vmatpush.bf16.msra.mxu0 %v1839
    %2165 = vmatpush.bf16.msra.mxu0 %v1838
    %2166 = vmatpush.bf16.msra.mxu0 %v1837
    %2167 = vmatmul.bf16.gmra.mxu0 %v995
    %v2168 = vpop.f32.mrf.mxu0
    %v2169 = vadd.f32 %v2150, %v2168
    %v2170 = vpop.f32.mrf.mxu0
    %v2171 = vadd.f32 %v2152, %v2170
    %2172 = vmatmul.bf16.gmra.mxu0 %v1011
    %v2173 = vpop.f32.mrf.mxu0
    %v2174 = vadd.f32 %v2155, %v2173
    %v2175 = vpop.f32.mrf.mxu0
    %v2176 = vadd.f32 %v2157, %v2175
    %2177 = vdwg.mxu0
    %2178 = vmatpush.bf16.msra.mxu0 %v1852
    %2179 = vmatpush.bf16.msra.mxu0 %v1851
    %2180 = vmatpush.bf16.msra.mxu0 %v1850
    %2181 = vmatpush.bf16.msra.mxu0 %v1849
    %2182 = vmatpush.bf16.msra.mxu0 %v1848
    %2183 = vmatpush.bf16.msra.mxu0 %v1847
    %2184 = vmatpush.bf16.msra.mxu0 %v1846
    %2185 = vmatpush.bf16.msra.mxu0 %v1845
    %2186 = vmatmul.bf16.gmra.mxu0 %v996
    %v2187 = vpop.f32.mrf.mxu0
    %v2188 = vadd.f32 %v2169, %v2187
    %v2189 = vpop.f32.mrf.mxu0
    %v2190 = vadd.f32 %v2171, %v2189
    %2191 = vmatmul.bf16.gmra.mxu0 %v1012
    %v2192 = vpop.f32.mrf.mxu0
    %v2193 = vadd.f32 %v2174, %v2192
    %v2194 = vpop.f32.mrf.mxu0
    %v2195 = vadd.f32 %v2176, %v2194
    %2196 = vdwg.mxu0
    %2197 = vmatpush.bf16.msra.mxu0 %v1860
    %2198 = vmatpush.bf16.msra.mxu0 %v1859
    %2199 = vmatpush.bf16.msra.mxu0 %v1858
    %2200 = vmatpush.bf16.msra.mxu0 %v1857
    %2201 = vmatpush.bf16.msra.mxu0 %v1856
    %2202 = vmatpush.bf16.msra.mxu0 %v1855
    %2203 = vmatpush.bf16.msra.mxu0 %v1854
    %2204 = vmatpush.bf16.msra.mxu0 %v1853
    %2205 = vmatmul.bf16.gmra.mxu0 %v997
    %v2206 = vpop.f32.mrf.mxu0
    %v2207 = vadd.f32 %v2188, %v2206
    %v2208 = vpop.f32.mrf.mxu0
    %v2209 = vadd.f32 %v2190, %v2208
    %2210 = vmatmul.bf16.gmra.mxu0 %v1013
    %v2211 = vpop.f32.mrf.mxu0
    %v2212 = vadd.f32 %v2193, %v2211
    %v2213 = vpop.f32.mrf.mxu0
    %v2214 = vadd.f32 %v2195, %v2213
    %2215 = vdwg.mxu0
    %2216 = vmatpush.bf16.msra.mxu0 %v1868
    %2217 = vmatpush.bf16.msra.mxu0 %v1867
    %2218 = vmatpush.bf16.msra.mxu0 %v1866
    %2219 = vmatpush.bf16.msra.mxu0 %v1865
    %2220 = vmatpush.bf16.msra.mxu0 %v1864
    %2221 = vmatpush.bf16.msra.mxu0 %v1863
    %2222 = vmatpush.bf16.msra.mxu0 %v1862
    %2223 = vmatpush.bf16.msra.mxu0 %v1861
    %2224 = vmatmul.bf16.gmra.mxu0 %v998
    %v2225 = vpop.f32.mrf.mxu0
    %v2226 = vadd.f32 %v2207, %v2225
    %v2227 = vpop.f32.mrf.mxu0
    %v2228 = vadd.f32 %v2209, %v2227
    %2229 = vmatmul.bf16.gmra.mxu0 %v1014
    %v2230 = vpop.f32.mrf.mxu0
    %v2231 = vadd.f32 %v2212, %v2230
    %v2232 = vpop.f32.mrf.mxu0
    %v2233 = vadd.f32 %v2214, %v2232
    %2234 = vdwg.mxu0
    %2235 = vmatpush.bf16.msra.mxu0 %v1876
    %2236 = vmatpush.bf16.msra.mxu0 %v1875
    %2237 = vmatpush.bf16.msra.mxu0 %v1874
    %2238 = vmatpush.bf16.msra.mxu0 %v1873
    %2239 = vmatpush.bf16.msra.mxu0 %v1872
    %2240 = vmatpush.bf16.msra.mxu0 %v1871
    %2241 = vmatpush.bf16.msra.mxu0 %v1870
    %2242 = vmatpush.bf16.msra.mxu0 %v1869
    %2243 = vmatmul.bf16.gmra.mxu0 %v999
    %v2244 = vpop.f32.mrf.mxu0
    %v2245 = vadd.f32 %v2226, %v2244
    %v2246 = vpop.f32.mrf.mxu0
    %v2247 = vadd.f32 %v2228, %v2246
    %2248 = vmatmul.bf16.gmra.mxu0 %v1015
    %v2249 = vpop.f32.mrf.mxu0
    %v2250 = vadd.f32 %v2231, %v2249
    %v2251 = vpop.f32.mrf.mxu0
    %v2252 = vadd.f32 %v2233, %v2251
    %2253 = vdwg.mxu0
    %2254 = vmatpush.bf16.msra.mxu0 %v1884
    %2255 = vmatpush.bf16.msra.mxu0 %v1883
    %2256 = vmatpush.bf16.msra.mxu0 %v1882
    %2257 = vmatpush.bf16.msra.mxu0 %v1881
    %2258 = vmatpush.bf16.msra.mxu0 %v1880
    %2259 = vmatpush.bf16.msra.mxu0 %v1879
    %2260 = vmatpush.bf16.msra.mxu0 %v1878
    %2261 = vmatpush.bf16.msra.mxu0 %v1877
    %2262 = vmatmul.bf16.gmra.mxu0 %v1000
    %v2263 = vpop.f32.mrf.mxu0
    %v2264 = vadd.f32 %v2245, %v2263
    %v2265 = vpop.f32.mrf.mxu0
    %v2266 = vadd.f32 %v2247, %v2265
    %2267 = vmatmul.bf16.gmra.mxu0 %v1016
    %v2268 = vpop.f32.mrf.mxu0
    %v2269 = vadd.f32 %v2250, %v2268
    %v2270 = vpop.f32.mrf.mxu0
    %v2271 = vadd.f32 %v2252, %v2270
    %2272 = vdwg.mxu0
    %2273 = vmatpush.bf16.msra.mxu0 %v1892
    %2274 = vmatpush.bf16.msra.mxu0 %v1891
    %2275 = vmatpush.bf16.msra.mxu0 %v1890
    %2276 = vmatpush.bf16.msra.mxu0 %v1889
    %2277 = vmatpush.bf16.msra.mxu0 %v1888
    %2278 = vmatpush.bf16.msra.mxu0 %v1887
    %2279 = vmatpush.bf16.msra.mxu0 %v1886
    %2280 = vmatpush.bf16.msra.mxu0 %v1885
    %2281 = vmatmul.bf16.gmra.mxu0 %v1001
    %v2282 = vpop.f32.mrf.mxu0
    %v2283 = vadd.f32 %v2264, %v2282
    %v2284 = vpop.f32.mrf.mxu0
    %v2285 = vadd.f32 %v2266, %v2284
    %2286 = vmatmul.bf16.gmra.mxu0 %v1017
    %v2287 = vpop.f32.mrf.mxu0
    %v2288 = vadd.f32 %v2269, %v2287
    %v2289 = vpop.f32.mrf.mxu0
    %v2290 = vadd.f32 %v2271, %v2289
    %2291 = vdwg.mxu0
    %2292 = vmatpush.bf16.msra.mxu0 %v1900
    %2293 = vmatpush.bf16.msra.mxu0 %v1899
    %2294 = vmatpush.bf16.msra.mxu0 %v1898
    %2295 = vmatpush.bf16.msra.mxu0 %v1897
    %2296 = vmatpush.bf16.msra.mxu0 %v1896
    %2297 = vmatpush.bf16.msra.mxu0 %v1895
    %2298 = vmatpush.bf16.msra.mxu0 %v1894
    %2299 = vmatpush.bf16.msra.mxu0 %v1893
    %2300 = vmatmul.bf16.gmra.mxu0 %v1002
    %v2301 = vpop.f32.mrf.mxu0
    %v2302 = vadd.f32 %v2283, %v2301
    %v2303 = vpop.f32.mrf.mxu0
    %v2304 = vadd.f32 %v2285, %v2303
    %2305 = vmatmul.bf16.gmra.mxu0 %v1018
    %v2306 = vpop.f32.mrf.mxu0
    %v2307 = vadd.f32 %v2288, %v2306
    %v2308 = vpop.f32.mrf.mxu0
    %v2309 = vadd.f32 %v2290, %v2308
    %2310 = vdwg.mxu0
    %2311 = vmatpush.bf16.msra.mxu0 %v1908
    %2312 = vmatpush.bf16.msra.mxu0 %v1907
    %2313 = vmatpush.bf16.msra.mxu0 %v1906
    %2314 = vmatpush.bf16.msra.mxu0 %v1905
    %2315 = vmatpush.bf16.msra.mxu0 %v1904
    %2316 = vmatpush.bf16.msra.mxu0 %v1903
    %2317 = vmatpush.bf16.msra.mxu0 %v1902
    %2318 = vmatpush.bf16.msra.mxu0 %v1901
    %2319 = vmatmul.bf16.gmra.mxu0 %v1003
    %v2320 = vpop.f32.mrf.mxu0
    %v2321 = vadd.f32 %v2302, %v2320
    %v2322 = vpop.f32.mrf.mxu0
    %v2323 = vadd.f32 %v2304, %v2322
    %2324 = vmatmul.bf16.gmra.mxu0 %v1019
    %v2325 = vpop.f32.mrf.mxu0
    %v2326 = vadd.f32 %v2307, %v2325
    %v2327 = vpop.f32.mrf.mxu0
    %v2328 = vadd.f32 %v2309, %v2327
    %2329 = vdwg.mxu0
    %2330 = vmatpush.bf16.msra.mxu0 %v1916
    %2331 = vmatpush.bf16.msra.mxu0 %v1915
    %2332 = vmatpush.bf16.msra.mxu0 %v1914
    %2333 = vmatpush.bf16.msra.mxu0 %v1913
    %2334 = vmatpush.bf16.msra.mxu0 %v1912
    %2335 = vmatpush.bf16.msra.mxu0 %v1911
    %2336 = vmatpush.bf16.msra.mxu0 %v1910
    %2337 = vmatpush.bf16.msra.mxu0 %v1909
    %2338 = vmatmul.bf16.gmra.mxu0 %v1004
    %v2339 = vpop.f32.mrf.mxu0
    %v2340 = vadd.f32 %v2321, %v2339
    %v2341 = vpop.f32.mrf.mxu0
    %v2342 = vadd.f32 %v2323, %v2341
    %2343 = vmatmul.bf16.gmra.mxu0 %v1020
    %v2344 = vpop.f32.mrf.mxu0
    %v2345 = vadd.f32 %v2326, %v2344
    %v2346 = vpop.f32.mrf.mxu0
    %v2347 = vadd.f32 %v2328, %v2346
    %2348 = vdwg.mxu0
    %v2349 = vadd.f32 %v2340, %v2342
    %v2350 = vadd.f32 %v2349, %v2345
    %v2351 = vadd.f32 %v2350, %v2347
    %v2352 = vrot.slane %v2351, 4
    %v2353 = vadd.f32 %v2351, %v2352
    %v2354 = vrot.slane %v2353, 2
    %v2355 = vadd.f32 %v2353, %v2354
    %v2356 = vrot.slane %v2355, 1
    %v2357 = vadd.f32 %v2355, %v2356
    %v2358 = vrcp.pop 32.0
    %v2359 = vmul.f32 32.0, %v2358
    %v2360 = vsub.f32 1.0, %v2359
    %v2361 = vmul.f32 %v2358, %v2360
    %v2362 = vadd.f32 %v2358, %v2361
    %vm2363 = vweird.f32 %v2358
    %v2364 = vsel %vm2363, %v2358, %v2362
    %v2365 = vmul.f32 %v2357, %v2364
    %v2366 = vsub.f32 %v2340, %v2365
    %v2367 = vsub.f32 %v2342, %v2365
    %v2368 = vsub.f32 %v2345, %v2365
    %v2369 = vsub.f32 %v2347, %v2365
    %v2370 = vmul.f32 %v2366, %v2366
    %v2371 = vmul.f32 %v2367, %v2367
    %v2372 = vmul.f32 %v2368, %v2368
    %v2373 = vmul.f32 %v2369, %v2369
    %v2374 = vadd.f32 %v2370, %v2371
    %v2375 = vadd.f32 %v2374, %v2372
    %v2376 = vadd.f32 %v2375, %v2373
    %v2377 = vrot.slane %v2376, 4
    %v2378 = vadd.f32 %v2376, %v2377
    %v2379 = vrot.slane %v2378, 2
    %v2380 = vadd.f32 %v2378, %v2379
    %v2381 = vrot.slane %v2380, 1
    %v2382 = vadd.f32 %v2380, %v2381
    %v2383 = vmul.f32 %v2382, %v2364
    %v2384 = vadd.f32 %v2383, 1e-05
    %v2385 = vrsqrt.pop %v2384
    %v2386 = vmul.f32 %v2385, %v2384
    %v2387 = vmul.f32 %v2386, %v2385
    %v2388 = vmul.f32 0.5, %v2387
    %v2389 = vsub.f32 1.5, %v2388
    %v2390 = vmul.f32 %v2385, %v2389
    %vm2391 = vweird.f32 %v2384
    %vm2392 = vweird.f32 %v2385
    %vm2393 = vmor %vm2391, %vm2392
    %v2394 = vsel %vm2393, %v2385, %v2390
    %v2395 = vmul.f32 %v2366, %v2394
    %v2396 = vmul.f32 %v2367, %v2394
    %v2397 = vmul.f32 %v2368, %v2394
    %v2398 = vmul.f32 %v2369, %v2394
    %v2399 = vld [vmem:[%s6] sm:$0x1]
    %v2401 = vperm.slane %v2399, 0
    %v2403 = vmul.f32 %v2395, %v2401
    %v2404 = vmul.f32 %v2396, %v2401
    %v2405 = vmul.f32 %v2397, %v2401
    %v2406 = vmul.f32 %v2398, %v2401
    %v2407 = vld [vmem:[%s7] sm:$0x1]
    %v2409 = vperm.slane %v2407, 0
    %v2411 = vadd.f32 %v2403, %v2409
    %v2412 = vadd.f32 %v2404, %v2409
    %v2413 = vadd.f32 %v2405, %v2409
    %v2414 = vadd.f32 %v2406, %v2409
    %v2415 = vmax.f32 %v2411, 0.0
    %v2416 = vmax.f32 %v2412, 0.0
    %v2417 = vmax.f32 %v2413, 0.0
    %v2418 = vmax.f32 %v2414, 0.0
    %v2419 = vpack.c.bf16 %v2416, %v2415
    %v2420 = vpack.c.bf16 %v2418, %v2417
    %v2421 = vld [vmem:[%s8] sm:$0xf]
    %vm2422 = vcmask 261120
    %v2424 = vsel %vm2422, %v2421, 0
    %2426 = vmatpush.bf16.msra.mxu0 0
    %2427 = vmatpush.bf16.msra.mxu0 0
    %2428 = vmatpush.bf16.msra.mxu0 0
    %2429 = vmatpush.bf16.msra.mxu0 0
    %2430 = vmatpush.bf16.msra.mxu0 0
    %2431 = vmatpush.bf16.msra.mxu0 0
    %2432 = vmatpush.bf16.msra.mxu0 %v2420
    %2433 = vmatpush.bf16.msra.mxu0 %v2419
    %2434 = vmatmul.bf16.gmra.mxu0 %v2424
    %v2435 = vpop.f32.mrf.mxu0
    %v2436 = vadd.f32 0.0, %v2435
    %v2437 = vpop.f32.mrf.mxu0
    %2438 = vdwg.mxu0
    %s2439 = scalar_lea.vmem %s8, 4
    %v2440 = vld [vmem:[%s2439] sm:$0xf]
    %v2442 = vsel %vm2422, %v2440, 0
    %2444 = vmatpush.bf16.msra.mxu0 0
    %2445 = vmatpush.bf16.msra.mxu0 0
    %2446 = vmatpush.bf16.msra.mxu0 0
    %2447 = vmatpush.bf16.msra.mxu0 0
    %2448 = vmatpush.bf16.msra.mxu0 0
    %2449 = vmatpush.bf16.msra.mxu0 0
    %2450 = vmatpush.bf16.msra.mxu0 %v2420
    %2451 = vmatpush.bf16.msra.mxu0 %v2419
    %2452 = vmatmul.bf16.gmra.mxu0 %v2442
    %v2453 = vpop.f32.mrf.mxu0
    %v2454 = vadd.f32 0.0, %v2453
    %v2455 = vpop.f32.mrf.mxu0
    %2456 = vdwg.mxu0
    %s2457 = scalar_lea.vmem %s8, 8
    %v2458 = vld [vmem:[%s2457] sm:$0xf]
    %v2460 = vsel %vm2422, %v2458, 0
    %2462 = vmatpush.bf16.msra.mxu0 0
    %2463 = vmatpush.bf16.msra.mxu0 0
    %2464 = vmatpush.bf16.msra.mxu0 0
    %2465 = vmatpush.bf16.msra.mxu0 0
    %2466 = vmatpush.bf16.msra.mxu0 0
    %2467 = vmatpush.bf16.msra.mxu0 0
    %2468 = vmatpush.bf16.msra.mxu0 %v2420
    %2469 = vmatpush.bf16.msra.mxu0 %v2419
    %2470 = vmatmul.bf16.gmra.mxu0 %v2460
    %v2471 = vpop.f32.mrf.mxu0
    %v2472 = vadd.f32 0.0, %v2471
    %v2473 = vpop.f32.mrf.mxu0
    %2474 = vdwg.mxu0
    %s2475 = scalar_lea.vmem %s8, 12
    %v2476 = vld [vmem:[%s2475] sm:$0xf]
    %v2478 = vsel %vm2422, %v2476, 0
    %2480 = vmatpush.bf16.msra.mxu0 0
    %2481 = vmatpush.bf16.msra.mxu0 0
    %2482 = vmatpush.bf16.msra.mxu0 0
    %2483 = vmatpush.bf16.msra.mxu0 0
    %2484 = vmatpush.bf16.msra.mxu0 0
    %2485 = vmatpush.bf16.msra.mxu0 0
    %2486 = vmatpush.bf16.msra.mxu0 %v2420
    %2487 = vmatpush.bf16.msra.mxu0 %v2419
    %2488 = vmatmul.bf16.gmra.mxu0 %v2478
    %v2489 = vpop.f32.mrf.mxu0
    %v2490 = vadd.f32 0.0, %v2489
    %v2491 = vpop.f32.mrf.mxu0
    %2492 = vdwg.mxu0
    %s2493 = scalar_lea.vmem %s8, 16
    %v2494 = vld [vmem:[%s2493] sm:$0xf]
    %v2496 = vsel %vm2422, %v2494, 0
    %2498 = vmatpush.bf16.msra.mxu0 0
    %2499 = vmatpush.bf16.msra.mxu0 0
    %2500 = vmatpush.bf16.msra.mxu0 0
    %2501 = vmatpush.bf16.msra.mxu0 0
    %2502 = vmatpush.bf16.msra.mxu0 0
    %2503 = vmatpush.bf16.msra.mxu0 0
    %2504 = vmatpush.bf16.msra.mxu0 %v2420
    %2505 = vmatpush.bf16.msra.mxu0 %v2419
    %2506 = vmatmul.bf16.gmra.mxu0 %v2496
    %v2507 = vpop.f32.mrf.mxu0
    %v2508 = vadd.f32 0.0, %v2507
    %v2509 = vpop.f32.mrf.mxu0
    %2510 = vdwg.mxu0
    %s2511 = scalar_lea.vmem %s8, 20
    %v2512 = vld [vmem:[%s2511] sm:$0xf]
    %v2514 = vsel %vm2422, %v2512, 0
    %2516 = vmatpush.bf16.msra.mxu0 0
    %2517 = vmatpush.bf16.msra.mxu0 0
    %2518 = vmatpush.bf16.msra.mxu0 0
    %2519 = vmatpush.bf16.msra.mxu0 0
    %2520 = vmatpush.bf16.msra.mxu0 0
    %2521 = vmatpush.bf16.msra.mxu0 0
    %2522 = vmatpush.bf16.msra.mxu0 %v2420
    %2523 = vmatpush.bf16.msra.mxu0 %v2419
    %2524 = vmatmul.bf16.gmra.mxu0 %v2514
    %v2525 = vpop.f32.mrf.mxu0
    %v2526 = vadd.f32 0.0, %v2525
    %v2527 = vpop.f32.mrf.mxu0
    %2528 = vdwg.mxu0
    %s2529 = scalar_lea.vmem %s8, 24
    %v2530 = vld [vmem:[%s2529] sm:$0xf]
    %v2532 = vsel %vm2422, %v2530, 0
    %2534 = vmatpush.bf16.msra.mxu0 0
    %2535 = vmatpush.bf16.msra.mxu0 0
    %2536 = vmatpush.bf16.msra.mxu0 0
    %2537 = vmatpush.bf16.msra.mxu0 0
    %2538 = vmatpush.bf16.msra.mxu0 0
    %2539 = vmatpush.bf16.msra.mxu0 0
    %2540 = vmatpush.bf16.msra.mxu0 %v2420
    %2541 = vmatpush.bf16.msra.mxu0 %v2419
    %2542 = vmatmul.bf16.gmra.mxu0 %v2532
    %v2543 = vpop.f32.mrf.mxu0
    %v2544 = vadd.f32 0.0, %v2543
    %v2545 = vpop.f32.mrf.mxu0
    %2546 = vdwg.mxu0
    %s2547 = scalar_lea.vmem %s8, 28
    %v2548 = vld [vmem:[%s2547] sm:$0xf]
    %v2550 = vsel %vm2422, %v2548, 0
    %2552 = vmatpush.bf16.msra.mxu0 0
    %2553 = vmatpush.bf16.msra.mxu0 0
    %2554 = vmatpush.bf16.msra.mxu0 0
    %2555 = vmatpush.bf16.msra.mxu0 0
    %2556 = vmatpush.bf16.msra.mxu0 0
    %2557 = vmatpush.bf16.msra.mxu0 0
    %2558 = vmatpush.bf16.msra.mxu0 %v2420
    %2559 = vmatpush.bf16.msra.mxu0 %v2419
    %2560 = vmatmul.bf16.gmra.mxu0 %v2550
    %v2561 = vpop.f32.mrf.mxu0
    %v2562 = vadd.f32 0.0, %v2561
    %v2563 = vpop.f32.mrf.mxu0
    %2564 = vdwg.mxu0
    %s2565 = scalar_lea.vmem %s8, 32
    %v2566 = vld [vmem:[%s2565] sm:$0xf]
    %v2568 = vsel %vm2422, %v2566, 0
    %2570 = vmatpush.bf16.msra.mxu0 0
    %2571 = vmatpush.bf16.msra.mxu0 0
    %2572 = vmatpush.bf16.msra.mxu0 0
    %2573 = vmatpush.bf16.msra.mxu0 0
    %2574 = vmatpush.bf16.msra.mxu0 0
    %2575 = vmatpush.bf16.msra.mxu0 0
    %2576 = vmatpush.bf16.msra.mxu0 %v2420
    %2577 = vmatpush.bf16.msra.mxu0 %v2419
    %2578 = vmatmul.bf16.gmra.mxu0 %v2568
    %v2579 = vpop.f32.mrf.mxu0
    %v2580 = vadd.f32 0.0, %v2579
    %v2581 = vpop.f32.mrf.mxu0
    %2582 = vdwg.mxu0
    %s2583 = scalar_lea.vmem %s8, 36
    %v2584 = vld [vmem:[%s2583] sm:$0xf]
    %v2586 = vsel %vm2422, %v2584, 0
    %2588 = vmatpush.bf16.msra.mxu0 0
    %2589 = vmatpush.bf16.msra.mxu0 0
    %2590 = vmatpush.bf16.msra.mxu0 0
    %2591 = vmatpush.bf16.msra.mxu0 0
    %2592 = vmatpush.bf16.msra.mxu0 0
    %2593 = vmatpush.bf16.msra.mxu0 0
    %2594 = vmatpush.bf16.msra.mxu0 %v2420
    %2595 = vmatpush.bf16.msra.mxu0 %v2419
    %2596 = vmatmul.bf16.gmra.mxu0 %v2586
    %v2597 = vpop.f32.mrf.mxu0
    %v2598 = vadd.f32 0.0, %v2597
    %v2599 = vpop.f32.mrf.mxu0
    %2600 = vdwg.mxu0
    %s2601 = scalar_lea.vmem %s8, 40
    %v2602 = vld [vmem:[%s2601] sm:$0xf]
    %v2604 = vsel %vm2422, %v2602, 0
    %2606 = vmatpush.bf16.msra.mxu0 0
    %2607 = vmatpush.bf16.msra.mxu0 0
    %2608 = vmatpush.bf16.msra.mxu0 0
    %2609 = vmatpush.bf16.msra.mxu0 0
    %2610 = vmatpush.bf16.msra.mxu0 0
    %2611 = vmatpush.bf16.msra.mxu0 0
    %2612 = vmatpush.bf16.msra.mxu0 %v2420
    %2613 = vmatpush.bf16.msra.mxu0 %v2419
    %2614 = vmatmul.bf16.gmra.mxu0 %v2604
    %v2615 = vpop.f32.mrf.mxu0
    %v2616 = vadd.f32 0.0, %v2615
    %v2617 = vpop.f32.mrf.mxu0
    %2618 = vdwg.mxu0
    %s2619 = scalar_lea.vmem %s8, 44
    %v2620 = vld [vmem:[%s2619] sm:$0xf]
    %v2622 = vsel %vm2422, %v2620, 0
    %2624 = vmatpush.bf16.msra.mxu0 0
    %2625 = vmatpush.bf16.msra.mxu0 0
    %2626 = vmatpush.bf16.msra.mxu0 0
    %2627 = vmatpush.bf16.msra.mxu0 0
    %2628 = vmatpush.bf16.msra.mxu0 0
    %2629 = vmatpush.bf16.msra.mxu0 0
    %2630 = vmatpush.bf16.msra.mxu0 %v2420
    %2631 = vmatpush.bf16.msra.mxu0 %v2419
    %2632 = vmatmul.bf16.gmra.mxu0 %v2622
    %v2633 = vpop.f32.mrf.mxu0
    %v2634 = vadd.f32 0.0, %v2633
    %v2635 = vpop.f32.mrf.mxu0
    %2636 = vdwg.mxu0
    %s2637 = scalar_lea.vmem %s8, 48
    %v2638 = vld [vmem:[%s2637] sm:$0xf]
    %v2640 = vsel %vm2422, %v2638, 0
    %2642 = vmatpush.bf16.msra.mxu0 0
    %2643 = vmatpush.bf16.msra.mxu0 0
    %2644 = vmatpush.bf16.msra.mxu0 0
    %2645 = vmatpush.bf16.msra.mxu0 0
    %2646 = vmatpush.bf16.msra.mxu0 0
    %2647 = vmatpush.bf16.msra.mxu0 0
    %2648 = vmatpush.bf16.msra.mxu0 %v2420
    %2649 = vmatpush.bf16.msra.mxu0 %v2419
    %2650 = vmatmul.bf16.gmra.mxu0 %v2640
    %v2651 = vpop.f32.mrf.mxu0
    %v2652 = vadd.f32 0.0, %v2651
    %v2653 = vpop.f32.mrf.mxu0
    %2654 = vdwg.mxu0
    %s2655 = scalar_lea.vmem %s8, 52
    %v2656 = vld [vmem:[%s2655] sm:$0xf]
    %v2658 = vsel %vm2422, %v2656, 0
    %2660 = vmatpush.bf16.msra.mxu0 0
    %2661 = vmatpush.bf16.msra.mxu0 0
    %2662 = vmatpush.bf16.msra.mxu0 0
    %2663 = vmatpush.bf16.msra.mxu0 0
    %2664 = vmatpush.bf16.msra.mxu0 0
    %2665 = vmatpush.bf16.msra.mxu0 0
    %2666 = vmatpush.bf16.msra.mxu0 %v2420
    %2667 = vmatpush.bf16.msra.mxu0 %v2419
    %2668 = vmatmul.bf16.gmra.mxu0 %v2658
    %v2669 = vpop.f32.mrf.mxu0
    %v2670 = vadd.f32 0.0, %v2669
    %v2671 = vpop.f32.mrf.mxu0
    %2672 = vdwg.mxu0
    %s2673 = scalar_lea.vmem %s8, 56
    %v2674 = vld [vmem:[%s2673] sm:$0xf]
    %v2676 = vsel %vm2422, %v2674, 0
    %2678 = vmatpush.bf16.msra.mxu0 0
    %2679 = vmatpush.bf16.msra.mxu0 0
    %2680 = vmatpush.bf16.msra.mxu0 0
    %2681 = vmatpush.bf16.msra.mxu0 0
    %2682 = vmatpush.bf16.msra.mxu0 0
    %2683 = vmatpush.bf16.msra.mxu0 0
    %2684 = vmatpush.bf16.msra.mxu0 %v2420
    %2685 = vmatpush.bf16.msra.mxu0 %v2419
    %2686 = vmatmul.bf16.gmra.mxu0 %v2676
    %v2687 = vpop.f32.mrf.mxu0
    %v2688 = vadd.f32 0.0, %v2687
    %v2689 = vpop.f32.mrf.mxu0
    %2690 = vdwg.mxu0
    %s2691 = scalar_lea.vmem %s8, 60
    %v2692 = vld [vmem:[%s2691] sm:$0xf]
    %v2694 = vsel %vm2422, %v2692, 0
    %2696 = vmatpush.bf16.msra.mxu0 0
    %2697 = vmatpush.bf16.msra.mxu0 0
    %2698 = vmatpush.bf16.msra.mxu0 0
    %2699 = vmatpush.bf16.msra.mxu0 0
    %2700 = vmatpush.bf16.msra.mxu0 0
    %2701 = vmatpush.bf16.msra.mxu0 0
    %2702 = vmatpush.bf16.msra.mxu0 %v2420
    %2703 = vmatpush.bf16.msra.mxu0 %v2419
    %2704 = vmatmul.bf16.gmra.mxu0 %v2694
    %v2705 = vpop.f32.mrf.mxu0
    %v2706 = vadd.f32 0.0, %v2705
    %v2707 = vpop.f32.mrf.mxu0
    %2708 = vdwg.mxu0
    %v2709 = vpack.c.bf16 %v2436, %v2436
    %v2710 = vpack.c.bf16 %v2454, %v2454
    %v2711 = vpack.c.bf16 %v2472, %v2472
    %v2712 = vpack.c.bf16 %v2490, %v2490
    %v2713 = vpack.c.bf16 %v2508, %v2508
    %v2714 = vpack.c.bf16 %v2526, %v2526
    %v2715 = vpack.c.bf16 %v2544, %v2544
    %v2716 = vpack.c.bf16 %v2562, %v2562
    %v2717 = vpack.c.bf16 %v2580, %v2580
    %v2718 = vpack.c.bf16 %v2598, %v2598
    %v2719 = vpack.c.bf16 %v2616, %v2616
    %v2720 = vpack.c.bf16 %v2634, %v2634
    %v2721 = vpack.c.bf16 %v2652, %v2652
    %v2722 = vpack.c.bf16 %v2670, %v2670
    %v2723 = vpack.c.bf16 %v2688, %v2688
    %v2724 = vpack.c.bf16 %v2706, %v2706
    %v2725 = vld [vmem:[#allocation4] sm:$0xf]
    %v2726 = vld [vmem:[#allocation4 + $0x4] sm:$0xf]
    %v2727 = vld [vmem:[#allocation4 + $0x8] sm:$0xf]
    %v2728 = vld [vmem:[#allocation4 + $0xc] sm:$0xf]
    %v2729 = vld [vmem:[#allocation4 + $0x10] sm:$0xf]
    %v2730 = vld [vmem:[#allocation4 + $0x14] sm:$0xf]
    %v2731 = vld [vmem:[#allocation4 + $0x18] sm:$0xf]
    %v2732 = vld [vmem:[#allocation4 + $0x1c] sm:$0xf]
    %v2733 = vld [vmem:[#allocation4 + $0x20] sm:$0xf]
    %v2734 = vld [vmem:[#allocation4 + $0x24] sm:$0xf]
    %v2735 = vld [vmem:[#allocation4 + $0x28] sm:$0xf]
    %v2736 = vld [vmem:[#allocation4 + $0x2c] sm:$0xf]
    %v2737 = vld [vmem:[#allocation4 + $0x30] sm:$0xf]
    %v2738 = vld [vmem:[#allocation4 + $0x34] sm:$0xf]
    %v2739 = vld [vmem:[#allocation4 + $0x38] sm:$0xf]
    %v2740 = vld [vmem:[#allocation4 + $0x3c] sm:$0xf]
    %v2741 = vld [vmem:[#allocation4 + $0x40] sm:$0xf]
    %v2742 = vld [vmem:[#allocation4 + $0x44] sm:$0xf]
    %v2743 = vld [vmem:[#allocation4 + $0x48] sm:$0xf]
    %v2744 = vld [vmem:[#allocation4 + $0x4c] sm:$0xf]
    %v2745 = vld [vmem:[#allocation4 + $0x50] sm:$0xf]
    %v2746 = vld [vmem:[#allocation4 + $0x54] sm:$0xf]
    %v2747 = vld [vmem:[#allocation4 + $0x58] sm:$0xf]
    %v2748 = vld [vmem:[#allocation4 + $0x5c] sm:$0xf]
    %v2749 = vld [vmem:[#allocation4 + $0x60] sm:$0xf]
    %v2750 = vld [vmem:[#allocation4 + $0x64] sm:$0xf]
    %v2751 = vld [vmem:[#allocation4 + $0x68] sm:$0xf]
    %v2752 = vld [vmem:[#allocation4 + $0x6c] sm:$0xf]
    %v2753 = vld [vmem:[#allocation4 + $0x70] sm:$0xf]
    %v2754 = vld [vmem:[#allocation4 + $0x74] sm:$0xf]
    %v2755 = vld [vmem:[#allocation4 + $0x78] sm:$0xf]
    %v2756 = vld [vmem:[#allocation4 + $0x7c] sm:$0xf]
    %v2757 = vld [vmem:[#allocation4 + $0x80] sm:$0xf]
    %v2758 = vld [vmem:[#allocation4 + $0x84] sm:$0xf]
    %v2759 = vld [vmem:[#allocation4 + $0x88] sm:$0xf]
    %v2760 = vld [vmem:[#allocation4 + $0x8c] sm:$0xf]
    %v2761 = vld [vmem:[#allocation4 + $0x90] sm:$0xf]
    %v2762 = vld [vmem:[#allocation4 + $0x94] sm:$0xf]
    %v2763 = vld [vmem:[#allocation4 + $0x98] sm:$0xf]
    %v2764 = vld [vmem:[#allocation4 + $0x9c] sm:$0xf]
    %v2765 = vld [vmem:[#allocation4 + $0xa0] sm:$0xf]
    %v2766 = vld [vmem:[#allocation4 + $0xa4] sm:$0xf]
    %v2767 = vld [vmem:[#allocation4 + $0xa8] sm:$0xf]
    %v2768 = vld [vmem:[#allocation4 + $0xac] sm:$0xf]
    %v2769 = vld [vmem:[#allocation4 + $0xb0] sm:$0xf]
    %v2770 = vld [vmem:[#allocation4 + $0xb4] sm:$0xf]
    %v2771 = vld [vmem:[#allocation4 + $0xb8] sm:$0xf]
    %v2772 = vld [vmem:[#allocation4 + $0xbc] sm:$0xf]
    %v2773 = vld [vmem:[#allocation4 + $0xc0] sm:$0xf]
    %v2774 = vld [vmem:[#allocation4 + $0xc4] sm:$0xf]
    %v2775 = vld [vmem:[#allocation4 + $0xc8] sm:$0xf]
    %v2776 = vld [vmem:[#allocation4 + $0xcc] sm:$0xf]
    %v2777 = vld [vmem:[#allocation4 + $0xd0] sm:$0xf]
    %v2778 = vld [vmem:[#allocation4 + $0xd4] sm:$0xf]
    %v2779 = vld [vmem:[#allocation4 + $0xd8] sm:$0xf]
    %v2780 = vld [vmem:[#allocation4 + $0xdc] sm:$0xf]
    %v2781 = vld [vmem:[#allocation4 + $0xe0] sm:$0xf]
    %v2782 = vld [vmem:[#allocation4 + $0xe4] sm:$0xf]
    %v2783 = vld [vmem:[#allocation4 + $0xe8] sm:$0xf]
    %v2784 = vld [vmem:[#allocation4 + $0xec] sm:$0xf]
    %v2785 = vld [vmem:[#allocation4 + $0xf0] sm:$0xf]
    %v2786 = vld [vmem:[#allocation4 + $0xf4] sm:$0xf]
    %v2787 = vld [vmem:[#allocation4 + $0xf8] sm:$0xf]
    %v2788 = vld [vmem:[#allocation4 + $0xfc] sm:$0xf]
    %v2789 = vld [vmem:[#allocation4 + $0x100] sm:$0xf]
    %v2790 = vld [vmem:[#allocation4 + $0x104] sm:$0xf]
    %v2791 = vld [vmem:[#allocation4 + $0x108] sm:$0xf]
    %v2792 = vld [vmem:[#allocation4 + $0x10c] sm:$0xf]
    %v2793 = vld [vmem:[#allocation4 + $0x110] sm:$0xf]
    %v2794 = vld [vmem:[#allocation4 + $0x114] sm:$0xf]
    %v2795 = vld [vmem:[#allocation4 + $0x118] sm:$0xf]
    %v2796 = vld [vmem:[#allocation4 + $0x11c] sm:$0xf]
    %v2797 = vld [vmem:[#allocation4 + $0x120] sm:$0xf]
    %v2798 = vld [vmem:[#allocation4 + $0x124] sm:$0xf]
    %v2799 = vld [vmem:[#allocation4 + $0x128] sm:$0xf]
    %v2800 = vld [vmem:[#allocation4 + $0x12c] sm:$0xf]
    %v2801 = vld [vmem:[#allocation4 + $0x130] sm:$0xf]
    %v2802 = vld [vmem:[#allocation4 + $0x134] sm:$0xf]
    %v2803 = vld [vmem:[#allocation4 + $0x138] sm:$0xf]
    %v2804 = vld [vmem:[#allocation4 + $0x13c] sm:$0xf]
    %v2805 = vld [vmem:[#allocation4 + $0x140] sm:$0xf]
    %v2806 = vld [vmem:[#allocation4 + $0x144] sm:$0xf]
    %v2807 = vld [vmem:[#allocation4 + $0x148] sm:$0xf]
    %v2808 = vld [vmem:[#allocation4 + $0x14c] sm:$0xf]
    %v2809 = vld [vmem:[#allocation4 + $0x150] sm:$0xf]
    %v2810 = vld [vmem:[#allocation4 + $0x154] sm:$0xf]
    %v2811 = vld [vmem:[#allocation4 + $0x158] sm:$0xf]
    %v2812 = vld [vmem:[#allocation4 + $0x15c] sm:$0xf]
    %v2813 = vld [vmem:[#allocation4 + $0x160] sm:$0xf]
    %v2814 = vld [vmem:[#allocation4 + $0x164] sm:$0xf]
    %v2815 = vld [vmem:[#allocation4 + $0x168] sm:$0xf]
    %v2816 = vld [vmem:[#allocation4 + $0x16c] sm:$0xf]
    %v2817 = vld [vmem:[#allocation4 + $0x170] sm:$0xf]
    %v2818 = vld [vmem:[#allocation4 + $0x174] sm:$0xf]
    %v2819 = vld [vmem:[#allocation4 + $0x178] sm:$0xf]
    %v2820 = vld [vmem:[#allocation4 + $0x17c] sm:$0xf]
    %v2821 = vld [vmem:[#allocation4 + $0x180] sm:$0xf]
    %v2822 = vld [vmem:[#allocation4 + $0x184] sm:$0xf]
    %v2823 = vld [vmem:[#allocation4 + $0x188] sm:$0xf]
    %v2824 = vld [vmem:[#allocation4 + $0x18c] sm:$0xf]
    %v2825 = vld [vmem:[#allocation4 + $0x190] sm:$0xf]
    %v2826 = vld [vmem:[#allocation4 + $0x194] sm:$0xf]
    %v2827 = vld [vmem:[#allocation4 + $0x198] sm:$0xf]
    %v2828 = vld [vmem:[#allocation4 + $0x19c] sm:$0xf]
    %v2829 = vld [vmem:[#allocation4 + $0x1a0] sm:$0xf]
    %v2830 = vld [vmem:[#allocation4 + $0x1a4] sm:$0xf]
    %v2831 = vld [vmem:[#allocation4 + $0x1a8] sm:$0xf]
    %v2832 = vld [vmem:[#allocation4 + $0x1ac] sm:$0xf]
    %v2833 = vld [vmem:[#allocation4 + $0x1b0] sm:$0xf]
    %v2834 = vld [vmem:[#allocation4 + $0x1b4] sm:$0xf]
    %v2835 = vld [vmem:[#allocation4 + $0x1b8] sm:$0xf]
    %v2836 = vld [vmem:[#allocation4 + $0x1bc] sm:$0xf]
    %v2837 = vld [vmem:[#allocation4 + $0x1c0] sm:$0xf]
    %v2838 = vld [vmem:[#allocation4 + $0x1c4] sm:$0xf]
    %v2839 = vld [vmem:[#allocation4 + $0x1c8] sm:$0xf]
    %v2840 = vld [vmem:[#allocation4 + $0x1cc] sm:$0xf]
    %v2841 = vld [vmem:[#allocation4 + $0x1d0] sm:$0xf]
    %v2842 = vld [vmem:[#allocation4 + $0x1d4] sm:$0xf]
    %v2843 = vld [vmem:[#allocation4 + $0x1d8] sm:$0xf]
    %v2844 = vld [vmem:[#allocation4 + $0x1dc] sm:$0xf]
    %v2845 = vld [vmem:[#allocation4 + $0x1e0] sm:$0xf]
    %v2846 = vld [vmem:[#allocation4 + $0x1e4] sm:$0xf]
    %v2847 = vld [vmem:[#allocation4 + $0x1e8] sm:$0xf]
    %v2848 = vld [vmem:[#allocation4 + $0x1ec] sm:$0xf]
    %v2849 = vld [vmem:[#allocation4 + $0x1f0] sm:$0xf]
    %v2850 = vld [vmem:[#allocation4 + $0x1f4] sm:$0xf]
    %v2851 = vld [vmem:[#allocation4 + $0x1f8] sm:$0xf]
    %v2852 = vld [vmem:[#allocation4 + $0x1fc] sm:$0xf]
    %v2853 = vld [vmem:[#allocation4 + $0x200] sm:$0xf]
    %v2854 = vld [vmem:[#allocation4 + $0x204] sm:$0xf]
    %v2855 = vld [vmem:[#allocation4 + $0x208] sm:$0xf]
    %v2856 = vld [vmem:[#allocation4 + $0x20c] sm:$0xf]
    %v2857 = vld [vmem:[#allocation4 + $0x210] sm:$0xf]
    %v2858 = vld [vmem:[#allocation4 + $0x214] sm:$0xf]
    %v2859 = vld [vmem:[#allocation4 + $0x218] sm:$0xf]
    %v2860 = vld [vmem:[#allocation4 + $0x21c] sm:$0xf]
    %v2861 = vld [vmem:[#allocation4 + $0x220] sm:$0xf]
    %v2862 = vld [vmem:[#allocation4 + $0x224] sm:$0xf]
    %v2863 = vld [vmem:[#allocation4 + $0x228] sm:$0xf]
    %v2864 = vld [vmem:[#allocation4 + $0x22c] sm:$0xf]
    %v2865 = vld [vmem:[#allocation4 + $0x230] sm:$0xf]
    %v2866 = vld [vmem:[#allocation4 + $0x234] sm:$0xf]
    %v2867 = vld [vmem:[#allocation4 + $0x238] sm:$0xf]
    %v2868 = vld [vmem:[#allocation4 + $0x23c] sm:$0xf]
    %v2869 = vld [vmem:[#allocation4 + $0x240] sm:$0xf]
    %v2870 = vld [vmem:[#allocation4 + $0x244] sm:$0xf]
    %v2871 = vld [vmem:[#allocation4 + $0x248] sm:$0xf]
    %v2872 = vld [vmem:[#allocation4 + $0x24c] sm:$0xf]
    %v2873 = vld [vmem:[#allocation4 + $0x250] sm:$0xf]
    %v2874 = vld [vmem:[#allocation4 + $0x254] sm:$0xf]
    %v2875 = vld [vmem:[#allocation4 + $0x258] sm:$0xf]
    %v2876 = vld [vmem:[#allocation4 + $0x25c] sm:$0xf]
    %v2877 = vld [vmem:[#allocation4 + $0x260] sm:$0xf]
    %v2878 = vld [vmem:[#allocation4 + $0x264] sm:$0xf]
    %v2879 = vld [vmem:[#allocation4 + $0x268] sm:$0xf]
    %v2880 = vld [vmem:[#allocation4 + $0x26c] sm:$0xf]
    %v2881 = vld [vmem:[#allocation4 + $0x270] sm:$0xf]
    %v2882 = vld [vmem:[#allocation4 + $0x274] sm:$0xf]
    %v2883 = vld [vmem:[#allocation4 + $0x278] sm:$0xf]
    %v2884 = vld [vmem:[#allocation4 + $0x27c] sm:$0xf]
    %v2885 = vld [vmem:[#allocation4 + $0x280] sm:$0xf]
    %v2886 = vld [vmem:[#allocation4 + $0x284] sm:$0xf]
    %v2887 = vld [vmem:[#allocation4 + $0x288] sm:$0xf]
    %v2888 = vld [vmem:[#allocation4 + $0x28c] sm:$0xf]
    %v2889 = vld [vmem:[#allocation4 + $0x290] sm:$0xf]
    %v2890 = vld [vmem:[#allocation4 + $0x294] sm:$0xf]
    %v2891 = vld [vmem:[#allocation4 + $0x298] sm:$0xf]
    %v2892 = vld [vmem:[#allocation4 + $0x29c] sm:$0xf]
    %v2893 = vld [vmem:[#allocation4 + $0x2a0] sm:$0xf]
    %v2894 = vld [vmem:[#allocation4 + $0x2a4] sm:$0xf]
    %v2895 = vld [vmem:[#allocation4 + $0x2a8] sm:$0xf]
    %v2896 = vld [vmem:[#allocation4 + $0x2ac] sm:$0xf]
    %v2897 = vld [vmem:[#allocation4 + $0x2b0] sm:$0xf]
    %v2898 = vld [vmem:[#allocation4 + $0x2b4] sm:$0xf]
    %v2899 = vld [vmem:[#allocation4 + $0x2b8] sm:$0xf]
    %v2900 = vld [vmem:[#allocation4 + $0x2bc] sm:$0xf]
    %v2901 = vld [vmem:[#allocation4 + $0x2c0] sm:$0xf]
    %v2902 = vld [vmem:[#allocation4 + $0x2c4] sm:$0xf]
    %v2903 = vld [vmem:[#allocation4 + $0x2c8] sm:$0xf]
    %v2904 = vld [vmem:[#allocation4 + $0x2cc] sm:$0xf]
    %v2905 = vld [vmem:[#allocation4 + $0x2d0] sm:$0xf]
    %v2906 = vld [vmem:[#allocation4 + $0x2d4] sm:$0xf]
    %v2907 = vld [vmem:[#allocation4 + $0x2d8] sm:$0xf]
    %v2908 = vld [vmem:[#allocation4 + $0x2dc] sm:$0xf]
    %v2909 = vld [vmem:[#allocation4 + $0x2e0] sm:$0xf]
    %v2910 = vld [vmem:[#allocation4 + $0x2e4] sm:$0xf]
    %v2911 = vld [vmem:[#allocation4 + $0x2e8] sm:$0xf]
    %v2912 = vld [vmem:[#allocation4 + $0x2ec] sm:$0xf]
    %v2913 = vld [vmem:[#allocation4 + $0x2f0] sm:$0xf]
    %v2914 = vld [vmem:[#allocation4 + $0x2f4] sm:$0xf]
    %v2915 = vld [vmem:[#allocation4 + $0x2f8] sm:$0xf]
    %v2916 = vld [vmem:[#allocation4 + $0x2fc] sm:$0xf]
    %v2917 = vld [vmem:[#allocation4 + $0x300] sm:$0xf]
    %v2918 = vld [vmem:[#allocation4 + $0x304] sm:$0xf]
    %v2919 = vld [vmem:[#allocation4 + $0x308] sm:$0xf]
    %v2920 = vld [vmem:[#allocation4 + $0x30c] sm:$0xf]
    %v2921 = vld [vmem:[#allocation4 + $0x310] sm:$0xf]
    %v2922 = vld [vmem:[#allocation4 + $0x314] sm:$0xf]
    %v2923 = vld [vmem:[#allocation4 + $0x318] sm:$0xf]
    %v2924 = vld [vmem:[#allocation4 + $0x31c] sm:$0xf]
    %v2925 = vld [vmem:[#allocation4 + $0x320] sm:$0xf]
    %v2926 = vld [vmem:[#allocation4 + $0x324] sm:$0xf]
    %v2927 = vld [vmem:[#allocation4 + $0x328] sm:$0xf]
    %v2928 = vld [vmem:[#allocation4 + $0x32c] sm:$0xf]
    %v2929 = vld [vmem:[#allocation4 + $0x330] sm:$0xf]
    %v2930 = vld [vmem:[#allocation4 + $0x334] sm:$0xf]
    %v2931 = vld [vmem:[#allocation4 + $0x338] sm:$0xf]
    %v2932 = vld [vmem:[#allocation4 + $0x33c] sm:$0xf]
    %v2933 = vld [vmem:[#allocation4 + $0x340] sm:$0xf]
    %v2934 = vld [vmem:[#allocation4 + $0x344] sm:$0xf]
    %v2935 = vld [vmem:[#allocation4 + $0x348] sm:$0xf]
    %v2936 = vld [vmem:[#allocation4 + $0x34c] sm:$0xf]
    %v2937 = vld [vmem:[#allocation4 + $0x350] sm:$0xf]
    %v2938 = vld [vmem:[#allocation4 + $0x354] sm:$0xf]
    %v2939 = vld [vmem:[#allocation4 + $0x358] sm:$0xf]
    %v2940 = vld [vmem:[#allocation4 + $0x35c] sm:$0xf]
    %v2941 = vld [vmem:[#allocation4 + $0x360] sm:$0xf]
    %v2942 = vld [vmem:[#allocation4 + $0x364] sm:$0xf]
    %v2943 = vld [vmem:[#allocation4 + $0x368] sm:$0xf]
    %v2944 = vld [vmem:[#allocation4 + $0x36c] sm:$0xf]
    %v2945 = vld [vmem:[#allocation4 + $0x370] sm:$0xf]
    %v2946 = vld [vmem:[#allocation4 + $0x374] sm:$0xf]
    %v2947 = vld [vmem:[#allocation4 + $0x378] sm:$0xf]
    %v2948 = vld [vmem:[#allocation4 + $0x37c] sm:$0xf]
    %v2949 = vld [vmem:[#allocation4 + $0x380] sm:$0xf]
    %v2950 = vld [vmem:[#allocation4 + $0x384] sm:$0xf]
    %v2951 = vld [vmem:[#allocation4 + $0x388] sm:$0xf]
    %v2952 = vld [vmem:[#allocation4 + $0x38c] sm:$0xf]
    %v2953 = vld [vmem:[#allocation4 + $0x390] sm:$0xf]
    %v2954 = vld [vmem:[#allocation4 + $0x394] sm:$0xf]
    %v2955 = vld [vmem:[#allocation4 + $0x398] sm:$0xf]
    %v2956 = vld [vmem:[#allocation4 + $0x39c] sm:$0xf]
    %v2957 = vld [vmem:[#allocation4 + $0x3a0] sm:$0xf]
    %v2958 = vld [vmem:[#allocation4 + $0x3a4] sm:$0xf]
    %v2959 = vld [vmem:[#allocation4 + $0x3a8] sm:$0xf]
    %v2960 = vld [vmem:[#allocation4 + $0x3ac] sm:$0xf]
    %v2961 = vld [vmem:[#allocation4 + $0x3b0] sm:$0xf]
    %v2962 = vld [vmem:[#allocation4 + $0x3b4] sm:$0xf]
    %v2963 = vld [vmem:[#allocation4 + $0x3b8] sm:$0xf]
    %v2964 = vld [vmem:[#allocation4 + $0x3bc] sm:$0xf]
    %v2965 = vld [vmem:[#allocation4 + $0x3c0] sm:$0xf]
    %v2966 = vld [vmem:[#allocation4 + $0x3c4] sm:$0xf]
    %v2967 = vld [vmem:[#allocation4 + $0x3c8] sm:$0xf]
    %v2968 = vld [vmem:[#allocation4 + $0x3cc] sm:$0xf]
    %v2969 = vld [vmem:[#allocation4 + $0x3d0] sm:$0xf]
    %v2970 = vld [vmem:[#allocation4 + $0x3d4] sm:$0xf]
    %v2971 = vld [vmem:[#allocation4 + $0x3d8] sm:$0xf]
    %v2972 = vld [vmem:[#allocation4 + $0x3dc] sm:$0xf]
    %v2973 = vld [vmem:[#allocation4 + $0x3e0] sm:$0xf]
    %v2974 = vld [vmem:[#allocation4 + $0x3e4] sm:$0xf]
    %v2975 = vld [vmem:[#allocation4 + $0x3e8] sm:$0xf]
    %v2976 = vld [vmem:[#allocation4 + $0x3ec] sm:$0xf]
    %v2977 = vld [vmem:[#allocation4 + $0x3f0] sm:$0xf]
    %v2978 = vld [vmem:[#allocation4 + $0x3f4] sm:$0xf]
    %v2979 = vld [vmem:[#allocation4 + $0x3f8] sm:$0xf]
    %v2980 = vld [vmem:[#allocation4 + $0x3fc] sm:$0xf]
    %v3237 = vunpack.c.l.b16 %v2725
    %v3238 = vunpack.c.l.b16 %v2726
    %v3239 = vunpack.c.l.b16 %v2727
    %v3240 = vunpack.c.l.b16 %v2728
    %v3241 = vunpack.c.l.b16 %v2729
    %v3242 = vunpack.c.l.b16 %v2730
    %v3243 = vunpack.c.l.b16 %v2731
    %v3244 = vunpack.c.l.b16 %v2732
    %v3245 = vunpack.c.l.b16 %v2733
    %v3246 = vunpack.c.l.b16 %v2734
    %v3247 = vunpack.c.l.b16 %v2735
    %v3248 = vunpack.c.l.b16 %v2736
    %v3249 = vunpack.c.l.b16 %v2737
    %v3250 = vunpack.c.l.b16 %v2738
    %v3251 = vunpack.c.l.b16 %v2739
    %v3252 = vunpack.c.l.b16 %v2740
    %v3253 = vunpack.c.l.b16 %v2741
    %v3254 = vunpack.c.l.b16 %v2742
    %v3255 = vunpack.c.l.b16 %v2743
    %v3256 = vunpack.c.l.b16 %v2744
    %v3257 = vunpack.c.l.b16 %v2745
    %v3258 = vunpack.c.l.b16 %v2746
    %v3259 = vunpack.c.l.b16 %v2747
    %v3260 = vunpack.c.l.b16 %v2748
    %v3261 = vunpack.c.l.b16 %v2749
    %v3262 = vunpack.c.l.b16 %v2750
    %v3263 = vunpack.c.l.b16 %v2751
    %v3264 = vunpack.c.l.b16 %v2752
    %v3265 = vunpack.c.l.b16 %v2753
    %v3266 = vunpack.c.l.b16 %v2754
    %v3267 = vunpack.c.l.b16 %v2755
    %v3268 = vunpack.c.l.b16 %v2756
    %v3269 = vunpack.c.l.b16 %v2757
    %v3270 = vunpack.c.l.b16 %v2758
    %v3271 = vunpack.c.l.b16 %v2759
    %v3272 = vunpack.c.l.b16 %v2760
    %v3273 = vunpack.c.l.b16 %v2761
    %v3274 = vunpack.c.l.b16 %v2762
    %v3275 = vunpack.c.l.b16 %v2763
    %v3276 = vunpack.c.l.b16 %v2764
    %v3277 = vunpack.c.l.b16 %v2765
    %v3278 = vunpack.c.l.b16 %v2766
    %v3279 = vunpack.c.l.b16 %v2767
    %v3280 = vunpack.c.l.b16 %v2768
    %v3281 = vunpack.c.l.b16 %v2769
    %v3282 = vunpack.c.l.b16 %v2770
    %v3283 = vunpack.c.l.b16 %v2771
    %v3284 = vunpack.c.l.b16 %v2772
    %v3285 = vunpack.c.l.b16 %v2773
    %v3286 = vunpack.c.l.b16 %v2774
    %v3287 = vunpack.c.l.b16 %v2775
    %v3288 = vunpack.c.l.b16 %v2776
    %v3289 = vunpack.c.l.b16 %v2777
    %v3290 = vunpack.c.l.b16 %v2778
    %v3291 = vunpack.c.l.b16 %v2779
    %v3292 = vunpack.c.l.b16 %v2780
    %v3293 = vunpack.c.l.b16 %v2781
    %v3294 = vunpack.c.l.b16 %v2782
    %v3295 = vunpack.c.l.b16 %v2783
    %v3296 = vunpack.c.l.b16 %v2784
    %v3297 = vunpack.c.l.b16 %v2785
    %v3298 = vunpack.c.l.b16 %v2786
    %v3299 = vunpack.c.l.b16 %v2787
    %v3300 = vunpack.c.l.b16 %v2788
    %v3301 = vunpack.c.l.b16 %v2789
    %v3302 = vunpack.c.l.b16 %v2790
    %v3303 = vunpack.c.l.b16 %v2791
    %v3304 = vunpack.c.l.b16 %v2792
    %v3305 = vunpack.c.l.b16 %v2793
    %v3306 = vunpack.c.l.b16 %v2794
    %v3307 = vunpack.c.l.b16 %v2795
    %v3308 = vunpack.c.l.b16 %v2796
    %v3309 = vunpack.c.l.b16 %v2797
    %v3310 = vunpack.c.l.b16 %v2798
    %v3311 = vunpack.c.l.b16 %v2799
    %v3312 = vunpack.c.l.b16 %v2800
    %v3313 = vunpack.c.l.b16 %v2801
    %v3314 = vunpack.c.l.b16 %v2802
    %v3315 = vunpack.c.l.b16 %v2803
    %v3316 = vunpack.c.l.b16 %v2804
    %v3317 = vunpack.c.l.b16 %v2805
    %v3318 = vunpack.c.l.b16 %v2806
    %v3319 = vunpack.c.l.b16 %v2807
    %v3320 = vunpack.c.l.b16 %v2808
    %v3321 = vunpack.c.l.b16 %v2809
    %v3322 = vunpack.c.l.b16 %v2810
    %v3323 = vunpack.c.l.b16 %v2811
    %v3324 = vunpack.c.l.b16 %v2812
    %v3325 = vunpack.c.l.b16 %v2813
    %v3326 = vunpack.c.l.b16 %v2814
    %v3327 = vunpack.c.l.b16 %v2815
    %v3328 = vunpack.c.l.b16 %v2816
    %v3329 = vunpack.c.l.b16 %v2817
    %v3330 = vunpack.c.l.b16 %v2818
    %v3331 = vunpack.c.l.b16 %v2819
    %v3332 = vunpack.c.l.b16 %v2820
    %v3333 = vunpack.c.l.b16 %v2821
    %v3334 = vunpack.c.l.b16 %v2822
    %v3335 = vunpack.c.l.b16 %v2823
    %v3336 = vunpack.c.l.b16 %v2824
    %v3337 = vunpack.c.l.b16 %v2825
    %v3338 = vunpack.c.l.b16 %v2826
    %v3339 = vunpack.c.l.b16 %v2827
    %v3340 = vunpack.c.l.b16 %v2828
    %v3341 = vunpack.c.l.b16 %v2829
    %v3342 = vunpack.c.l.b16 %v2830
    %v3343 = vunpack.c.l.b16 %v2831
    %v3344 = vunpack.c.l.b16 %v2832
    %v3345 = vunpack.c.l.b16 %v2833
    %v3346 = vunpack.c.l.b16 %v2834
    %v3347 = vunpack.c.l.b16 %v2835
    %v3348 = vunpack.c.l.b16 %v2836
    %v3349 = vunpack.c.l.b16 %v2837
    %v3350 = vunpack.c.l.b16 %v2838
    %v3351 = vunpack.c.l.b16 %v2839
    %v3352 = vunpack.c.l.b16 %v2840
    %v3353 = vunpack.c.l.b16 %v2841
    %v3354 = vunpack.c.l.b16 %v2842
    %v3355 = vunpack.c.l.b16 %v2843
    %v3356 = vunpack.c.l.b16 %v2844
    %v3357 = vunpack.c.l.b16 %v2845
    %v3358 = vunpack.c.l.b16 %v2846
    %v3359 = vunpack.c.l.b16 %v2847
    %v3360 = vunpack.c.l.b16 %v2848
    %v3361 = vunpack.c.l.b16 %v2849
    %v3362 = vunpack.c.l.b16 %v2850
    %v3363 = vunpack.c.l.b16 %v2851
    %v3364 = vunpack.c.l.b16 %v2852
    %v3365 = vunpack.c.l.b16 %v2853
    %v3366 = vunpack.c.l.b16 %v2854
    %v3367 = vunpack.c.l.b16 %v2855
    %v3368 = vunpack.c.l.b16 %v2856
    %v3369 = vunpack.c.l.b16 %v2857
    %v3370 = vunpack.c.l.b16 %v2858
    %v3371 = vunpack.c.l.b16 %v2859
    %v3372 = vunpack.c.l.b16 %v2860
    %v3373 = vunpack.c.l.b16 %v2861
    %v3374 = vunpack.c.l.b16 %v2862
    %v3375 = vunpack.c.l.b16 %v2863
    %v3376 = vunpack.c.l.b16 %v2864
    %v3377 = vunpack.c.l.b16 %v2865
    %v3378 = vunpack.c.l.b16 %v2866
    %v3379 = vunpack.c.l.b16 %v2867
    %v3380 = vunpack.c.l.b16 %v2868
    %v3381 = vunpack.c.l.b16 %v2869
    %v3382 = vunpack.c.l.b16 %v2870
    %v3383 = vunpack.c.l.b16 %v2871
    %v3384 = vunpack.c.l.b16 %v2872
    %v3385 = vunpack.c.l.b16 %v2873
    %v3386 = vunpack.c.l.b16 %v2874
    %v3387 = vunpack.c.l.b16 %v2875
    %v3388 = vunpack.c.l.b16 %v2876
    %v3389 = vunpack.c.l.b16 %v2877
    %v3390 = vunpack.c.l.b16 %v2878
    %v3391 = vunpack.c.l.b16 %v2879
    %v3392 = vunpack.c.l.b16 %v2880
    %v3393 = vunpack.c.l.b16 %v2881
    %v3394 = vunpack.c.l.b16 %v2882
    %v3395 = vunpack.c.l.b16 %v2883
    %v3396 = vunpack.c.l.b16 %v2884
    %v3397 = vunpack.c.l.b16 %v2885
    %v3398 = vunpack.c.l.b16 %v2886
    %v3399 = vunpack.c.l.b16 %v2887
    %v3400 = vunpack.c.l.b16 %v2888
    %v3401 = vunpack.c.l.b16 %v2889
    %v3402 = vunpack.c.l.b16 %v2890
    %v3403 = vunpack.c.l.b16 %v2891
    %v3404 = vunpack.c.l.b16 %v2892
    %v3405 = vunpack.c.l.b16 %v2893
    %v3406 = vunpack.c.l.b16 %v2894
    %v3407 = vunpack.c.l.b16 %v2895
    %v3408 = vunpack.c.l.b16 %v2896
    %v3409 = vunpack.c.l.b16 %v2897
    %v3410 = vunpack.c.l.b16 %v2898
    %v3411 = vunpack.c.l.b16 %v2899
    %v3412 = vunpack.c.l.b16 %v2900
    %v3413 = vunpack.c.l.b16 %v2901
    %v3414 = vunpack.c.l.b16 %v2902
    %v3415 = vunpack.c.l.b16 %v2903
    %v3416 = vunpack.c.l.b16 %v2904
    %v3417 = vunpack.c.l.b16 %v2905
    %v3418 = vunpack.c.l.b16 %v2906
    %v3419 = vunpack.c.l.b16 %v2907
    %v3420 = vunpack.c.l.b16 %v2908
    %v3421 = vunpack.c.l.b16 %v2909
    %v3422 = vunpack.c.l.b16 %v2910
    %v3423 = vunpack.c.l.b16 %v2911
    %v3424 = vunpack.c.l.b16 %v2912
    %v3425 = vunpack.c.l.b16 %v2913
    %v3426 = vunpack.c.l.b16 %v2914
    %v3427 = vunpack.c.l.b16 %v2915
    %v3428 = vunpack.c.l.b16 %v2916
    %v3429 = vunpack.c.l.b16 %v2917
    %v3430 = vunpack.c.l.b16 %v2918
    %v3431 = vunpack.c.l.b16 %v2919
    %v3432 = vunpack.c.l.b16 %v2920
    %v3433 = vunpack.c.l.b16 %v2921
    %v3434 = vunpack.c.l.b16 %v2922
    %v3435 = vunpack.c.l.b16 %v2923
    %v3436 = vunpack.c.l.b16 %v2924
    %v3437 = vunpack.c.l.b16 %v2925
    %v3438 = vunpack.c.l.b16 %v2926
    %v3439 = vunpack.c.l.b16 %v2927
    %v3440 = vunpack.c.l.b16 %v2928
    %v3441 = vunpack.c.l.b16 %v2929
    %v3442 = vunpack.c.l.b16 %v2930
    %v3443 = vunpack.c.l.b16 %v2931
    %v3444 = vunpack.c.l.b16 %v2932
    %v3445 = vunpack.c.l.b16 %v2933
    %v3446 = vunpack.c.l.b16 %v2934
    %v3447 = vunpack.c.l.b16 %v2935
    %v3448 = vunpack.c.l.b16 %v2936
    %v3449 = vunpack.c.l.b16 %v2937
    %v3450 = vunpack.c.l.b16 %v2938
    %v3451 = vunpack.c.l.b16 %v2939
    %v3452 = vunpack.c.l.b16 %v2940
    %v3453 = vunpack.c.l.b16 %v2941
    %v3454 = vunpack.c.l.b16 %v2942
    %v3455 = vunpack.c.l.b16 %v2943
    %v3456 = vunpack.c.l.b16 %v2944
    %v3457 = vunpack.c.l.b16 %v2945
    %v3458 = vunpack.c.l.b16 %v2946
    %v3459 = vunpack.c.l.b16 %v2947
    %v3460 = vunpack.c.l.b16 %v2948
    %v3461 = vunpack.c.l.b16 %v2949
    %v3462 = vunpack.c.l.b16 %v2950
    %v3463 = vunpack.c.l.b16 %v2951
    %v3464 = vunpack.c.l.b16 %v2952
    %v3465 = vunpack.c.l.b16 %v2953
    %v3466 = vunpack.c.l.b16 %v2954
    %v3467 = vunpack.c.l.b16 %v2955
    %v3468 = vunpack.c.l.b16 %v2956
    %v3469 = vunpack.c.l.b16 %v2957
    %v3470 = vunpack.c.l.b16 %v2958
    %v3471 = vunpack.c.l.b16 %v2959
    %v3472 = vunpack.c.l.b16 %v2960
    %v3473 = vunpack.c.l.b16 %v2961
    %v3474 = vunpack.c.l.b16 %v2962
    %v3475 = vunpack.c.l.b16 %v2963
    %v3476 = vunpack.c.l.b16 %v2964
    %v3477 = vunpack.c.l.b16 %v2965
    %v3478 = vunpack.c.l.b16 %v2966
    %v3479 = vunpack.c.l.b16 %v2967
    %v3480 = vunpack.c.l.b16 %v2968
    %v3481 = vunpack.c.l.b16 %v2969
    %v3482 = vunpack.c.l.b16 %v2970
    %v3483 = vunpack.c.l.b16 %v2971
    %v3484 = vunpack.c.l.b16 %v2972
    %v3485 = vunpack.c.l.b16 %v2973
    %v3486 = vunpack.c.l.b16 %v2974
    %v3487 = vunpack.c.l.b16 %v2975
    %v3488 = vunpack.c.l.b16 %v2976
    %v3489 = vunpack.c.l.b16 %v2977
    %v3490 = vunpack.c.l.b16 %v2978
    %v3491 = vunpack.c.l.b16 %v2979
    %v3492 = vunpack.c.l.b16 %v2980
    %v3493 = vpack.c.b16 %v3238, %v3237
    %v3494 = vpack.c.b16 %v3240, %v3239
    %v3495 = vpack.c.b16 %v3242, %v3241
    %v3496 = vpack.c.b16 %v3244, %v3243
    %v3497 = vpack.c.b16 %v3246, %v3245
    %v3498 = vpack.c.b16 %v3248, %v3247
    %v3499 = vpack.c.b16 %v3250, %v3249
    %v3500 = vpack.c.b16 %v3252, %v3251
    %v3501 = vpack.c.b16 %v3254, %v3253
    %v3502 = vpack.c.b16 %v3256, %v3255
    %v3503 = vpack.c.b16 %v3258, %v3257
    %v3504 = vpack.c.b16 %v3260, %v3259
    %v3505 = vpack.c.b16 %v3262, %v3261
    %v3506 = vpack.c.b16 %v3264, %v3263
    %v3507 = vpack.c.b16 %v3266, %v3265
    %v3508 = vpack.c.b16 %v3268, %v3267
    %v3509 = vpack.c.b16 %v3270, %v3269
    %v3510 = vpack.c.b16 %v3272, %v3271
    %v3511 = vpack.c.b16 %v3274, %v3273
    %v3512 = vpack.c.b16 %v3276, %v3275
    %v3513 = vpack.c.b16 %v3278, %v3277
    %v3514 = vpack.c.b16 %v3280, %v3279
    %v3515 = vpack.c.b16 %v3282, %v3281
    %v3516 = vpack.c.b16 %v3284, %v3283
    %v3517 = vpack.c.b16 %v3286, %v3285
    %v3518 = vpack.c.b16 %v3288, %v3287
    %v3519 = vpack.c.b16 %v3290, %v3289
    %v3520 = vpack.c.b16 %v3292, %v3291
    %v3521 = vpack.c.b16 %v3294, %v3293
    %v3522 = vpack.c.b16 %v3296, %v3295
    %v3523 = vpack.c.b16 %v3298, %v3297
    %v3524 = vpack.c.b16 %v3300, %v3299
    %v3525 = vpack.c.b16 %v3302, %v3301
    %v3526 = vpack.c.b16 %v3304, %v3303
    %v3527 = vpack.c.b16 %v3306, %v3305
    %v3528 = vpack.c.b16 %v3308, %v3307
    %v3529 = vpack.c.b16 %v3310, %v3309
    %v3530 = vpack.c.b16 %v3312, %v3311
    %v3531 = vpack.c.b16 %v3314, %v3313
    %v3532 = vpack.c.b16 %v3316, %v3315
    %v3533 = vpack.c.b16 %v3318, %v3317
    %v3534 = vpack.c.b16 %v3320, %v3319
    %v3535 = vpack.c.b16 %v3322, %v3321
    %v3536 = vpack.c.b16 %v3324, %v3323
    %v3537 = vpack.c.b16 %v3326, %v3325
    %v3538 = vpack.c.b16 %v3328, %v3327
    %v3539 = vpack.c.b16 %v3330, %v3329
    %v3540 = vpack.c.b16 %v3332, %v3331
    %v3541 = vpack.c.b16 %v3334, %v3333
    %v3542 = vpack.c.b16 %v3336, %v3335
    %v3543 = vpack.c.b16 %v3338, %v3337
    %v3544 = vpack.c.b16 %v3340, %v3339
    %v3545 = vpack.c.b16 %v3342, %v3341
    %v3546 = vpack.c.b16 %v3344, %v3343
    %v3547 = vpack.c.b16 %v3346, %v3345
    %v3548 = vpack.c.b16 %v3348, %v3347
    %v3549 = vpack.c.b16 %v3350, %v3349
    %v3550 = vpack.c.b16 %v3352, %v3351
    %v3551 = vpack.c.b16 %v3354, %v3353
    %v3552 = vpack.c.b16 %v3356, %v3355
    %v3553 = vpack.c.b16 %v3358, %v3357
    %v3554 = vpack.c.b16 %v3360, %v3359
    %v3555 = vpack.c.b16 %v3362, %v3361
    %v3556 = vpack.c.b16 %v3364, %v3363
    %v3557 = vpack.c.b16 %v3366, %v3365
    %v3558 = vpack.c.b16 %v3368, %v3367
    %v3559 = vpack.c.b16 %v3370, %v3369
    %v3560 = vpack.c.b16 %v3372, %v3371
    %v3561 = vpack.c.b16 %v3374, %v3373
    %v3562 = vpack.c.b16 %v3376, %v3375
    %v3563 = vpack.c.b16 %v3378, %v3377
    %v3564 = vpack.c.b16 %v3380, %v3379
    %v3565 = vpack.c.b16 %v3382, %v3381
    %v3566 = vpack.c.b16 %v3384, %v3383
    %v3567 = vpack.c.b16 %v3386, %v3385
    %v3568 = vpack.c.b16 %v3388, %v3387
    %v3569 = vpack.c.b16 %v3390, %v3389
    %v3570 = vpack.c.b16 %v3392, %v3391
    %v3571 = vpack.c.b16 %v3394, %v3393
    %v3572 = vpack.c.b16 %v3396, %v3395
    %v3573 = vpack.c.b16 %v3398, %v3397
    %v3574 = vpack.c.b16 %v3400, %v3399
    %v3575 = vpack.c.b16 %v3402, %v3401
    %v3576 = vpack.c.b16 %v3404, %v3403
    %v3577 = vpack.c.b16 %v3406, %v3405
    %v3578 = vpack.c.b16 %v3408, %v3407
    %v3579 = vpack.c.b16 %v3410, %v3409
    %v3580 = vpack.c.b16 %v3412, %v3411
    %v3581 = vpack.c.b16 %v3414, %v3413
    %v3582 = vpack.c.b16 %v3416, %v3415
    %v3583 = vpack.c.b16 %v3418, %v3417
    %v3584 = vpack.c.b16 %v3420, %v3419
    %v3585 = vpack.c.b16 %v3422, %v3421
    %v3586 = vpack.c.b16 %v3424, %v3423
    %v3587 = vpack.c.b16 %v3426, %v3425
    %v3588 = vpack.c.b16 %v3428, %v3427
    %v3589 = vpack.c.b16 %v3430, %v3429
    %v3590 = vpack.c.b16 %v3432, %v3431
    %v3591 = vpack.c.b16 %v3434, %v3433
    %v3592 = vpack.c.b16 %v3436, %v3435
    %v3593 = vpack.c.b16 %v3438, %v3437
    %v3594 = vpack.c.b16 %v3440, %v3439
    %v3595 = vpack.c.b16 %v3442, %v3441
    %v3596 = vpack.c.b16 %v3444, %v3443
    %v3597 = vpack.c.b16 %v3446, %v3445
    %v3598 = vpack.c.b16 %v3448, %v3447
    %v3599 = vpack.c.b16 %v3450, %v3449
    %v3600 = vpack.c.b16 %v3452, %v3451
    %v3601 = vpack.c.b16 %v3454, %v3453
    %v3602 = vpack.c.b16 %v3456, %v3455
    %v3603 = vpack.c.b16 %v3458, %v3457
    %v3604 = vpack.c.b16 %v3460, %v3459
    %v3605 = vpack.c.b16 %v3462, %v3461
    %v3606 = vpack.c.b16 %v3464, %v3463
    %v3607 = vpack.c.b16 %v3466, %v3465
    %v3608 = vpack.c.b16 %v3468, %v3467
    %v3609 = vpack.c.b16 %v3470, %v3469
    %v3610 = vpack.c.b16 %v3472, %v3471
    %v3611 = vpack.c.b16 %v3474, %v3473
    %v3612 = vpack.c.b16 %v3476, %v3475
    %v3613 = vpack.c.b16 %v3478, %v3477
    %v3614 = vpack.c.b16 %v3480, %v3479
    %v3615 = vpack.c.b16 %v3482, %v3481
    %v3616 = vpack.c.b16 %v3484, %v3483
    %v3617 = vpack.c.b16 %v3486, %v3485
    %v3618 = vpack.c.b16 %v3488, %v3487
    %v3619 = vpack.c.b16 %v3490, %v3489
    %v3620 = vpack.c.b16 %v3492, %v3491
    %3749 = vmatpush.bf16.msra.mxu0 %v3500
    %3750 = vmatpush.bf16.msra.mxu0 %v3499
    %3751 = vmatpush.bf16.msra.mxu0 %v3498
    %3752 = vmatpush.bf16.msra.mxu0 %v3497
    %3753 = vmatpush.bf16.msra.mxu0 %v3496
    %3754 = vmatpush.bf16.msra.mxu0 %v3495
    %3755 = vmatpush.bf16.msra.mxu0 %v3494
    %3756 = vmatpush.bf16.msra.mxu0 %v3493
    %3757 = vmatmul.bf16.gmra.mxu0 %v2709
    %v3758 = vpop.f32.mrf.mxu0
    %v3759 = vadd.f32 0.0, %v3758
    %v3760 = vpop.f32.mrf.mxu0
    %3761 = vdwg.mxu0
    %3762 = vmatpush.bf16.msra.mxu0 %v3508
    %3763 = vmatpush.bf16.msra.mxu0 %v3507
    %3764 = vmatpush.bf16.msra.mxu0 %v3506
    %3765 = vmatpush.bf16.msra.mxu0 %v3505
    %3766 = vmatpush.bf16.msra.mxu0 %v3504
    %3767 = vmatpush.bf16.msra.mxu0 %v3503
    %3768 = vmatpush.bf16.msra.mxu0 %v3502
    %3769 = vmatpush.bf16.msra.mxu0 %v3501
    %3770 = vmatmul.bf16.gmra.mxu0 %v2710
    %v3771 = vpop.f32.mrf.mxu0
    %v3772 = vadd.f32 %v3759, %v3771
    %v3773 = vpop.f32.mrf.mxu0
    %3774 = vdwg.mxu0
    %3775 = vmatpush.bf16.msra.mxu0 %v3516
    %3776 = vmatpush.bf16.msra.mxu0 %v3515
    %3777 = vmatpush.bf16.msra.mxu0 %v3514
    %3778 = vmatpush.bf16.msra.mxu0 %v3513
    %3779 = vmatpush.bf16.msra.mxu0 %v3512
    %3780 = vmatpush.bf16.msra.mxu0 %v3511
    %3781 = vmatpush.bf16.msra.mxu0 %v3510
    %3782 = vmatpush.bf16.msra.mxu0 %v3509
    %3783 = vmatmul.bf16.gmra.mxu0 %v2711
    %v3784 = vpop.f32.mrf.mxu0
    %v3785 = vadd.f32 %v3772, %v3784
    %v3786 = vpop.f32.mrf.mxu0
    %3787 = vdwg.mxu0
    %3788 = vmatpush.bf16.msra.mxu0 %v3524
    %3789 = vmatpush.bf16.msra.mxu0 %v3523
    %3790 = vmatpush.bf16.msra.mxu0 %v3522
    %3791 = vmatpush.bf16.msra.mxu0 %v3521
    %3792 = vmatpush.bf16.msra.mxu0 %v3520
    %3793 = vmatpush.bf16.msra.mxu0 %v3519
    %3794 = vmatpush.bf16.msra.mxu0 %v3518
    %3795 = vmatpush.bf16.msra.mxu0 %v3517
    %3796 = vmatmul.bf16.gmra.mxu0 %v2712
    %v3797 = vpop.f32.mrf.mxu0
    %v3798 = vadd.f32 %v3785, %v3797
    %v3799 = vpop.f32.mrf.mxu0
    %3800 = vdwg.mxu0
    %3801 = vmatpush.bf16.msra.mxu0 %v3532
    %3802 = vmatpush.bf16.msra.mxu0 %v3531
    %3803 = vmatpush.bf16.msra.mxu0 %v3530
    %3804 = vmatpush.bf16.msra.mxu0 %v3529
    %3805 = vmatpush.bf16.msra.mxu0 %v3528
    %3806 = vmatpush.bf16.msra.mxu0 %v3527
    %3807 = vmatpush.bf16.msra.mxu0 %v3526
    %3808 = vmatpush.bf16.msra.mxu0 %v3525
    %3809 = vmatmul.bf16.gmra.mxu0 %v2713
    %v3810 = vpop.f32.mrf.mxu0
    %v3811 = vadd.f32 %v3798, %v3810
    %v3812 = vpop.f32.mrf.mxu0
    %3813 = vdwg.mxu0
    %3814 = vmatpush.bf16.msra.mxu0 %v3540
    %3815 = vmatpush.bf16.msra.mxu0 %v3539
    %3816 = vmatpush.bf16.msra.mxu0 %v3538
    %3817 = vmatpush.bf16.msra.mxu0 %v3537
    %3818 = vmatpush.bf16.msra.mxu0 %v3536
    %3819 = vmatpush.bf16.msra.mxu0 %v3535
    %3820 = vmatpush.bf16.msra.mxu0 %v3534
    %3821 = vmatpush.bf16.msra.mxu0 %v3533
    %3822 = vmatmul.bf16.gmra.mxu0 %v2714
    %v3823 = vpop.f32.mrf.mxu0
    %v3824 = vadd.f32 %v3811, %v3823
    %v3825 = vpop.f32.mrf.mxu0
    %3826 = vdwg.mxu0
    %3827 = vmatpush.bf16.msra.mxu0 %v3548
    %3828 = vmatpush.bf16.msra.mxu0 %v3547
    %3829 = vmatpush.bf16.msra.mxu0 %v3546
    %3830 = vmatpush.bf16.msra.mxu0 %v3545
    %3831 = vmatpush.bf16.msra.mxu0 %v3544
    %3832 = vmatpush.bf16.msra.mxu0 %v3543
    %3833 = vmatpush.bf16.msra.mxu0 %v3542
    %3834 = vmatpush.bf16.msra.mxu0 %v3541
    %3835 = vmatmul.bf16.gmra.mxu0 %v2715
    %v3836 = vpop.f32.mrf.mxu0
    %v3837 = vadd.f32 %v3824, %v3836
    %v3838 = vpop.f32.mrf.mxu0
    %3839 = vdwg.mxu0
    %3840 = vmatpush.bf16.msra.mxu0 %v3556
    %3841 = vmatpush.bf16.msra.mxu0 %v3555
    %3842 = vmatpush.bf16.msra.mxu0 %v3554
    %3843 = vmatpush.bf16.msra.mxu0 %v3553
    %3844 = vmatpush.bf16.msra.mxu0 %v3552
    %3845 = vmatpush.bf16.msra.mxu0 %v3551
    %3846 = vmatpush.bf16.msra.mxu0 %v3550
    %3847 = vmatpush.bf16.msra.mxu0 %v3549
    %3848 = vmatmul.bf16.gmra.mxu0 %v2716
    %v3849 = vpop.f32.mrf.mxu0
    %v3850 = vadd.f32 %v3837, %v3849
    %v3851 = vpop.f32.mrf.mxu0
    %3852 = vdwg.mxu0
    %3853 = vmatpush.bf16.msra.mxu0 %v3564
    %3854 = vmatpush.bf16.msra.mxu0 %v3563
    %3855 = vmatpush.bf16.msra.mxu0 %v3562
    %3856 = vmatpush.bf16.msra.mxu0 %v3561
    %3857 = vmatpush.bf16.msra.mxu0 %v3560
    %3858 = vmatpush.bf16.msra.mxu0 %v3559
    %3859 = vmatpush.bf16.msra.mxu0 %v3558
    %3860 = vmatpush.bf16.msra.mxu0 %v3557
    %3861 = vmatmul.bf16.gmra.mxu0 %v2717
    %v3862 = vpop.f32.mrf.mxu0
    %v3863 = vadd.f32 %v3850, %v3862
    %v3864 = vpop.f32.mrf.mxu0
    %3865 = vdwg.mxu0
    %3866 = vmatpush.bf16.msra.mxu0 %v3572
    %3867 = vmatpush.bf16.msra.mxu0 %v3571
    %3868 = vmatpush.bf16.msra.mxu0 %v3570
    %3869 = vmatpush.bf16.msra.mxu0 %v3569
    %3870 = vmatpush.bf16.msra.mxu0 %v3568
    %3871 = vmatpush.bf16.msra.mxu0 %v3567
    %3872 = vmatpush.bf16.msra.mxu0 %v3566
    %3873 = vmatpush.bf16.msra.mxu0 %v3565
    %3874 = vmatmul.bf16.gmra.mxu0 %v2718
    %v3875 = vpop.f32.mrf.mxu0
    %v3876 = vadd.f32 %v3863, %v3875
    %v3877 = vpop.f32.mrf.mxu0
    %3878 = vdwg.mxu0
    %3879 = vmatpush.bf16.msra.mxu0 %v3580
    %3880 = vmatpush.bf16.msra.mxu0 %v3579
    %3881 = vmatpush.bf16.msra.mxu0 %v3578
    %3882 = vmatpush.bf16.msra.mxu0 %v3577
    %3883 = vmatpush.bf16.msra.mxu0 %v3576
    %3884 = vmatpush.bf16.msra.mxu0 %v3575
    %3885 = vmatpush.bf16.msra.mxu0 %v3574
    %3886 = vmatpush.bf16.msra.mxu0 %v3573
    %3887 = vmatmul.bf16.gmra.mxu0 %v2719
    %v3888 = vpop.f32.mrf.mxu0
    %v3889 = vadd.f32 %v3876, %v3888
    %v3890 = vpop.f32.mrf.mxu0
    %3891 = vdwg.mxu0
    %3892 = vmatpush.bf16.msra.mxu0 %v3588
    %3893 = vmatpush.bf16.msra.mxu0 %v3587
    %3894 = vmatpush.bf16.msra.mxu0 %v3586
    %3895 = vmatpush.bf16.msra.mxu0 %v3585
    %3896 = vmatpush.bf16.msra.mxu0 %v3584
    %3897 = vmatpush.bf16.msra.mxu0 %v3583
    %3898 = vmatpush.bf16.msra.mxu0 %v3582
    %3899 = vmatpush.bf16.msra.mxu0 %v3581
    %3900 = vmatmul.bf16.gmra.mxu0 %v2720
    %v3901 = vpop.f32.mrf.mxu0
    %v3902 = vadd.f32 %v3889, %v3901
    %v3903 = vpop.f32.mrf.mxu0
    %3904 = vdwg.mxu0
    %3905 = vmatpush.bf16.msra.mxu0 %v3596
    %3906 = vmatpush.bf16.msra.mxu0 %v3595
    %3907 = vmatpush.bf16.msra.mxu0 %v3594
    %3908 = vmatpush.bf16.msra.mxu0 %v3593
    %3909 = vmatpush.bf16.msra.mxu0 %v3592
    %3910 = vmatpush.bf16.msra.mxu0 %v3591
    %3911 = vmatpush.bf16.msra.mxu0 %v3590
    %3912 = vmatpush.bf16.msra.mxu0 %v3589
    %3913 = vmatmul.bf16.gmra.mxu0 %v2721
    %v3914 = vpop.f32.mrf.mxu0
    %v3915 = vadd.f32 %v3902, %v3914
    %v3916 = vpop.f32.mrf.mxu0
    %3917 = vdwg.mxu0
    %3918 = vmatpush.bf16.msra.mxu0 %v3604
    %3919 = vmatpush.bf16.msra.mxu0 %v3603
    %3920 = vmatpush.bf16.msra.mxu0 %v3602
    %3921 = vmatpush.bf16.msra.mxu0 %v3601
    %3922 = vmatpush.bf16.msra.mxu0 %v3600
    %3923 = vmatpush.bf16.msra.mxu0 %v3599
    %3924 = vmatpush.bf16.msra.mxu0 %v3598
    %3925 = vmatpush.bf16.msra.mxu0 %v3597
    %3926 = vmatmul.bf16.gmra.mxu0 %v2722
    %v3927 = vpop.f32.mrf.mxu0
    %v3928 = vadd.f32 %v3915, %v3927
    %v3929 = vpop.f32.mrf.mxu0
    %3930 = vdwg.mxu0
    %3931 = vmatpush.bf16.msra.mxu0 %v3612
    %3932 = vmatpush.bf16.msra.mxu0 %v3611
    %3933 = vmatpush.bf16.msra.mxu0 %v3610
    %3934 = vmatpush.bf16.msra.mxu0 %v3609
    %3935 = vmatpush.bf16.msra.mxu0 %v3608
    %3936 = vmatpush.bf16.msra.mxu0 %v3607
    %3937 = vmatpush.bf16.msra.mxu0 %v3606
    %3938 = vmatpush.bf16.msra.mxu0 %v3605
    %3939 = vmatmul.bf16.gmra.mxu0 %v2723
    %v3940 = vpop.f32.mrf.mxu0
    %v3941 = vadd.f32 %v3928, %v3940
    %v3942 = vpop.f32.mrf.mxu0
    %3943 = vdwg.mxu0
    %3944 = vmatpush.bf16.msra.mxu0 %v3620
    %3945 = vmatpush.bf16.msra.mxu0 %v3619
    %3946 = vmatpush.bf16.msra.mxu0 %v3618
    %3947 = vmatpush.bf16.msra.mxu0 %v3617
    %3948 = vmatpush.bf16.msra.mxu0 %v3616
    %3949 = vmatpush.bf16.msra.mxu0 %v3615
    %3950 = vmatpush.bf16.msra.mxu0 %v3614
    %3951 = vmatpush.bf16.msra.mxu0 %v3613
    %3952 = vmatmul.bf16.gmra.mxu0 %v2724
    %v3953 = vpop.f32.mrf.mxu0
    %v3954 = vadd.f32 %v3941, %v3953
    %v3955 = vpop.f32.mrf.mxu0
    %3956 = vdwg.mxu0
    %v3957 = vrot.slane %v3954, 4
    %v3958 = vadd.f32 %v3954, %v3957
    %v3959 = vrot.slane %v3958, 2
    %v3960 = vadd.f32 %v3958, %v3959
    %v3961 = vrot.slane %v3960, 1
    %v3962 = vadd.f32 %v3960, %v3961
    %v3963 = vrcp.pop 8.0
    %v3964 = vmul.f32 8.0, %v3963
    %v3965 = vsub.f32 1.0, %v3964
    %v3966 = vmul.f32 %v3963, %v3965
    %v3967 = vadd.f32 %v3963, %v3966
    %vm3968 = vweird.f32 %v3963
    %v3969 = vsel %vm3968, %v3963, %v3967
    %v3970 = vmul.f32 %v3962, %v3969
    %v3971 = vsub.f32 %v3954, %v3970
    %v3972 = vmul.f32 %v3971, %v3971
    %v3973 = vrot.slane %v3972, 4
    %v3974 = vadd.f32 %v3972, %v3973
    %v3975 = vrot.slane %v3974, 2
    %v3976 = vadd.f32 %v3974, %v3975
    %v3977 = vrot.slane %v3976, 1
    %v3978 = vadd.f32 %v3976, %v3977
    %v3979 = vmul.f32 %v3978, %v3969
    %v3980 = vadd.f32 %v3979, 1e-05
    %v3981 = vrsqrt.pop %v3980
    %v3982 = vmul.f32 %v3981, %v3980
    %v3983 = vmul.f32 %v3982, %v3981
    %v3984 = vmul.f32 0.5, %v3983
    %v3985 = vsub.f32 1.5, %v3984
    %v3986 = vmul.f32 %v3981, %v3985
    %vm3987 = vweird.f32 %v3980
    %vm3988 = vweird.f32 %v3981
    %vm3989 = vmor %vm3987, %vm3988
    %v3990 = vsel %vm3989, %v3981, %v3986
    %v3991 = vmul.f32 %v3971, %v3990
    %v3992 = vld [vmem:[%s10] sm:$0x1]
    %v3994 = vperm.slane %v3992, 0
    %v3996 = vmul.f32 %v3991, %v3994
    %v3997 = vld [vmem:[%s11] sm:$0x1]
    %v3999 = vperm.slane %v3997, 0
    %v4001 = vadd.f32 %v3996, %v3999
    %v4002 = vmax.f32 %v4001, 0.0
    %v4003 = vpack.c.bf16 %v4002, %v4002
    %v4004 = vld [vmem:[%s12] sm:$0x1]
    %vm4005 = vcmask 64512
    %v4007 = vsel %vm4005, %v4004, 0
    %vm4009 = vcmask 1043456
    %v4011 = vsel %vm4009, %v4003, 0
    %4013 = vmatpush.bf16.msra.mxu0 0
    %4014 = vmatpush.bf16.msra.mxu0 0
    %4015 = vmatpush.bf16.msra.mxu0 0
    %4016 = vmatpush.bf16.msra.mxu0 0
    %4017 = vmatpush.bf16.msra.mxu0 0
    %4018 = vmatpush.bf16.msra.mxu0 0
    %4019 = vmatpush.bf16.msra.mxu0 0
    %4020 = vmatpush.bf16.msra.mxu0 %v4011
    %4021 = vmatmul.bf16.gmra.mxu0 %v4007
    %v4022 = vpop.f32.mrf.mxu0
    %v4023 = vadd.f32 0.0, %v4022
    %v4024 = vpop.f32.mrf.mxu0
    %4025 = vdwg.mxu0
    %s4026 = scalar_lea.vmem %s12, 1
    %v4027 = vld [vmem:[%s4026] sm:$0x1]
    %v4029 = vsel %vm4005, %v4027, 0
    %4031 = vmatpush.bf16.msra.mxu0 0
    %4032 = vmatpush.bf16.msra.mxu0 0
    %4033 = vmatpush.bf16.msra.mxu0 0
    %4034 = vmatpush.bf16.msra.mxu0 0
    %4035 = vmatpush.bf16.msra.mxu0 0
    %4036 = vmatpush.bf16.msra.mxu0 0
    %4037 = vmatpush.bf16.msra.mxu0 0
    %4038 = vmatpush.bf16.msra.mxu0 %v4011
    %4039 = vmatmul.bf16.gmra.mxu0 %v4029
    %v4040 = vpop.f32.mrf.mxu0
    %v4041 = vadd.f32 0.0, %v4040
    %v4042 = vpop.f32.mrf.mxu0
    %4043 = vdwg.mxu0
    %s4044 = scalar_lea.vmem %s12, 2
    %v4045 = vld [vmem:[%s4044] sm:$0x1]
    %v4047 = vsel %vm4005, %v4045, 0
    %4049 = vmatpush.bf16.msra.mxu0 0
    %4050 = vmatpush.bf16.msra.mxu0 0
    %4051 = vmatpush.bf16.msra.mxu0 0
    %4052 = vmatpush.bf16.msra.mxu0 0
    %4053 = vmatpush.bf16.msra.mxu0 0
    %4054 = vmatpush.bf16.msra.mxu0 0
    %4055 = vmatpush.bf16.msra.mxu0 0
    %4056 = vmatpush.bf16.msra.mxu0 %v4011
    %4057 = vmatmul.bf16.gmra.mxu0 %v4047
    %v4058 = vpop.f32.mrf.mxu0
    %v4059 = vadd.f32 0.0, %v4058
    %v4060 = vpop.f32.mrf.mxu0
    %4061 = vdwg.mxu0
    %s4062 = scalar_lea.vmem %s12, 3
    %v4063 = vld [vmem:[%s4062] sm:$0x1]
    %v4065 = vsel %vm4005, %v4063, 0
    %4067 = vmatpush.bf16.msra.mxu0 0
    %4068 = vmatpush.bf16.msra.mxu0 0
    %4069 = vmatpush.bf16.msra.mxu0 0
    %4070 = vmatpush.bf16.msra.mxu0 0
    %4071 = vmatpush.bf16.msra.mxu0 0
    %4072 = vmatpush.bf16.msra.mxu0 0
    %4073 = vmatpush.bf16.msra.mxu0 0
    %4074 = vmatpush.bf16.msra.mxu0 %v4011
    %4075 = vmatmul.bf16.gmra.mxu0 %v4065
    %v4076 = vpop.f32.mrf.mxu0
    %v4077 = vadd.f32 0.0, %v4076
    %v4078 = vpop.f32.mrf.mxu0
    %4079 = vdwg.mxu0
    %s4080 = scalar_lea.vmem %s12, 4
    %v4081 = vld [vmem:[%s4080] sm:$0x1]
    %v4083 = vsel %vm4005, %v4081, 0
    %4085 = vmatpush.bf16.msra.mxu0 0
    %4086 = vmatpush.bf16.msra.mxu0 0
    %4087 = vmatpush.bf16.msra.mxu0 0
    %4088 = vmatpush.bf16.msra.mxu0 0
    %4089 = vmatpush.bf16.msra.mxu0 0
    %4090 = vmatpush.bf16.msra.mxu0 0
    %4091 = vmatpush.bf16.msra.mxu0 0
    %4092 = vmatpush.bf16.msra.mxu0 %v4011
    %4093 = vmatmul.bf16.gmra.mxu0 %v4083
    %v4094 = vpop.f32.mrf.mxu0
    %v4095 = vadd.f32 0.0, %v4094
    %v4096 = vpop.f32.mrf.mxu0
    %4097 = vdwg.mxu0
    %s4098 = scalar_lea.vmem %s12, 5
    %v4099 = vld [vmem:[%s4098] sm:$0x1]
    %v4101 = vsel %vm4005, %v4099, 0
    %4103 = vmatpush.bf16.msra.mxu0 0
    %4104 = vmatpush.bf16.msra.mxu0 0
    %4105 = vmatpush.bf16.msra.mxu0 0
    %4106 = vmatpush.bf16.msra.mxu0 0
    %4107 = vmatpush.bf16.msra.mxu0 0
    %4108 = vmatpush.bf16.msra.mxu0 0
    %4109 = vmatpush.bf16.msra.mxu0 0
    %4110 = vmatpush.bf16.msra.mxu0 %v4011
    %4111 = vmatmul.bf16.gmra.mxu0 %v4101
    %v4112 = vpop.f32.mrf.mxu0
    %v4113 = vadd.f32 0.0, %v4112
    %v4114 = vpop.f32.mrf.mxu0
    %4115 = vdwg.mxu0
    %s4116 = scalar_lea.vmem %s12, 6
    %v4117 = vld [vmem:[%s4116] sm:$0x1]
    %v4119 = vsel %vm4005, %v4117, 0
    %4121 = vmatpush.bf16.msra.mxu0 0
    %4122 = vmatpush.bf16.msra.mxu0 0
    %4123 = vmatpush.bf16.msra.mxu0 0
    %4124 = vmatpush.bf16.msra.mxu0 0
    %4125 = vmatpush.bf16.msra.mxu0 0
    %4126 = vmatpush.bf16.msra.mxu0 0
    %4127 = vmatpush.bf16.msra.mxu0 0
    %4128 = vmatpush.bf16.msra.mxu0 %v4011
    %4129 = vmatmul.bf16.gmra.mxu0 %v4119
    %v4130 = vpop.f32.mrf.mxu0
    %v4131 = vadd.f32 0.0, %v4130
    %v4132 = vpop.f32.mrf.mxu0
    %4133 = vdwg.mxu0
    %s4134 = scalar_lea.vmem %s12, 7
    %v4135 = vld [vmem:[%s4134] sm:$0x1]
    %v4137 = vsel %vm4005, %v4135, 0
    %4139 = vmatpush.bf16.msra.mxu0 0
    %4140 = vmatpush.bf16.msra.mxu0 0
    %4141 = vmatpush.bf16.msra.mxu0 0
    %4142 = vmatpush.bf16.msra.mxu0 0
    %4143 = vmatpush.bf16.msra.mxu0 0
    %4144 = vmatpush.bf16.msra.mxu0 0
    %4145 = vmatpush.bf16.msra.mxu0 0
    %4146 = vmatpush.bf16.msra.mxu0 %v4011
    %4147 = vmatmul.bf16.gmra.mxu0 %v4137
    %v4148 = vpop.f32.mrf.mxu0
    %v4149 = vadd.f32 0.0, %v4148
    %v4150 = vpop.f32.mrf.mxu0
    %4151 = vdwg.mxu0
    %s4152 = scalar_lea.vmem %s12, 8
    %v4153 = vld [vmem:[%s4152] sm:$0x1]
    %v4155 = vsel %vm4005, %v4153, 0
    %4157 = vmatpush.bf16.msra.mxu0 0
    %4158 = vmatpush.bf16.msra.mxu0 0
    %4159 = vmatpush.bf16.msra.mxu0 0
    %4160 = vmatpush.bf16.msra.mxu0 0
    %4161 = vmatpush.bf16.msra.mxu0 0
    %4162 = vmatpush.bf16.msra.mxu0 0
    %4163 = vmatpush.bf16.msra.mxu0 0
    %4164 = vmatpush.bf16.msra.mxu0 %v4011
    %4165 = vmatmul.bf16.gmra.mxu0 %v4155
    %v4166 = vpop.f32.mrf.mxu0
    %v4167 = vadd.f32 0.0, %v4166
    %v4168 = vpop.f32.mrf.mxu0
    %4169 = vdwg.mxu0
    %s4170 = scalar_lea.vmem %s12, 9
    %v4171 = vld [vmem:[%s4170] sm:$0x1]
    %v4173 = vsel %vm4005, %v4171, 0
    %4175 = vmatpush.bf16.msra.mxu0 0
    %4176 = vmatpush.bf16.msra.mxu0 0
    %4177 = vmatpush.bf16.msra.mxu0 0
    %4178 = vmatpush.bf16.msra.mxu0 0
    %4179 = vmatpush.bf16.msra.mxu0 0
    %4180 = vmatpush.bf16.msra.mxu0 0
    %4181 = vmatpush.bf16.msra.mxu0 0
    %4182 = vmatpush.bf16.msra.mxu0 %v4011
    %4183 = vmatmul.bf16.gmra.mxu0 %v4173
    %v4184 = vpop.f32.mrf.mxu0
    %v4185 = vadd.f32 0.0, %v4184
    %v4186 = vpop.f32.mrf.mxu0
    %4187 = vdwg.mxu0
    %s4188 = scalar_lea.vmem %s12, 10
    %v4189 = vld [vmem:[%s4188] sm:$0x1]
    %v4191 = vsel %vm4005, %v4189, 0
    %4193 = vmatpush.bf16.msra.mxu0 0
    %4194 = vmatpush.bf16.msra.mxu0 0
    %4195 = vmatpush.bf16.msra.mxu0 0
    %4196 = vmatpush.bf16.msra.mxu0 0
    %4197 = vmatpush.bf16.msra.mxu0 0
    %4198 = vmatpush.bf16.msra.mxu0 0
    %4199 = vmatpush.bf16.msra.mxu0 0
    %4200 = vmatpush.bf16.msra.mxu0 %v4011
    %4201 = vmatmul.bf16.gmra.mxu0 %v4191
    %v4202 = vpop.f32.mrf.mxu0
    %v4203 = vadd.f32 0.0, %v4202
    %v4204 = vpop.f32.mrf.mxu0
    %4205 = vdwg.mxu0
    %s4206 = scalar_lea.vmem %s12, 11
    %v4207 = vld [vmem:[%s4206] sm:$0x1]
    %v4209 = vsel %vm4005, %v4207, 0
    %4211 = vmatpush.bf16.msra.mxu0 0
    %4212 = vmatpush.bf16.msra.mxu0 0
    %4213 = vmatpush.bf16.msra.mxu0 0
    %4214 = vmatpush.bf16.msra.mxu0 0
    %4215 = vmatpush.bf16.msra.mxu0 0
    %4216 = vmatpush.bf16.msra.mxu0 0
    %4217 = vmatpush.bf16.msra.mxu0 0
    %4218 = vmatpush.bf16.msra.mxu0 %v4011
    %4219 = vmatmul.bf16.gmra.mxu0 %v4209
    %v4220 = vpop.f32.mrf.mxu0
    %v4221 = vadd.f32 0.0, %v4220
    %v4222 = vpop.f32.mrf.mxu0
    %4223 = vdwg.mxu0
    %s4224 = scalar_lea.vmem %s12, 12
    %v4225 = vld [vmem:[%s4224] sm:$0x1]
    %v4227 = vsel %vm4005, %v4225, 0
    %4229 = vmatpush.bf16.msra.mxu0 0
    %4230 = vmatpush.bf16.msra.mxu0 0
    %4231 = vmatpush.bf16.msra.mxu0 0
    %4232 = vmatpush.bf16.msra.mxu0 0
    %4233 = vmatpush.bf16.msra.mxu0 0
    %4234 = vmatpush.bf16.msra.mxu0 0
    %4235 = vmatpush.bf16.msra.mxu0 0
    %4236 = vmatpush.bf16.msra.mxu0 %v4011
    %4237 = vmatmul.bf16.gmra.mxu0 %v4227
    %v4238 = vpop.f32.mrf.mxu0
    %v4239 = vadd.f32 0.0, %v4238
    %v4240 = vpop.f32.mrf.mxu0
    %4241 = vdwg.mxu0
    %s4242 = scalar_lea.vmem %s12, 13
    %v4243 = vld [vmem:[%s4242] sm:$0x1]
    %v4245 = vsel %vm4005, %v4243, 0
    %4247 = vmatpush.bf16.msra.mxu0 0
    %4248 = vmatpush.bf16.msra.mxu0 0
    %4249 = vmatpush.bf16.msra.mxu0 0
    %4250 = vmatpush.bf16.msra.mxu0 0
    %4251 = vmatpush.bf16.msra.mxu0 0
    %4252 = vmatpush.bf16.msra.mxu0 0
    %4253 = vmatpush.bf16.msra.mxu0 0
    %4254 = vmatpush.bf16.msra.mxu0 %v4011
    %4255 = vmatmul.bf16.gmra.mxu0 %v4245
    %v4256 = vpop.f32.mrf.mxu0
    %v4257 = vadd.f32 0.0, %v4256
    %v4258 = vpop.f32.mrf.mxu0
    %4259 = vdwg.mxu0
    %s4260 = scalar_lea.vmem %s12, 14
    %v4261 = vld [vmem:[%s4260] sm:$0x1]
    %v4263 = vsel %vm4005, %v4261, 0
    %4265 = vmatpush.bf16.msra.mxu0 0
    %4266 = vmatpush.bf16.msra.mxu0 0
    %4267 = vmatpush.bf16.msra.mxu0 0
    %4268 = vmatpush.bf16.msra.mxu0 0
    %4269 = vmatpush.bf16.msra.mxu0 0
    %4270 = vmatpush.bf16.msra.mxu0 0
    %4271 = vmatpush.bf16.msra.mxu0 0
    %4272 = vmatpush.bf16.msra.mxu0 %v4011
    %4273 = vmatmul.bf16.gmra.mxu0 %v4263
    %v4274 = vpop.f32.mrf.mxu0
    %v4275 = vadd.f32 0.0, %v4274
    %v4276 = vpop.f32.mrf.mxu0
    %4277 = vdwg.mxu0
    %s4278 = scalar_lea.vmem %s12, 15
    %v4279 = vld [vmem:[%s4278] sm:$0x1]
    %v4281 = vsel %vm4005, %v4279, 0
    %4283 = vmatpush.bf16.msra.mxu0 0
    %4284 = vmatpush.bf16.msra.mxu0 0
    %4285 = vmatpush.bf16.msra.mxu0 0
    %4286 = vmatpush.bf16.msra.mxu0 0
    %4287 = vmatpush.bf16.msra.mxu0 0
    %4288 = vmatpush.bf16.msra.mxu0 0
    %4289 = vmatpush.bf16.msra.mxu0 0
    %4290 = vmatpush.bf16.msra.mxu0 %v4011
    %4291 = vmatmul.bf16.gmra.mxu0 %v4281
    %v4292 = vpop.f32.mrf.mxu0
    %v4293 = vadd.f32 0.0, %v4292
    %v4294 = vpop.f32.mrf.mxu0
    %4295 = vdwg.mxu0
    %v4296 = vpack.c.bf16 %v4023, %v4023
    %v4297 = vpack.c.bf16 %v4041, %v4041
    %v4298 = vpack.c.bf16 %v4059, %v4059
    %v4299 = vpack.c.bf16 %v4077, %v4077
    %v4300 = vpack.c.bf16 %v4095, %v4095
    %v4301 = vpack.c.bf16 %v4113, %v4113
    %v4302 = vpack.c.bf16 %v4131, %v4131
    %v4303 = vpack.c.bf16 %v4149, %v4149
    %v4304 = vpack.c.bf16 %v4167, %v4167
    %v4305 = vpack.c.bf16 %v4185, %v4185
    %v4306 = vpack.c.bf16 %v4203, %v4203
    %v4307 = vpack.c.bf16 %v4221, %v4221
    %v4308 = vpack.c.bf16 %v4239, %v4239
    %v4309 = vpack.c.bf16 %v4257, %v4257
    %v4310 = vpack.c.bf16 %v4275, %v4275
    %v4311 = vpack.c.bf16 %v4293, %v4293
    %v4312 = vld [vmem:[%s13] sm:$0xff]
    %v4313 = vld [vmem:[%s13 + $0x8] sm:$0xff]
    %v4314 = vld [vmem:[%s13 + $0x10] sm:$0xff]
    %v4315 = vld [vmem:[%s13 + $0x18] sm:$0xff]
    %v4316 = vld [vmem:[%s13 + $0x20] sm:$0xff]
    %v4317 = vld [vmem:[%s13 + $0x28] sm:$0xff]
    %v4318 = vld [vmem:[%s13 + $0x30] sm:$0xff]
    %v4319 = vld [vmem:[%s13 + $0x38] sm:$0xff]
    %v4320 = vld [vmem:[%s13 + $0x40] sm:$0xff]
    %v4321 = vld [vmem:[%s13 + $0x48] sm:$0xff]
    %v4322 = vld [vmem:[%s13 + $0x50] sm:$0xff]
    %v4323 = vld [vmem:[%s13 + $0x58] sm:$0xff]
    %v4324 = vld [vmem:[%s13 + $0x60] sm:$0xff]
    %v4325 = vld [vmem:[%s13 + $0x68] sm:$0xff]
    %v4326 = vld [vmem:[%s13 + $0x70] sm:$0xff]
    %v4327 = vld [vmem:[%s13 + $0x78] sm:$0xff]
    %v4328 = vld [vmem:[%s13 + $0x80] sm:$0xff]
    %v4329 = vld [vmem:[%s13 + $0x88] sm:$0xff]
    %v4330 = vld [vmem:[%s13 + $0x90] sm:$0xff]
    %v4331 = vld [vmem:[%s13 + $0x98] sm:$0xff]
    %v4332 = vld [vmem:[%s13 + $0xa0] sm:$0xff]
    %v4333 = vld [vmem:[%s13 + $0xa8] sm:$0xff]
    %v4334 = vld [vmem:[%s13 + $0xb0] sm:$0xff]
    %v4335 = vld [vmem:[%s13 + $0xb8] sm:$0xff]
    %v4336 = vld [vmem:[%s13 + $0xc0] sm:$0xff]
    %v4337 = vld [vmem:[%s13 + $0xc8] sm:$0xff]
    %v4338 = vld [vmem:[%s13 + $0xd0] sm:$0xff]
    %v4339 = vld [vmem:[%s13 + $0xd8] sm:$0xff]
    %v4340 = vld [vmem:[%s13 + $0xe0] sm:$0xff]
    %v4341 = vld [vmem:[%s13 + $0xe8] sm:$0xff]
    %v4342 = vld [vmem:[%s13 + $0xf0] sm:$0xff]
    %v4343 = vld [vmem:[%s13 + $0xf8] sm:$0xff]
    %v4344 = vld [vmem:[%s13 + $0x100] sm:$0xff]
    %v4345 = vld [vmem:[%s13 + $0x108] sm:$0xff]
    %v4346 = vld [vmem:[%s13 + $0x110] sm:$0xff]
    %v4347 = vld [vmem:[%s13 + $0x118] sm:$0xff]
    %v4348 = vld [vmem:[%s13 + $0x120] sm:$0xff]
    %v4349 = vld [vmem:[%s13 + $0x128] sm:$0xff]
    %v4350 = vld [vmem:[%s13 + $0x130] sm:$0xff]
    %v4351 = vld [vmem:[%s13 + $0x138] sm:$0xff]
    %v4352 = vld [vmem:[%s13 + $0x140] sm:$0xff]
    %v4353 = vld [vmem:[%s13 + $0x148] sm:$0xff]
    %v4354 = vld [vmem:[%s13 + $0x150] sm:$0xff]
    %v4355 = vld [vmem:[%s13 + $0x158] sm:$0xff]
    %v4356 = vld [vmem:[%s13 + $0x160] sm:$0xff]
    %v4357 = vld [vmem:[%s13 + $0x168] sm:$0xff]
    %v4358 = vld [vmem:[%s13 + $0x170] sm:$0xff]
    %v4359 = vld [vmem:[%s13 + $0x178] sm:$0xff]
    %v4360 = vld [vmem:[%s13 + $0x180] sm:$0xff]
    %v4361 = vld [vmem:[%s13 + $0x188] sm:$0xff]
    %v4362 = vld [vmem:[%s13 + $0x190] sm:$0xff]
    %v4363 = vld [vmem:[%s13 + $0x198] sm:$0xff]
    %v4364 = vld [vmem:[%s13 + $0x1a0] sm:$0xff]
    %v4365 = vld [vmem:[%s13 + $0x1a8] sm:$0xff]
    %v4366 = vld [vmem:[%s13 + $0x1b0] sm:$0xff]
    %v4367 = vld [vmem:[%s13 + $0x1b8] sm:$0xff]
    %v4368 = vld [vmem:[%s13 + $0x1c0] sm:$0xff]
    %v4369 = vld [vmem:[%s13 + $0x1c8] sm:$0xff]
    %v4370 = vld [vmem:[%s13 + $0x1d0] sm:$0xff]
    %v4371 = vld [vmem:[%s13 + $0x1d8] sm:$0xff]
    %v4372 = vld [vmem:[%s13 + $0x1e0] sm:$0xff]
    %v4373 = vld [vmem:[%s13 + $0x1e8] sm:$0xff]
    %v4374 = vld [vmem:[%s13 + $0x1f0] sm:$0xff]
    %v4375 = vld [vmem:[%s13 + $0x1f8] sm:$0xff]
    %v4376 = vld [vmem:[%s13 + $0x200] sm:$0xff]
    %v4377 = vld [vmem:[%s13 + $0x208] sm:$0xff]
    %v4378 = vld [vmem:[%s13 + $0x210] sm:$0xff]
    %v4379 = vld [vmem:[%s13 + $0x218] sm:$0xff]
    %v4380 = vld [vmem:[%s13 + $0x220] sm:$0xff]
    %v4381 = vld [vmem:[%s13 + $0x228] sm:$0xff]
    %v4382 = vld [vmem:[%s13 + $0x230] sm:$0xff]
    %v4383 = vld [vmem:[%s13 + $0x238] sm:$0xff]
    %v4384 = vld [vmem:[%s13 + $0x240] sm:$0xff]
    %v4385 = vld [vmem:[%s13 + $0x248] sm:$0xff]
    %v4386 = vld [vmem:[%s13 + $0x250] sm:$0xff]
    %v4387 = vld [vmem:[%s13 + $0x258] sm:$0xff]
    %v4388 = vld [vmem:[%s13 + $0x260] sm:$0xff]
    %v4389 = vld [vmem:[%s13 + $0x268] sm:$0xff]
    %v4390 = vld [vmem:[%s13 + $0x270] sm:$0xff]
    %v4391 = vld [vmem:[%s13 + $0x278] sm:$0xff]
    %v4392 = vld [vmem:[%s13 + $0x280] sm:$0xff]
    %v4393 = vld [vmem:[%s13 + $0x288] sm:$0xff]
    %v4394 = vld [vmem:[%s13 + $0x290] sm:$0xff]
    %v4395 = vld [vmem:[%s13 + $0x298] sm:$0xff]
    %v4396 = vld [vmem:[%s13 + $0x2a0] sm:$0xff]
    %v4397 = vld [vmem:[%s13 + $0x2a8] sm:$0xff]
    %v4398 = vld [vmem:[%s13 + $0x2b0] sm:$0xff]
    %v4399 = vld [vmem:[%s13 + $0x2b8] sm:$0xff]
    %v4400 = vld [vmem:[%s13 + $0x2c0] sm:$0xff]
    %v4401 = vld [vmem:[%s13 + $0x2c8] sm:$0xff]
    %v4402 = vld [vmem:[%s13 + $0x2d0] sm:$0xff]
    %v4403 = vld [vmem:[%s13 + $0x2d8] sm:$0xff]
    %v4404 = vld [vmem:[%s13 + $0x2e0] sm:$0xff]
    %v4405 = vld [vmem:[%s13 + $0x2e8] sm:$0xff]
    %v4406 = vld [vmem:[%s13 + $0x2f0] sm:$0xff]
    %v4407 = vld [vmem:[%s13 + $0x2f8] sm:$0xff]
    %v4408 = vld [vmem:[%s13 + $0x300] sm:$0xff]
    %v4409 = vld [vmem:[%s13 + $0x308] sm:$0xff]
    %v4410 = vld [vmem:[%s13 + $0x310] sm:$0xff]
    %v4411 = vld [vmem:[%s13 + $0x318] sm:$0xff]
    %v4412 = vld [vmem:[%s13 + $0x320] sm:$0xff]
    %v4413 = vld [vmem:[%s13 + $0x328] sm:$0xff]
    %v4414 = vld [vmem:[%s13 + $0x330] sm:$0xff]
    %v4415 = vld [vmem:[%s13 + $0x338] sm:$0xff]
    %v4416 = vld [vmem:[%s13 + $0x340] sm:$0xff]
    %v4417 = vld [vmem:[%s13 + $0x348] sm:$0xff]
    %v4418 = vld [vmem:[%s13 + $0x350] sm:$0xff]
    %v4419 = vld [vmem:[%s13 + $0x358] sm:$0xff]
    %v4420 = vld [vmem:[%s13 + $0x360] sm:$0xff]
    %v4421 = vld [vmem:[%s13 + $0x368] sm:$0xff]
    %v4422 = vld [vmem:[%s13 + $0x370] sm:$0xff]
    %v4423 = vld [vmem:[%s13 + $0x378] sm:$0xff]
    %v4424 = vld [vmem:[%s13 + $0x380] sm:$0xff]
    %v4425 = vld [vmem:[%s13 + $0x388] sm:$0xff]
    %v4426 = vld [vmem:[%s13 + $0x390] sm:$0xff]
    %v4427 = vld [vmem:[%s13 + $0x398] sm:$0xff]
    %v4428 = vld [vmem:[%s13 + $0x3a0] sm:$0xff]
    %v4429 = vld [vmem:[%s13 + $0x3a8] sm:$0xff]
    %v4430 = vld [vmem:[%s13 + $0x3b0] sm:$0xff]
    %v4431 = vld [vmem:[%s13 + $0x3b8] sm:$0xff]
    %v4432 = vld [vmem:[%s13 + $0x3c0] sm:$0xff]
    %v4433 = vld [vmem:[%s13 + $0x3c8] sm:$0xff]
    %v4434 = vld [vmem:[%s13 + $0x3d0] sm:$0xff]
    %v4435 = vld [vmem:[%s13 + $0x3d8] sm:$0xff]
    %v4436 = vld [vmem:[%s13 + $0x3e0] sm:$0xff]
    %v4437 = vld [vmem:[%s13 + $0x3e8] sm:$0xff]
    %v4438 = vld [vmem:[%s13 + $0x3f0] sm:$0xff]
    %v4439 = vld [vmem:[%s13 + $0x3f8] sm:$0xff]
    %v4440 = vld [vmem:[%s13 + $0x400] sm:$0xff]
    %v4441 = vld [vmem:[%s13 + $0x408] sm:$0xff]
    %v4442 = vld [vmem:[%s13 + $0x410] sm:$0xff]
    %v4443 = vld [vmem:[%s13 + $0x418] sm:$0xff]
    %v4444 = vld [vmem:[%s13 + $0x420] sm:$0xff]
    %v4445 = vld [vmem:[%s13 + $0x428] sm:$0xff]
    %v4446 = vld [vmem:[%s13 + $0x430] sm:$0xff]
    %v4447 = vld [vmem:[%s13 + $0x438] sm:$0xff]
    %v4448 = vld [vmem:[%s13 + $0x440] sm:$0xff]
    %v4449 = vld [vmem:[%s13 + $0x448] sm:$0xff]
    %v4450 = vld [vmem:[%s13 + $0x450] sm:$0xff]
    %v4451 = vld [vmem:[%s13 + $0x458] sm:$0xff]
    %v4452 = vld [vmem:[%s13 + $0x460] sm:$0xff]
    %v4453 = vld [vmem:[%s13 + $0x468] sm:$0xff]
    %v4454 = vld [vmem:[%s13 + $0x470] sm:$0xff]
    %v4455 = vld [vmem:[%s13 + $0x478] sm:$0xff]
    %v4456 = vld [vmem:[%s13 + $0x480] sm:$0xff]
    %v4457 = vld [vmem:[%s13 + $0x488] sm:$0xff]
    %v4458 = vld [vmem:[%s13 + $0x490] sm:$0xff]
    %v4459 = vld [vmem:[%s13 + $0x498] sm:$0xff]
    %v4460 = vld [vmem:[%s13 + $0x4a0] sm:$0xff]
    %v4461 = vld [vmem:[%s13 + $0x4a8] sm:$0xff]
    %v4462 = vld [vmem:[%s13 + $0x4b0] sm:$0xff]
    %v4463 = vld [vmem:[%s13 + $0x4b8] sm:$0xff]
    %v4464 = vld [vmem:[%s13 + $0x4c0] sm:$0xff]
    %v4465 = vld [vmem:[%s13 + $0x4c8] sm:$0xff]
    %v4466 = vld [vmem:[%s13 + $0x4d0] sm:$0xff]
    %v4467 = vld [vmem:[%s13 + $0x4d8] sm:$0xff]
    %v4468 = vld [vmem:[%s13 + $0x4e0] sm:$0xff]
    %v4469 = vld [vmem:[%s13 + $0x4e8] sm:$0xff]
    %v4470 = vld [vmem:[%s13 + $0x4f0] sm:$0xff]
    %v4471 = vld [vmem:[%s13 + $0x4f8] sm:$0xff]
    %v4472 = vld [vmem:[%s13 + $0x500] sm:$0xff]
    %v4473 = vld [vmem:[%s13 + $0x508] sm:$0xff]
    %v4474 = vld [vmem:[%s13 + $0x510] sm:$0xff]
    %v4475 = vld [vmem:[%s13 + $0x518] sm:$0xff]
    %v4476 = vld [vmem:[%s13 + $0x520] sm:$0xff]
    %v4477 = vld [vmem:[%s13 + $0x528] sm:$0xff]
    %v4478 = vld [vmem:[%s13 + $0x530] sm:$0xff]
    %v4479 = vld [vmem:[%s13 + $0x538] sm:$0xff]
    %v4480 = vld [vmem:[%s13 + $0x540] sm:$0xff]
    %v4481 = vld [vmem:[%s13 + $0x548] sm:$0xff]
    %v4482 = vld [vmem:[%s13 + $0x550] sm:$0xff]
    %v4483 = vld [vmem:[%s13 + $0x558] sm:$0xff]
    %v4484 = vld [vmem:[%s13 + $0x560] sm:$0xff]
    %v4485 = vld [vmem:[%s13 + $0x568] sm:$0xff]
    %v4486 = vld [vmem:[%s13 + $0x570] sm:$0xff]
    %v4487 = vld [vmem:[%s13 + $0x578] sm:$0xff]
    %v4488 = vld [vmem:[%s13 + $0x580] sm:$0xff]
    %v4489 = vld [vmem:[%s13 + $0x588] sm:$0xff]
    %v4490 = vld [vmem:[%s13 + $0x590] sm:$0xff]
    %v4491 = vld [vmem:[%s13 + $0x598] sm:$0xff]
    %v4492 = vld [vmem:[%s13 + $0x5a0] sm:$0xff]
    %v4493 = vld [vmem:[%s13 + $0x5a8] sm:$0xff]
    %v4494 = vld [vmem:[%s13 + $0x5b0] sm:$0xff]
    %v4495 = vld [vmem:[%s13 + $0x5b8] sm:$0xff]
    %v4496 = vld [vmem:[%s13 + $0x5c0] sm:$0xff]
    %v4497 = vld [vmem:[%s13 + $0x5c8] sm:$0xff]
    %v4498 = vld [vmem:[%s13 + $0x5d0] sm:$0xff]
    %v4499 = vld [vmem:[%s13 + $0x5d8] sm:$0xff]
    %v4500 = vld [vmem:[%s13 + $0x5e0] sm:$0xff]
    %v4501 = vld [vmem:[%s13 + $0x5e8] sm:$0xff]
    %v4502 = vld [vmem:[%s13 + $0x5f0] sm:$0xff]
    %v4503 = vld [vmem:[%s13 + $0x5f8] sm:$0xff]
    %v4504 = vld [vmem:[%s13 + $0x600] sm:$0xff]
    %v4505 = vld [vmem:[%s13 + $0x608] sm:$0xff]
    %v4506 = vld [vmem:[%s13 + $0x610] sm:$0xff]
    %v4507 = vld [vmem:[%s13 + $0x618] sm:$0xff]
    %v4508 = vld [vmem:[%s13 + $0x620] sm:$0xff]
    %v4509 = vld [vmem:[%s13 + $0x628] sm:$0xff]
    %v4510 = vld [vmem:[%s13 + $0x630] sm:$0xff]
    %v4511 = vld [vmem:[%s13 + $0x638] sm:$0xff]
    %v4512 = vld [vmem:[%s13 + $0x640] sm:$0xff]
    %v4513 = vld [vmem:[%s13 + $0x648] sm:$0xff]
    %v4514 = vld [vmem:[%s13 + $0x650] sm:$0xff]
    %v4515 = vld [vmem:[%s13 + $0x658] sm:$0xff]
    %v4516 = vld [vmem:[%s13 + $0x660] sm:$0xff]
    %v4517 = vld [vmem:[%s13 + $0x668] sm:$0xff]
    %v4518 = vld [vmem:[%s13 + $0x670] sm:$0xff]
    %v4519 = vld [vmem:[%s13 + $0x678] sm:$0xff]
    %v4520 = vld [vmem:[%s13 + $0x680] sm:$0xff]
    %v4521 = vld [vmem:[%s13 + $0x688] sm:$0xff]
    %v4522 = vld [vmem:[%s13 + $0x690] sm:$0xff]
    %v4523 = vld [vmem:[%s13 + $0x698] sm:$0xff]
    %v4524 = vld [vmem:[%s13 + $0x6a0] sm:$0xff]
    %v4525 = vld [vmem:[%s13 + $0x6a8] sm:$0xff]
    %v4526 = vld [vmem:[%s13 + $0x6b0] sm:$0xff]
    %v4527 = vld [vmem:[%s13 + $0x6b8] sm:$0xff]
    %v4528 = vld [vmem:[%s13 + $0x6c0] sm:$0xff]
    %v4529 = vld [vmem:[%s13 + $0x6c8] sm:$0xff]
    %v4530 = vld [vmem:[%s13 + $0x6d0] sm:$0xff]
    %v4531 = vld [vmem:[%s13 + $0x6d8] sm:$0xff]
    %v4532 = vld [vmem:[%s13 + $0x6e0] sm:$0xff]
    %v4533 = vld [vmem:[%s13 + $0x6e8] sm:$0xff]
    %v4534 = vld [vmem:[%s13 + $0x6f0] sm:$0xff]
    %v4535 = vld [vmem:[%s13 + $0x6f8] sm:$0xff]
    %v4536 = vld [vmem:[%s13 + $0x700] sm:$0xff]
    %v4537 = vld [vmem:[%s13 + $0x708] sm:$0xff]
    %v4538 = vld [vmem:[%s13 + $0x710] sm:$0xff]
    %v4539 = vld [vmem:[%s13 + $0x718] sm:$0xff]
    %v4540 = vld [vmem:[%s13 + $0x720] sm:$0xff]
    %v4541 = vld [vmem:[%s13 + $0x728] sm:$0xff]
    %v4542 = vld [vmem:[%s13 + $0x730] sm:$0xff]
    %v4543 = vld [vmem:[%s13 + $0x738] sm:$0xff]
    %v4544 = vld [vmem:[%s13 + $0x740] sm:$0xff]
    %v4545 = vld [vmem:[%s13 + $0x748] sm:$0xff]
    %v4546 = vld [vmem:[%s13 + $0x750] sm:$0xff]
    %v4547 = vld [vmem:[%s13 + $0x758] sm:$0xff]
    %v4548 = vld [vmem:[%s13 + $0x760] sm:$0xff]
    %v4549 = vld [vmem:[%s13 + $0x768] sm:$0xff]
    %v4550 = vld [vmem:[%s13 + $0x770] sm:$0xff]
    %v4551 = vld [vmem:[%s13 + $0x778] sm:$0xff]
    %v4552 = vld [vmem:[%s13 + $0x780] sm:$0xff]
    %v4553 = vld [vmem:[%s13 + $0x788] sm:$0xff]
    %v4554 = vld [vmem:[%s13 + $0x790] sm:$0xff]
    %v4555 = vld [vmem:[%s13 + $0x798] sm:$0xff]
    %v4556 = vld [vmem:[%s13 + $0x7a0] sm:$0xff]
    %v4557 = vld [vmem:[%s13 + $0x7a8] sm:$0xff]
    %v4558 = vld [vmem:[%s13 + $0x7b0] sm:$0xff]
    %v4559 = vld [vmem:[%s13 + $0x7b8] sm:$0xff]
    %v4560 = vld [vmem:[%s13 + $0x7c0] sm:$0xff]
    %v4561 = vld [vmem:[%s13 + $0x7c8] sm:$0xff]
    %v4562 = vld [vmem:[%s13 + $0x7d0] sm:$0xff]
    %v4563 = vld [vmem:[%s13 + $0x7d8] sm:$0xff]
    %v4564 = vld [vmem:[%s13 + $0x7e0] sm:$0xff]
    %v4565 = vld [vmem:[%s13 + $0x7e8] sm:$0xff]
    %v4566 = vld [vmem:[%s13 + $0x7f0] sm:$0xff]
    %v4567 = vld [vmem:[%s13 + $0x7f8] sm:$0xff]
    %v4824 = vunpack.c.l.b16 %v4312
    %v4825 = vunpack.c.h.b16 %v4312
    %v4826 = vunpack.c.l.b16 %v4313
    %v4827 = vunpack.c.h.b16 %v4313
    %v4828 = vunpack.c.l.b16 %v4314
    %v4829 = vunpack.c.h.b16 %v4314
    %v4830 = vunpack.c.l.b16 %v4315
    %v4831 = vunpack.c.h.b16 %v4315
    %v4832 = vunpack.c.l.b16 %v4316
    %v4833 = vunpack.c.h.b16 %v4316
    %v4834 = vunpack.c.l.b16 %v4317
    %v4835 = vunpack.c.h.b16 %v4317
    %v4836 = vunpack.c.l.b16 %v4318
    %v4837 = vunpack.c.h.b16 %v4318
    %v4838 = vunpack.c.l.b16 %v4319
    %v4839 = vunpack.c.h.b16 %v4319
    %v4840 = vunpack.c.l.b16 %v4320
    %v4841 = vunpack.c.h.b16 %v4320
    %v4842 = vunpack.c.l.b16 %v4321
    %v4843 = vunpack.c.h.b16 %v4321
    %v4844 = vunpack.c.l.b16 %v4322
    %v4845 = vunpack.c.h.b16 %v4322
    %v4846 = vunpack.c.l.b16 %v4323
    %v4847 = vunpack.c.h.b16 %v4323
    %v4848 = vunpack.c.l.b16 %v4324
    %v4849 = vunpack.c.h.b16 %v4324
    %v4850 = vunpack.c.l.b16 %v4325
    %v4851 = vunpack.c.h.b16 %v4325
    %v4852 = vunpack.c.l.b16 %v4326
    %v4853 = vunpack.c.h.b16 %v4326
    %v4854 = vunpack.c.l.b16 %v4327
    %v4855 = vunpack.c.h.b16 %v4327
    %v4856 = vunpack.c.l.b16 %v4328
    %v4857 = vunpack.c.h.b16 %v4328
    %v4858 = vunpack.c.l.b16 %v4329
    %v4859 = vunpack.c.h.b16 %v4329
    %v4860 = vunpack.c.l.b16 %v4330
    %v4861 = vunpack.c.h.b16 %v4330
    %v4862 = vunpack.c.l.b16 %v4331
    %v4863 = vunpack.c.h.b16 %v4331
    %v4864 = vunpack.c.l.b16 %v4332
    %v4865 = vunpack.c.h.b16 %v4332
    %v4866 = vunpack.c.l.b16 %v4333
    %v4867 = vunpack.c.h.b16 %v4333
    %v4868 = vunpack.c.l.b16 %v4334
    %v4869 = vunpack.c.h.b16 %v4334
    %v4870 = vunpack.c.l.b16 %v4335
    %v4871 = vunpack.c.h.b16 %v4335
    %v4872 = vunpack.c.l.b16 %v4336
    %v4873 = vunpack.c.h.b16 %v4336
    %v4874 = vunpack.c.l.b16 %v4337
    %v4875 = vunpack.c.h.b16 %v4337
    %v4876 = vunpack.c.l.b16 %v4338
    %v4877 = vunpack.c.h.b16 %v4338
    %v4878 = vunpack.c.l.b16 %v4339
    %v4879 = vunpack.c.h.b16 %v4339
    %v4880 = vunpack.c.l.b16 %v4340
    %v4881 = vunpack.c.h.b16 %v4340
    %v4882 = vunpack.c.l.b16 %v4341
    %v4883 = vunpack.c.h.b16 %v4341
    %v4884 = vunpack.c.l.b16 %v4342
    %v4885 = vunpack.c.h.b16 %v4342
    %v4886 = vunpack.c.l.b16 %v4343
    %v4887 = vunpack.c.h.b16 %v4343
    %v4888 = vunpack.c.l.b16 %v4344
    %v4889 = vunpack.c.h.b16 %v4344
    %v4890 = vunpack.c.l.b16 %v4345
    %v4891 = vunpack.c.h.b16 %v4345
    %v4892 = vunpack.c.l.b16 %v4346
    %v4893 = vunpack.c.h.b16 %v4346
    %v4894 = vunpack.c.l.b16 %v4347
    %v4895 = vunpack.c.h.b16 %v4347
    %v4896 = vunpack.c.l.b16 %v4348
    %v4897 = vunpack.c.h.b16 %v4348
    %v4898 = vunpack.c.l.b16 %v4349
    %v4899 = vunpack.c.h.b16 %v4349
    %v4900 = vunpack.c.l.b16 %v4350
    %v4901 = vunpack.c.h.b16 %v4350
    %v4902 = vunpack.c.l.b16 %v4351
    %v4903 = vunpack.c.h.b16 %v4351
    %v4904 = vunpack.c.l.b16 %v4352
    %v4905 = vunpack.c.h.b16 %v4352
    %v4906 = vunpack.c.l.b16 %v4353
    %v4907 = vunpack.c.h.b16 %v4353
    %v4908 = vunpack.c.l.b16 %v4354
    %v4909 = vunpack.c.h.b16 %v4354
    %v4910 = vunpack.c.l.b16 %v4355
    %v4911 = vunpack.c.h.b16 %v4355
    %v4912 = vunpack.c.l.b16 %v4356
    %v4913 = vunpack.c.h.b16 %v4356
    %v4914 = vunpack.c.l.b16 %v4357
    %v4915 = vunpack.c.h.b16 %v4357
    %v4916 = vunpack.c.l.b16 %v4358
    %v4917 = vunpack.c.h.b16 %v4358
    %v4918 = vunpack.c.l.b16 %v4359
    %v4919 = vunpack.c.h.b16 %v4359
    %v4920 = vunpack.c.l.b16 %v4360
    %v4921 = vunpack.c.h.b16 %v4360
    %v4922 = vunpack.c.l.b16 %v4361
    %v4923 = vunpack.c.h.b16 %v4361
    %v4924 = vunpack.c.l.b16 %v4362
    %v4925 = vunpack.c.h.b16 %v4362
    %v4926 = vunpack.c.l.b16 %v4363
    %v4927 = vunpack.c.h.b16 %v4363
    %v4928 = vunpack.c.l.b16 %v4364
    %v4929 = vunpack.c.h.b16 %v4364
    %v4930 = vunpack.c.l.b16 %v4365
    %v4931 = vunpack.c.h.b16 %v4365
    %v4932 = vunpack.c.l.b16 %v4366
    %v4933 = vunpack.c.h.b16 %v4366
    %v4934 = vunpack.c.l.b16 %v4367
    %v4935 = vunpack.c.h.b16 %v4367
    %v4936 = vunpack.c.l.b16 %v4368
    %v4937 = vunpack.c.h.b16 %v4368
    %v4938 = vunpack.c.l.b16 %v4369
    %v4939 = vunpack.c.h.b16 %v4369
    %v4940 = vunpack.c.l.b16 %v4370
    %v4941 = vunpack.c.h.b16 %v4370
    %v4942 = vunpack.c.l.b16 %v4371
    %v4943 = vunpack.c.h.b16 %v4371
    %v4944 = vunpack.c.l.b16 %v4372
    %v4945 = vunpack.c.h.b16 %v4372
    %v4946 = vunpack.c.l.b16 %v4373
    %v4947 = vunpack.c.h.b16 %v4373
    %v4948 = vunpack.c.l.b16 %v4374
    %v4949 = vunpack.c.h.b16 %v4374
    %v4950 = vunpack.c.l.b16 %v4375
    %v4951 = vunpack.c.h.b16 %v4375
    %v4952 = vunpack.c.l.b16 %v4376
    %v4953 = vunpack.c.h.b16 %v4376
    %v4954 = vunpack.c.l.b16 %v4377
    %v4955 = vunpack.c.h.b16 %v4377
    %v4956 = vunpack.c.l.b16 %v4378
    %v4957 = vunpack.c.h.b16 %v4378
    %v4958 = vunpack.c.l.b16 %v4379
    %v4959 = vunpack.c.h.b16 %v4379
    %v4960 = vunpack.c.l.b16 %v4380
    %v4961 = vunpack.c.h.b16 %v4380
    %v4962 = vunpack.c.l.b16 %v4381
    %v4963 = vunpack.c.h.b16 %v4381
    %v4964 = vunpack.c.l.b16 %v4382
    %v4965 = vunpack.c.h.b16 %v4382
    %v4966 = vunpack.c.l.b16 %v4383
    %v4967 = vunpack.c.h.b16 %v4383
    %v4968 = vunpack.c.l.b16 %v4384
    %v4969 = vunpack.c.h.b16 %v4384
    %v4970 = vunpack.c.l.b16 %v4385
    %v4971 = vunpack.c.h.b16 %v4385
    %v4972 = vunpack.c.l.b16 %v4386
    %v4973 = vunpack.c.h.b16 %v4386
    %v4974 = vunpack.c.l.b16 %v4387
    %v4975 = vunpack.c.h.b16 %v4387
    %v4976 = vunpack.c.l.b16 %v4388
    %v4977 = vunpack.c.h.b16 %v4388
    %v4978 = vunpack.c.l.b16 %v4389
    %v4979 = vunpack.c.h.b16 %v4389
    %v4980 = vunpack.c.l.b16 %v4390
    %v4981 = vunpack.c.h.b16 %v4390
    %v4982 = vunpack.c.l.b16 %v4391
    %v4983 = vunpack.c.h.b16 %v4391
    %v4984 = vunpack.c.l.b16 %v4392
    %v4985 = vunpack.c.h.b16 %v4392
    %v4986 = vunpack.c.l.b16 %v4393
    %v4987 = vunpack.c.h.b16 %v4393
    %v4988 = vunpack.c.l.b16 %v4394
    %v4989 = vunpack.c.h.b16 %v4394
    %v4990 = vunpack.c.l.b16 %v4395
    %v4991 = vunpack.c.h.b16 %v4395
    %v4992 = vunpack.c.l.b16 %v4396
    %v4993 = vunpack.c.h.b16 %v4396
    %v4994 = vunpack.c.l.b16 %v4397
    %v4995 = vunpack.c.h.b16 %v4397
    %v4996 = vunpack.c.l.b16 %v4398
    %v4997 = vunpack.c.h.b16 %v4398
    %v4998 = vunpack.c.l.b16 %v4399
    %v4999 = vunpack.c.h.b16 %v4399
    %v5000 = vunpack.c.l.b16 %v4400
    %v5001 = vunpack.c.h.b16 %v4400
    %v5002 = vunpack.c.l.b16 %v4401
    %v5003 = vunpack.c.h.b16 %v4401
    %v5004 = vunpack.c.l.b16 %v4402
    %v5005 = vunpack.c.h.b16 %v4402
    %v5006 = vunpack.c.l.b16 %v4403
    %v5007 = vunpack.c.h.b16 %v4403
    %v5008 = vunpack.c.l.b16 %v4404
    %v5009 = vunpack.c.h.b16 %v4404
    %v5010 = vunpack.c.l.b16 %v4405
    %v5011 = vunpack.c.h.b16 %v4405
    %v5012 = vunpack.c.l.b16 %v4406
    %v5013 = vunpack.c.h.b16 %v4406
    %v5014 = vunpack.c.l.b16 %v4407
    %v5015 = vunpack.c.h.b16 %v4407
    %v5016 = vunpack.c.l.b16 %v4408
    %v5017 = vunpack.c.h.b16 %v4408
    %v5018 = vunpack.c.l.b16 %v4409
    %v5019 = vunpack.c.h.b16 %v4409
    %v5020 = vunpack.c.l.b16 %v4410
    %v5021 = vunpack.c.h.b16 %v4410
    %v5022 = vunpack.c.l.b16 %v4411
    %v5023 = vunpack.c.h.b16 %v4411
    %v5024 = vunpack.c.l.b16 %v4412
    %v5025 = vunpack.c.h.b16 %v4412
    %v5026 = vunpack.c.l.b16 %v4413
    %v5027 = vunpack.c.h.b16 %v4413
    %v5028 = vunpack.c.l.b16 %v4414
    %v5029 = vunpack.c.h.b16 %v4414
    %v5030 = vunpack.c.l.b16 %v4415
    %v5031 = vunpack.c.h.b16 %v4415
    %v5032 = vunpack.c.l.b16 %v4416
    %v5033 = vunpack.c.h.b16 %v4416
    %v5034 = vunpack.c.l.b16 %v4417
    %v5035 = vunpack.c.h.b16 %v4417
    %v5036 = vunpack.c.l.b16 %v4418
    %v5037 = vunpack.c.h.b16 %v4418
    %v5038 = vunpack.c.l.b16 %v4419
    %v5039 = vunpack.c.h.b16 %v4419
    %v5040 = vunpack.c.l.b16 %v4420
    %v5041 = vunpack.c.h.b16 %v4420
    %v5042 = vunpack.c.l.b16 %v4421
    %v5043 = vunpack.c.h.b16 %v4421
    %v5044 = vunpack.c.l.b16 %v4422
    %v5045 = vunpack.c.h.b16 %v4422
    %v5046 = vunpack.c.l.b16 %v4423
    %v5047 = vunpack.c.h.b16 %v4423
    %v5048 = vunpack.c.l.b16 %v4424
    %v5049 = vunpack.c.h.b16 %v4424
    %v5050 = vunpack.c.l.b16 %v4425
    %v5051 = vunpack.c.h.b16 %v4425
    %v5052 = vunpack.c.l.b16 %v4426
    %v5053 = vunpack.c.h.b16 %v4426
    %v5054 = vunpack.c.l.b16 %v4427
    %v5055 = vunpack.c.h.b16 %v4427
    %v5056 = vunpack.c.l.b16 %v4428
    %v5057 = vunpack.c.h.b16 %v4428
    %v5058 = vunpack.c.l.b16 %v4429
    %v5059 = vunpack.c.h.b16 %v4429
    %v5060 = vunpack.c.l.b16 %v4430
    %v5061 = vunpack.c.h.b16 %v4430
    %v5062 = vunpack.c.l.b16 %v4431
    %v5063 = vunpack.c.h.b16 %v4431
    %v5064 = vunpack.c.l.b16 %v4432
    %v5065 = vunpack.c.h.b16 %v4432
    %v5066 = vunpack.c.l.b16 %v4433
    %v5067 = vunpack.c.h.b16 %v4433
    %v5068 = vunpack.c.l.b16 %v4434
    %v5069 = vunpack.c.h.b16 %v4434
    %v5070 = vunpack.c.l.b16 %v4435
    %v5071 = vunpack.c.h.b16 %v4435
    %v5072 = vunpack.c.l.b16 %v4436
    %v5073 = vunpack.c.h.b16 %v4436
    %v5074 = vunpack.c.l.b16 %v4437
    %v5075 = vunpack.c.h.b16 %v4437
    %v5076 = vunpack.c.l.b16 %v4438
    %v5077 = vunpack.c.h.b16 %v4438
    %v5078 = vunpack.c.l.b16 %v4439
    %v5079 = vunpack.c.h.b16 %v4439
    %v5080 = vunpack.c.l.b16 %v4440
    %v5081 = vunpack.c.h.b16 %v4440
    %v5082 = vunpack.c.l.b16 %v4441
    %v5083 = vunpack.c.h.b16 %v4441
    %v5084 = vunpack.c.l.b16 %v4442
    %v5085 = vunpack.c.h.b16 %v4442
    %v5086 = vunpack.c.l.b16 %v4443
    %v5087 = vunpack.c.h.b16 %v4443
    %v5088 = vunpack.c.l.b16 %v4444
    %v5089 = vunpack.c.h.b16 %v4444
    %v5090 = vunpack.c.l.b16 %v4445
    %v5091 = vunpack.c.h.b16 %v4445
    %v5092 = vunpack.c.l.b16 %v4446
    %v5093 = vunpack.c.h.b16 %v4446
    %v5094 = vunpack.c.l.b16 %v4447
    %v5095 = vunpack.c.h.b16 %v4447
    %v5096 = vunpack.c.l.b16 %v4448
    %v5097 = vunpack.c.h.b16 %v4448
    %v5098 = vunpack.c.l.b16 %v4449
    %v5099 = vunpack.c.h.b16 %v4449
    %v5100 = vunpack.c.l.b16 %v4450
    %v5101 = vunpack.c.h.b16 %v4450
    %v5102 = vunpack.c.l.b16 %v4451
    %v5103 = vunpack.c.h.b16 %v4451
    %v5104 = vunpack.c.l.b16 %v4452
    %v5105 = vunpack.c.h.b16 %v4452
    %v5106 = vunpack.c.l.b16 %v4453
    %v5107 = vunpack.c.h.b16 %v4453
    %v5108 = vunpack.c.l.b16 %v4454
    %v5109 = vunpack.c.h.b16 %v4454
    %v5110 = vunpack.c.l.b16 %v4455
    %v5111 = vunpack.c.h.b16 %v4455
    %v5112 = vunpack.c.l.b16 %v4456
    %v5113 = vunpack.c.h.b16 %v4456
    %v5114 = vunpack.c.l.b16 %v4457
    %v5115 = vunpack.c.h.b16 %v4457
    %v5116 = vunpack.c.l.b16 %v4458
    %v5117 = vunpack.c.h.b16 %v4458
    %v5118 = vunpack.c.l.b16 %v4459
    %v5119 = vunpack.c.h.b16 %v4459
    %v5120 = vunpack.c.l.b16 %v4460
    %v5121 = vunpack.c.h.b16 %v4460
    %v5122 = vunpack.c.l.b16 %v4461
    %v5123 = vunpack.c.h.b16 %v4461
    %v5124 = vunpack.c.l.b16 %v4462
    %v5125 = vunpack.c.h.b16 %v4462
    %v5126 = vunpack.c.l.b16 %v4463
    %v5127 = vunpack.c.h.b16 %v4463
    %v5128 = vunpack.c.l.b16 %v4464
    %v5129 = vunpack.c.h.b16 %v4464
    %v5130 = vunpack.c.l.b16 %v4465
    %v5131 = vunpack.c.h.b16 %v4465
    %v5132 = vunpack.c.l.b16 %v4466
    %v5133 = vunpack.c.h.b16 %v4466
    %v5134 = vunpack.c.l.b16 %v4467
    %v5135 = vunpack.c.h.b16 %v4467
    %v5136 = vunpack.c.l.b16 %v4468
    %v5137 = vunpack.c.h.b16 %v4468
    %v5138 = vunpack.c.l.b16 %v4469
    %v5139 = vunpack.c.h.b16 %v4469
    %v5140 = vunpack.c.l.b16 %v4470
    %v5141 = vunpack.c.h.b16 %v4470
    %v5142 = vunpack.c.l.b16 %v4471
    %v5143 = vunpack.c.h.b16 %v4471
    %v5144 = vunpack.c.l.b16 %v4472
    %v5145 = vunpack.c.h.b16 %v4472
    %v5146 = vunpack.c.l.b16 %v4473
    %v5147 = vunpack.c.h.b16 %v4473
    %v5148 = vunpack.c.l.b16 %v4474
    %v5149 = vunpack.c.h.b16 %v4474
    %v5150 = vunpack.c.l.b16 %v4475
    %v5151 = vunpack.c.h.b16 %v4475
    %v5152 = vunpack.c.l.b16 %v4476
    %v5153 = vunpack.c.h.b16 %v4476
    %v5154 = vunpack.c.l.b16 %v4477
    %v5155 = vunpack.c.h.b16 %v4477
    %v5156 = vunpack.c.l.b16 %v4478
    %v5157 = vunpack.c.h.b16 %v4478
    %v5158 = vunpack.c.l.b16 %v4479
    %v5159 = vunpack.c.h.b16 %v4479
    %v5160 = vunpack.c.l.b16 %v4480
    %v5161 = vunpack.c.h.b16 %v4480
    %v5162 = vunpack.c.l.b16 %v4481
    %v5163 = vunpack.c.h.b16 %v4481
    %v5164 = vunpack.c.l.b16 %v4482
    %v5165 = vunpack.c.h.b16 %v4482
    %v5166 = vunpack.c.l.b16 %v4483
    %v5167 = vunpack.c.h.b16 %v4483
    %v5168 = vunpack.c.l.b16 %v4484
    %v5169 = vunpack.c.h.b16 %v4484
    %v5170 = vunpack.c.l.b16 %v4485
    %v5171 = vunpack.c.h.b16 %v4485
    %v5172 = vunpack.c.l.b16 %v4486
    %v5173 = vunpack.c.h.b16 %v4486
    %v5174 = vunpack.c.l.b16 %v4487
    %v5175 = vunpack.c.h.b16 %v4487
    %v5176 = vunpack.c.l.b16 %v4488
    %v5177 = vunpack.c.h.b16 %v4488
    %v5178 = vunpack.c.l.b16 %v4489
    %v5179 = vunpack.c.h.b16 %v4489
    %v5180 = vunpack.c.l.b16 %v4490
    %v5181 = vunpack.c.h.b16 %v4490
    %v5182 = vunpack.c.l.b16 %v4491
    %v5183 = vunpack.c.h.b16 %v4491
    %v5184 = vunpack.c.l.b16 %v4492
    %v5185 = vunpack.c.h.b16 %v4492
    %v5186 = vunpack.c.l.b16 %v4493
    %v5187 = vunpack.c.h.b16 %v4493
    %v5188 = vunpack.c.l.b16 %v4494
    %v5189 = vunpack.c.h.b16 %v4494
    %v5190 = vunpack.c.l.b16 %v4495
    %v5191 = vunpack.c.h.b16 %v4495
    %v5192 = vunpack.c.l.b16 %v4496
    %v5193 = vunpack.c.h.b16 %v4496
    %v5194 = vunpack.c.l.b16 %v4497
    %v5195 = vunpack.c.h.b16 %v4497
    %v5196 = vunpack.c.l.b16 %v4498
    %v5197 = vunpack.c.h.b16 %v4498
    %v5198 = vunpack.c.l.b16 %v4499
    %v5199 = vunpack.c.h.b16 %v4499
    %v5200 = vunpack.c.l.b16 %v4500
    %v5201 = vunpack.c.h.b16 %v4500
    %v5202 = vunpack.c.l.b16 %v4501
    %v5203 = vunpack.c.h.b16 %v4501
    %v5204 = vunpack.c.l.b16 %v4502
    %v5205 = vunpack.c.h.b16 %v4502
    %v5206 = vunpack.c.l.b16 %v4503
    %v5207 = vunpack.c.h.b16 %v4503
    %v5208 = vunpack.c.l.b16 %v4504
    %v5209 = vunpack.c.h.b16 %v4504
    %v5210 = vunpack.c.l.b16 %v4505
    %v5211 = vunpack.c.h.b16 %v4505
    %v5212 = vunpack.c.l.b16 %v4506
    %v5213 = vunpack.c.h.b16 %v4506
    %v5214 = vunpack.c.l.b16 %v4507
    %v5215 = vunpack.c.h.b16 %v4507
    %v5216 = vunpack.c.l.b16 %v4508
    %v5217 = vunpack.c.h.b16 %v4508
    %v5218 = vunpack.c.l.b16 %v4509
    %v5219 = vunpack.c.h.b16 %v4509
    %v5220 = vunpack.c.l.b16 %v4510
    %v5221 = vunpack.c.h.b16 %v4510
    %v5222 = vunpack.c.l.b16 %v4511
    %v5223 = vunpack.c.h.b16 %v4511
    %v5224 = vunpack.c.l.b16 %v4512
    %v5225 = vunpack.c.h.b16 %v4512
    %v5226 = vunpack.c.l.b16 %v4513
    %v5227 = vunpack.c.h.b16 %v4513
    %v5228 = vunpack.c.l.b16 %v4514
    %v5229 = vunpack.c.h.b16 %v4514
    %v5230 = vunpack.c.l.b16 %v4515
    %v5231 = vunpack.c.h.b16 %v4515
    %v5232 = vunpack.c.l.b16 %v4516
    %v5233 = vunpack.c.h.b16 %v4516
    %v5234 = vunpack.c.l.b16 %v4517
    %v5235 = vunpack.c.h.b16 %v4517
    %v5236 = vunpack.c.l.b16 %v4518
    %v5237 = vunpack.c.h.b16 %v4518
    %v5238 = vunpack.c.l.b16 %v4519
    %v5239 = vunpack.c.h.b16 %v4519
    %v5240 = vunpack.c.l.b16 %v4520
    %v5241 = vunpack.c.h.b16 %v4520
    %v5242 = vunpack.c.l.b16 %v4521
    %v5243 = vunpack.c.h.b16 %v4521
    %v5244 = vunpack.c.l.b16 %v4522
    %v5245 = vunpack.c.h.b16 %v4522
    %v5246 = vunpack.c.l.b16 %v4523
    %v5247 = vunpack.c.h.b16 %v4523
    %v5248 = vunpack.c.l.b16 %v4524
    %v5249 = vunpack.c.h.b16 %v4524
    %v5250 = vunpack.c.l.b16 %v4525
    %v5251 = vunpack.c.h.b16 %v4525
    %v5252 = vunpack.c.l.b16 %v4526
    %v5253 = vunpack.c.h.b16 %v4526
    %v5254 = vunpack.c.l.b16 %v4527
    %v5255 = vunpack.c.h.b16 %v4527
    %v5256 = vunpack.c.l.b16 %v4528
    %v5257 = vunpack.c.h.b16 %v4528
    %v5258 = vunpack.c.l.b16 %v4529
    %v5259 = vunpack.c.h.b16 %v4529
    %v5260 = vunpack.c.l.b16 %v4530
    %v5261 = vunpack.c.h.b16 %v4530
    %v5262 = vunpack.c.l.b16 %v4531
    %v5263 = vunpack.c.h.b16 %v4531
    %v5264 = vunpack.c.l.b16 %v4532
    %v5265 = vunpack.c.h.b16 %v4532
    %v5266 = vunpack.c.l.b16 %v4533
    %v5267 = vunpack.c.h.b16 %v4533
    %v5268 = vunpack.c.l.b16 %v4534
    %v5269 = vunpack.c.h.b16 %v4534
    %v5270 = vunpack.c.l.b16 %v4535
    %v5271 = vunpack.c.h.b16 %v4535
    %v5272 = vunpack.c.l.b16 %v4536
    %v5273 = vunpack.c.h.b16 %v4536
    %v5274 = vunpack.c.l.b16 %v4537
    %v5275 = vunpack.c.h.b16 %v4537
    %v5276 = vunpack.c.l.b16 %v4538
    %v5277 = vunpack.c.h.b16 %v4538
    %v5278 = vunpack.c.l.b16 %v4539
    %v5279 = vunpack.c.h.b16 %v4539
    %v5280 = vunpack.c.l.b16 %v4540
    %v5281 = vunpack.c.h.b16 %v4540
    %v5282 = vunpack.c.l.b16 %v4541
    %v5283 = vunpack.c.h.b16 %v4541
    %v5284 = vunpack.c.l.b16 %v4542
    %v5285 = vunpack.c.h.b16 %v4542
    %v5286 = vunpack.c.l.b16 %v4543
    %v5287 = vunpack.c.h.b16 %v4543
    %v5288 = vunpack.c.l.b16 %v4544
    %v5289 = vunpack.c.h.b16 %v4544
    %v5290 = vunpack.c.l.b16 %v4545
    %v5291 = vunpack.c.h.b16 %v4545
    %v5292 = vunpack.c.l.b16 %v4546
    %v5293 = vunpack.c.h.b16 %v4546
    %v5294 = vunpack.c.l.b16 %v4547
    %v5295 = vunpack.c.h.b16 %v4547
    %v5296 = vunpack.c.l.b16 %v4548
    %v5297 = vunpack.c.h.b16 %v4548
    %v5298 = vunpack.c.l.b16 %v4549
    %v5299 = vunpack.c.h.b16 %v4549
    %v5300 = vunpack.c.l.b16 %v4550
    %v5301 = vunpack.c.h.b16 %v4550
    %v5302 = vunpack.c.l.b16 %v4551
    %v5303 = vunpack.c.h.b16 %v4551
    %v5304 = vunpack.c.l.b16 %v4552
    %v5305 = vunpack.c.h.b16 %v4552
    %v5306 = vunpack.c.l.b16 %v4553
    %v5307 = vunpack.c.h.b16 %v4553
    %v5308 = vunpack.c.l.b16 %v4554
    %v5309 = vunpack.c.h.b16 %v4554
    %v5310 = vunpack.c.l.b16 %v4555
    %v5311 = vunpack.c.h.b16 %v4555
    %v5312 = vunpack.c.l.b16 %v4556
    %v5313 = vunpack.c.h.b16 %v4556
    %v5314 = vunpack.c.l.b16 %v4557
    %v5315 = vunpack.c.h.b16 %v4557
    %v5316 = vunpack.c.l.b16 %v4558
    %v5317 = vunpack.c.h.b16 %v4558
    %v5318 = vunpack.c.l.b16 %v4559
    %v5319 = vunpack.c.h.b16 %v4559
    %v5320 = vunpack.c.l.b16 %v4560
    %v5321 = vunpack.c.h.b16 %v4560
    %v5322 = vunpack.c.l.b16 %v4561
    %v5323 = vunpack.c.h.b16 %v4561
    %v5324 = vunpack.c.l.b16 %v4562
    %v5325 = vunpack.c.h.b16 %v4562
    %v5326 = vunpack.c.l.b16 %v4563
    %v5327 = vunpack.c.h.b16 %v4563
    %v5328 = vunpack.c.l.b16 %v4564
    %v5329 = vunpack.c.h.b16 %v4564
    %v5330 = vunpack.c.l.b16 %v4565
    %v5331 = vunpack.c.h.b16 %v4565
    %v5332 = vunpack.c.l.b16 %v4566
    %v5333 = vunpack.c.h.b16 %v4566
    %v5334 = vunpack.c.l.b16 %v4567
    %v5335 = vunpack.c.h.b16 %v4567
    %v5336 = vpack.c.b16 %v4826, %v4824
    %v5337 = vpack.c.b16 %v4827, %v4825
    %v5338 = vpack.c.b16 %v4830, %v4828
    %v5339 = vpack.c.b16 %v4831, %v4829
    %v5340 = vpack.c.b16 %v4834, %v4832
    %v5341 = vpack.c.b16 %v4835, %v4833
    %v5342 = vpack.c.b16 %v4838, %v4836
    %v5343 = vpack.c.b16 %v4839, %v4837
    %v5344 = vpack.c.b16 %v4842, %v4840
    %v5345 = vpack.c.b16 %v4843, %v4841
    %v5346 = vpack.c.b16 %v4846, %v4844
    %v5347 = vpack.c.b16 %v4847, %v4845
    %v5348 = vpack.c.b16 %v4850, %v4848
    %v5349 = vpack.c.b16 %v4851, %v4849
    %v5350 = vpack.c.b16 %v4854, %v4852
    %v5351 = vpack.c.b16 %v4855, %v4853
    %v5352 = vpack.c.b16 %v4858, %v4856
    %v5353 = vpack.c.b16 %v4859, %v4857
    %v5354 = vpack.c.b16 %v4862, %v4860
    %v5355 = vpack.c.b16 %v4863, %v4861
    %v5356 = vpack.c.b16 %v4866, %v4864
    %v5357 = vpack.c.b16 %v4867, %v4865
    %v5358 = vpack.c.b16 %v4870, %v4868
    %v5359 = vpack.c.b16 %v4871, %v4869
    %v5360 = vpack.c.b16 %v4874, %v4872
    %v5361 = vpack.c.b16 %v4875, %v4873
    %v5362 = vpack.c.b16 %v4878, %v4876
    %v5363 = vpack.c.b16 %v4879, %v4877
    %v5364 = vpack.c.b16 %v4882, %v4880
    %v5365 = vpack.c.b16 %v4883, %v4881
    %v5366 = vpack.c.b16 %v4886, %v4884
    %v5367 = vpack.c.b16 %v4887, %v4885
    %v5368 = vpack.c.b16 %v4890, %v4888
    %v5369 = vpack.c.b16 %v4891, %v4889
    %v5370 = vpack.c.b16 %v4894, %v4892
    %v5371 = vpack.c.b16 %v4895, %v4893
    %v5372 = vpack.c.b16 %v4898, %v4896
    %v5373 = vpack.c.b16 %v4899, %v4897
    %v5374 = vpack.c.b16 %v4902, %v4900
    %v5375 = vpack.c.b16 %v4903, %v4901
    %v5376 = vpack.c.b16 %v4906, %v4904
    %v5377 = vpack.c.b16 %v4907, %v4905
    %v5378 = vpack.c.b16 %v4910, %v4908
    %v5379 = vpack.c.b16 %v4911, %v4909
    %v5380 = vpack.c.b16 %v4914, %v4912
    %v5381 = vpack.c.b16 %v4915, %v4913
    %v5382 = vpack.c.b16 %v4918, %v4916
    %v5383 = vpack.c.b16 %v4919, %v4917
    %v5384 = vpack.c.b16 %v4922, %v4920
    %v5385 = vpack.c.b16 %v4923, %v4921
    %v5386 = vpack.c.b16 %v4926, %v4924
    %v5387 = vpack.c.b16 %v4927, %v4925
    %v5388 = vpack.c.b16 %v4930, %v4928
    %v5389 = vpack.c.b16 %v4931, %v4929
    %v5390 = vpack.c.b16 %v4934, %v4932
    %v5391 = vpack.c.b16 %v4935, %v4933
    %v5392 = vpack.c.b16 %v4938, %v4936
    %v5393 = vpack.c.b16 %v4939, %v4937
    %v5394 = vpack.c.b16 %v4942, %v4940
    %v5395 = vpack.c.b16 %v4943, %v4941
    %v5396 = vpack.c.b16 %v4946, %v4944
    %v5397 = vpack.c.b16 %v4947, %v4945
    %v5398 = vpack.c.b16 %v4950, %v4948
    %v5399 = vpack.c.b16 %v4951, %v4949
    %v5400 = vpack.c.b16 %v4954, %v4952
    %v5401 = vpack.c.b16 %v4955, %v4953
    %v5402 = vpack.c.b16 %v4958, %v4956
    %v5403 = vpack.c.b16 %v4959, %v4957
    %v5404 = vpack.c.b16 %v4962, %v4960
    %v5405 = vpack.c.b16 %v4963, %v4961
    %v5406 = vpack.c.b16 %v4966, %v4964
    %v5407 = vpack.c.b16 %v4967, %v4965
    %v5408 = vpack.c.b16 %v4970, %v4968
    %v5409 = vpack.c.b16 %v4971, %v4969
    %v5410 = vpack.c.b16 %v4974, %v4972
    %v5411 = vpack.c.b16 %v4975, %v4973
    %v5412 = vpack.c.b16 %v4978, %v4976
    %v5413 = vpack.c.b16 %v4979, %v4977
    %v5414 = vpack.c.b16 %v4982, %v4980
    %v5415 = vpack.c.b16 %v4983, %v4981
    %v5416 = vpack.c.b16 %v4986, %v4984
    %v5417 = vpack.c.b16 %v4987, %v4985
    %v5418 = vpack.c.b16 %v4990, %v4988
    %v5419 = vpack.c.b16 %v4991, %v4989
    %v5420 = vpack.c.b16 %v4994, %v4992
    %v5421 = vpack.c.b16 %v4995, %v4993
    %v5422 = vpack.c.b16 %v4998, %v4996
    %v5423 = vpack.c.b16 %v4999, %v4997
    %v5424 = vpack.c.b16 %v5002, %v5000
    %v5425 = vpack.c.b16 %v5003, %v5001
    %v5426 = vpack.c.b16 %v5006, %v5004
    %v5427 = vpack.c.b16 %v5007, %v5005
    %v5428 = vpack.c.b16 %v5010, %v5008
    %v5429 = vpack.c.b16 %v5011, %v5009
    %v5430 = vpack.c.b16 %v5014, %v5012
    %v5431 = vpack.c.b16 %v5015, %v5013
    %v5432 = vpack.c.b16 %v5018, %v5016
    %v5433 = vpack.c.b16 %v5019, %v5017
    %v5434 = vpack.c.b16 %v5022, %v5020
    %v5435 = vpack.c.b16 %v5023, %v5021
    %v5436 = vpack.c.b16 %v5026, %v5024
    %v5437 = vpack.c.b16 %v5027, %v5025
    %v5438 = vpack.c.b16 %v5030, %v5028
    %v5439 = vpack.c.b16 %v5031, %v5029
    %v5440 = vpack.c.b16 %v5034, %v5032
    %v5441 = vpack.c.b16 %v5035, %v5033
    %v5442 = vpack.c.b16 %v5038, %v5036
    %v5443 = vpack.c.b16 %v5039, %v5037
    %v5444 = vpack.c.b16 %v5042, %v5040
    %v5445 = vpack.c.b16 %v5043, %v5041
    %v5446 = vpack.c.b16 %v5046, %v5044
    %v5447 = vpack.c.b16 %v5047, %v5045
    %v5448 = vpack.c.b16 %v5050, %v5048
    %v5449 = vpack.c.b16 %v5051, %v5049
    %v5450 = vpack.c.b16 %v5054, %v5052
    %v5451 = vpack.c.b16 %v5055, %v5053
    %v5452 = vpack.c.b16 %v5058, %v5056
    %v5453 = vpack.c.b16 %v5059, %v5057
    %v5454 = vpack.c.b16 %v5062, %v5060
    %v5455 = vpack.c.b16 %v5063, %v5061
    %v5456 = vpack.c.b16 %v5066, %v5064
    %v5457 = vpack.c.b16 %v5067, %v5065
    %v5458 = vpack.c.b16 %v5070, %v5068
    %v5459 = vpack.c.b16 %v5071, %v5069
    %v5460 = vpack.c.b16 %v5074, %v5072
    %v5461 = vpack.c.b16 %v5075, %v5073
    %v5462 = vpack.c.b16 %v5078, %v5076
    %v5463 = vpack.c.b16 %v5079, %v5077
    %v5464 = vpack.c.b16 %v5082, %v5080
    %v5465 = vpack.c.b16 %v5083, %v5081
    %v5466 = vpack.c.b16 %v5086, %v5084
    %v5467 = vpack.c.b16 %v5087, %v5085
    %v5468 = vpack.c.b16 %v5090, %v5088
    %v5469 = vpack.c.b16 %v5091, %v5089
    %v5470 = vpack.c.b16 %v5094, %v5092
    %v5471 = vpack.c.b16 %v5095, %v5093
    %v5472 = vpack.c.b16 %v5098, %v5096
    %v5473 = vpack.c.b16 %v5099, %v5097
    %v5474 = vpack.c.b16 %v5102, %v5100
    %v5475 = vpack.c.b16 %v5103, %v5101
    %v5476 = vpack.c.b16 %v5106, %v5104
    %v5477 = vpack.c.b16 %v5107, %v5105
    %v5478 = vpack.c.b16 %v5110, %v5108
    %v5479 = vpack.c.b16 %v5111, %v5109
    %v5480 = vpack.c.b16 %v5114, %v5112
    %v5481 = vpack.c.b16 %v5115, %v5113
    %v5482 = vpack.c.b16 %v5118, %v5116
    %v5483 = vpack.c.b16 %v5119, %v5117
    %v5484 = vpack.c.b16 %v5122, %v5120
    %v5485 = vpack.c.b16 %v5123, %v5121
    %v5486 = vpack.c.b16 %v5126, %v5124
    %v5487 = vpack.c.b16 %v5127, %v5125
    %v5488 = vpack.c.b16 %v5130, %v5128
    %v5489 = vpack.c.b16 %v5131, %v5129
    %v5490 = vpack.c.b16 %v5134, %v5132
    %v5491 = vpack.c.b16 %v5135, %v5133
    %v5492 = vpack.c.b16 %v5138, %v5136
    %v5493 = vpack.c.b16 %v5139, %v5137
    %v5494 = vpack.c.b16 %v5142, %v5140
    %v5495 = vpack.c.b16 %v5143, %v5141
    %v5496 = vpack.c.b16 %v5146, %v5144
    %v5497 = vpack.c.b16 %v5147, %v5145
    %v5498 = vpack.c.b16 %v5150, %v5148
    %v5499 = vpack.c.b16 %v5151, %v5149
    %v5500 = vpack.c.b16 %v5154, %v5152
    %v5501 = vpack.c.b16 %v5155, %v5153
    %v5502 = vpack.c.b16 %v5158, %v5156
    %v5503 = vpack.c.b16 %v5159, %v5157
    %v5504 = vpack.c.b16 %v5162, %v5160
    %v5505 = vpack.c.b16 %v5163, %v5161
    %v5506 = vpack.c.b16 %v5166, %v5164
    %v5507 = vpack.c.b16 %v5167, %v5165
    %v5508 = vpack.c.b16 %v5170, %v5168
    %v5509 = vpack.c.b16 %v5171, %v5169
    %v5510 = vpack.c.b16 %v5174, %v5172
    %v5511 = vpack.c.b16 %v5175, %v5173
    %v5512 = vpack.c.b16 %v5178, %v5176
    %v5513 = vpack.c.b16 %v5179, %v5177
    %v5514 = vpack.c.b16 %v5182, %v5180
    %v5515 = vpack.c.b16 %v5183, %v5181
    %v5516 = vpack.c.b16 %v5186, %v5184
    %v5517 = vpack.c.b16 %v5187, %v5185
    %v5518 = vpack.c.b16 %v5190, %v5188
    %v5519 = vpack.c.b16 %v5191, %v5189
    %v5520 = vpack.c.b16 %v5194, %v5192
    %v5521 = vpack.c.b16 %v5195, %v5193
    %v5522 = vpack.c.b16 %v5198, %v5196
    %v5523 = vpack.c.b16 %v5199, %v5197
    %v5524 = vpack.c.b16 %v5202, %v5200
    %v5525 = vpack.c.b16 %v5203, %v5201
    %v5526 = vpack.c.b16 %v5206, %v5204
    %v5527 = vpack.c.b16 %v5207, %v5205
    %v5528 = vpack.c.b16 %v5210, %v5208
    %v5529 = vpack.c.b16 %v5211, %v5209
    %v5530 = vpack.c.b16 %v5214, %v5212
    %v5531 = vpack.c.b16 %v5215, %v5213
    %v5532 = vpack.c.b16 %v5218, %v5216
    %v5533 = vpack.c.b16 %v5219, %v5217
    %v5534 = vpack.c.b16 %v5222, %v5220
    %v5535 = vpack.c.b16 %v5223, %v5221
    %v5536 = vpack.c.b16 %v5226, %v5224
    %v5537 = vpack.c.b16 %v5227, %v5225
    %v5538 = vpack.c.b16 %v5230, %v5228
    %v5539 = vpack.c.b16 %v5231, %v5229
    %v5540 = vpack.c.b16 %v5234, %v5232
    %v5541 = vpack.c.b16 %v5235, %v5233
    %v5542 = vpack.c.b16 %v5238, %v5236
    %v5543 = vpack.c.b16 %v5239, %v5237
    %v5544 = vpack.c.b16 %v5242, %v5240
    %v5545 = vpack.c.b16 %v5243, %v5241
    %v5546 = vpack.c.b16 %v5246, %v5244
    %v5547 = vpack.c.b16 %v5247, %v5245
    %v5548 = vpack.c.b16 %v5250, %v5248
    %v5549 = vpack.c.b16 %v5251, %v5249
    %v5550 = vpack.c.b16 %v5254, %v5252
    %v5551 = vpack.c.b16 %v5255, %v5253
    %v5552 = vpack.c.b16 %v5258, %v5256
    %v5553 = vpack.c.b16 %v5259, %v5257
    %v5554 = vpack.c.b16 %v5262, %v5260
    %v5555 = vpack.c.b16 %v5263, %v5261
    %v5556 = vpack.c.b16 %v5266, %v5264
    %v5557 = vpack.c.b16 %v5267, %v5265
    %v5558 = vpack.c.b16 %v5270, %v5268
    %v5559 = vpack.c.b16 %v5271, %v5269
    %v5560 = vpack.c.b16 %v5274, %v5272
    %v5561 = vpack.c.b16 %v5275, %v5273
    %v5562 = vpack.c.b16 %v5278, %v5276
    %v5563 = vpack.c.b16 %v5279, %v5277
    %v5564 = vpack.c.b16 %v5282, %v5280
    %v5565 = vpack.c.b16 %v5283, %v5281
    %v5566 = vpack.c.b16 %v5286, %v5284
    %v5567 = vpack.c.b16 %v5287, %v5285
    %v5568 = vpack.c.b16 %v5290, %v5288
    %v5569 = vpack.c.b16 %v5291, %v5289
    %v5570 = vpack.c.b16 %v5294, %v5292
    %v5571 = vpack.c.b16 %v5295, %v5293
    %v5572 = vpack.c.b16 %v5298, %v5296
    %v5573 = vpack.c.b16 %v5299, %v5297
    %v5574 = vpack.c.b16 %v5302, %v5300
    %v5575 = vpack.c.b16 %v5303, %v5301
    %v5576 = vpack.c.b16 %v5306, %v5304
    %v5577 = vpack.c.b16 %v5307, %v5305
    %v5578 = vpack.c.b16 %v5310, %v5308
    %v5579 = vpack.c.b16 %v5311, %v5309
    %v5580 = vpack.c.b16 %v5314, %v5312
    %v5581 = vpack.c.b16 %v5315, %v5313
    %v5582 = vpack.c.b16 %v5318, %v5316
    %v5583 = vpack.c.b16 %v5319, %v5317
    %v5584 = vpack.c.b16 %v5322, %v5320
    %v5585 = vpack.c.b16 %v5323, %v5321
    %v5586 = vpack.c.b16 %v5326, %v5324
    %v5587 = vpack.c.b16 %v5327, %v5325
    %v5588 = vpack.c.b16 %v5330, %v5328
    %v5589 = vpack.c.b16 %v5331, %v5329
    %v5590 = vpack.c.b16 %v5334, %v5332
    %v5591 = vpack.c.b16 %v5335, %v5333
    %5848 = vmatpush.bf16.msra.mxu0 %v5350
    %5849 = vmatpush.bf16.msra.mxu0 %v5348
    %5850 = vmatpush.bf16.msra.mxu0 %v5346
    %5851 = vmatpush.bf16.msra.mxu0 %v5344
    %5852 = vmatpush.bf16.msra.mxu0 %v5342
    %5853 = vmatpush.bf16.msra.mxu0 %v5340
    %5854 = vmatpush.bf16.msra.mxu0 %v5338
    %5855 = vmatpush.bf16.msra.mxu0 %v5336
    %5856 = vmatmul.bf16.gmra.mxu0 %v4296
    %v5857 = vpop.f32.mrf.mxu0
    %v5858 = vadd.f32 0.0, %v5857
    %v5859 = vpop.f32.mrf.mxu0
    %5860 = vdwg.mxu0
    %5861 = vmatpush.bf16.msra.mxu0 %v5366
    %5862 = vmatpush.bf16.msra.mxu0 %v5364
    %5863 = vmatpush.bf16.msra.mxu0 %v5362
    %5864 = vmatpush.bf16.msra.mxu0 %v5360
    %5865 = vmatpush.bf16.msra.mxu0 %v5358
    %5866 = vmatpush.bf16.msra.mxu0 %v5356
    %5867 = vmatpush.bf16.msra.mxu0 %v5354
    %5868 = vmatpush.bf16.msra.mxu0 %v5352
    %5869 = vmatmul.bf16.gmra.mxu0 %v4297
    %v5870 = vpop.f32.mrf.mxu0
    %v5871 = vadd.f32 %v5858, %v5870
    %v5872 = vpop.f32.mrf.mxu0
    %5873 = vdwg.mxu0
    %5874 = vmatpush.bf16.msra.mxu0 %v5382
    %5875 = vmatpush.bf16.msra.mxu0 %v5380
    %5876 = vmatpush.bf16.msra.mxu0 %v5378
    %5877 = vmatpush.bf16.msra.mxu0 %v5376
    %5878 = vmatpush.bf16.msra.mxu0 %v5374
    %5879 = vmatpush.bf16.msra.mxu0 %v5372
    %5880 = vmatpush.bf16.msra.mxu0 %v5370
    %5881 = vmatpush.bf16.msra.mxu0 %v5368
    %5882 = vmatmul.bf16.gmra.mxu0 %v4298
    %v5883 = vpop.f32.mrf.mxu0
    %v5884 = vadd.f32 %v5871, %v5883
    %v5885 = vpop.f32.mrf.mxu0
    %5886 = vdwg.mxu0
    %5887 = vmatpush.bf16.msra.mxu0 %v5398
    %5888 = vmatpush.bf16.msra.mxu0 %v5396
    %5889 = vmatpush.bf16.msra.mxu0 %v5394
    %5890 = vmatpush.bf16.msra.mxu0 %v5392
    %5891 = vmatpush.bf16.msra.mxu0 %v5390
    %5892 = vmatpush.bf16.msra.mxu0 %v5388
    %5893 = vmatpush.bf16.msra.mxu0 %v5386
    %5894 = vmatpush.bf16.msra.mxu0 %v5384
    %5895 = vmatmul.bf16.gmra.mxu0 %v4299
    %v5896 = vpop.f32.mrf.mxu0
    %v5897 = vadd.f32 %v5884, %v5896
    %v5898 = vpop.f32.mrf.mxu0
    %5899 = vdwg.mxu0
    %5900 = vmatpush.bf16.msra.mxu0 %v5414
    %5901 = vmatpush.bf16.msra.mxu0 %v5412
    %5902 = vmatpush.bf16.msra.mxu0 %v5410
    %5903 = vmatpush.bf16.msra.mxu0 %v5408
    %5904 = vmatpush.bf16.msra.mxu0 %v5406
    %5905 = vmatpush.bf16.msra.mxu0 %v5404
    %5906 = vmatpush.bf16.msra.mxu0 %v5402
    %5907 = vmatpush.bf16.msra.mxu0 %v5400
    %5908 = vmatmul.bf16.gmra.mxu0 %v4300
    %v5909 = vpop.f32.mrf.mxu0
    %v5910 = vadd.f32 %v5897, %v5909
    %v5911 = vpop.f32.mrf.mxu0
    %5912 = vdwg.mxu0
    %5913 = vmatpush.bf16.msra.mxu0 %v5430
    %5914 = vmatpush.bf16.msra.mxu0 %v5428
    %5915 = vmatpush.bf16.msra.mxu0 %v5426
    %5916 = vmatpush.bf16.msra.mxu0 %v5424
    %5917 = vmatpush.bf16.msra.mxu0 %v5422
    %5918 = vmatpush.bf16.msra.mxu0 %v5420
    %5919 = vmatpush.bf16.msra.mxu0 %v5418
    %5920 = vmatpush.bf16.msra.mxu0 %v5416
    %5921 = vmatmul.bf16.gmra.mxu0 %v4301
    %v5922 = vpop.f32.mrf.mxu0
    %v5923 = vadd.f32 %v5910, %v5922
    %v5924 = vpop.f32.mrf.mxu0
    %5925 = vdwg.mxu0
    %5926 = vmatpush.bf16.msra.mxu0 %v5446
    %5927 = vmatpush.bf16.msra.mxu0 %v5444
    %5928 = vmatpush.bf16.msra.mxu0 %v5442
    %5929 = vmatpush.bf16.msra.mxu0 %v5440
    %5930 = vmatpush.bf16.msra.mxu0 %v5438
    %5931 = vmatpush.bf16.msra.mxu0 %v5436
    %5932 = vmatpush.bf16.msra.mxu0 %v5434
    %5933 = vmatpush.bf16.msra.mxu0 %v5432
    %5934 = vmatmul.bf16.gmra.mxu0 %v4302
    %v5935 = vpop.f32.mrf.mxu0
    %v5936 = vadd.f32 %v5923, %v5935
    %v5937 = vpop.f32.mrf.mxu0
    %5938 = vdwg.mxu0
    %5939 = vmatpush.bf16.msra.mxu0 %v5462
    %5940 = vmatpush.bf16.msra.mxu0 %v5460
    %5941 = vmatpush.bf16.msra.mxu0 %v5458
    %5942 = vmatpush.bf16.msra.mxu0 %v5456
    %5943 = vmatpush.bf16.msra.mxu0 %v5454
    %5944 = vmatpush.bf16.msra.mxu0 %v5452
    %5945 = vmatpush.bf16.msra.mxu0 %v5450
    %5946 = vmatpush.bf16.msra.mxu0 %v5448
    %5947 = vmatmul.bf16.gmra.mxu0 %v4303
    %v5948 = vpop.f32.mrf.mxu0
    %v5949 = vadd.f32 %v5936, %v5948
    %v5950 = vpop.f32.mrf.mxu0
    %5951 = vdwg.mxu0
    %5952 = vmatpush.bf16.msra.mxu0 %v5478
    %5953 = vmatpush.bf16.msra.mxu0 %v5476
    %5954 = vmatpush.bf16.msra.mxu0 %v5474
    %5955 = vmatpush.bf16.msra.mxu0 %v5472
    %5956 = vmatpush.bf16.msra.mxu0 %v5470
    %5957 = vmatpush.bf16.msra.mxu0 %v5468
    %5958 = vmatpush.bf16.msra.mxu0 %v5466
    %5959 = vmatpush.bf16.msra.mxu0 %v5464
    %5960 = vmatmul.bf16.gmra.mxu0 %v4304
    %v5961 = vpop.f32.mrf.mxu0
    %v5962 = vadd.f32 %v5949, %v5961
    %v5963 = vpop.f32.mrf.mxu0
    %5964 = vdwg.mxu0
    %5965 = vmatpush.bf16.msra.mxu0 %v5494
    %5966 = vmatpush.bf16.msra.mxu0 %v5492
    %5967 = vmatpush.bf16.msra.mxu0 %v5490
    %5968 = vmatpush.bf16.msra.mxu0 %v5488
    %5969 = vmatpush.bf16.msra.mxu0 %v5486
    %5970 = vmatpush.bf16.msra.mxu0 %v5484
    %5971 = vmatpush.bf16.msra.mxu0 %v5482
    %5972 = vmatpush.bf16.msra.mxu0 %v5480
    %5973 = vmatmul.bf16.gmra.mxu0 %v4305
    %v5974 = vpop.f32.mrf.mxu0
    %v5975 = vadd.f32 %v5962, %v5974
    %v5976 = vpop.f32.mrf.mxu0
    %5977 = vdwg.mxu0
    %5978 = vmatpush.bf16.msra.mxu0 %v5510
    %5979 = vmatpush.bf16.msra.mxu0 %v5508
    %5980 = vmatpush.bf16.msra.mxu0 %v5506
    %5981 = vmatpush.bf16.msra.mxu0 %v5504
    %5982 = vmatpush.bf16.msra.mxu0 %v5502
    %5983 = vmatpush.bf16.msra.mxu0 %v5500
    %5984 = vmatpush.bf16.msra.mxu0 %v5498
    %5985 = vmatpush.bf16.msra.mxu0 %v5496
    %5986 = vmatmul.bf16.gmra.mxu0 %v4306
    %v5987 = vpop.f32.mrf.mxu0
    %v5988 = vadd.f32 %v5975, %v5987
    %v5989 = vpop.f32.mrf.mxu0
    %5990 = vdwg.mxu0
    %5991 = vmatpush.bf16.msra.mxu0 %v5526
    %5992 = vmatpush.bf16.msra.mxu0 %v5524
    %5993 = vmatpush.bf16.msra.mxu0 %v5522
    %5994 = vmatpush.bf16.msra.mxu0 %v5520
    %5995 = vmatpush.bf16.msra.mxu0 %v5518
    %5996 = vmatpush.bf16.msra.mxu0 %v5516
    %5997 = vmatpush.bf16.msra.mxu0 %v5514
    %5998 = vmatpush.bf16.msra.mxu0 %v5512
    %5999 = vmatmul.bf16.gmra.mxu0 %v4307
    %v6000 = vpop.f32.mrf.mxu0
    %v6001 = vadd.f32 %v5988, %v6000
    %v6002 = vpop.f32.mrf.mxu0
    %6003 = vdwg.mxu0
    %6004 = vmatpush.bf16.msra.mxu0 %v5542
    %6005 = vmatpush.bf16.msra.mxu0 %v5540
    %6006 = vmatpush.bf16.msra.mxu0 %v5538
    %6007 = vmatpush.bf16.msra.mxu0 %v5536
    %6008 = vmatpush.bf16.msra.mxu0 %v5534
    %6009 = vmatpush.bf16.msra.mxu0 %v5532
    %6010 = vmatpush.bf16.msra.mxu0 %v5530
    %6011 = vmatpush.bf16.msra.mxu0 %v5528
    %6012 = vmatmul.bf16.gmra.mxu0 %v4308
    %v6013 = vpop.f32.mrf.mxu0
    %v6014 = vadd.f32 %v6001, %v6013
    %v6015 = vpop.f32.mrf.mxu0
    %6016 = vdwg.mxu0
    %6017 = vmatpush.bf16.msra.mxu0 %v5558
    %6018 = vmatpush.bf16.msra.mxu0 %v5556
    %6019 = vmatpush.bf16.msra.mxu0 %v5554
    %6020 = vmatpush.bf16.msra.mxu0 %v5552
    %6021 = vmatpush.bf16.msra.mxu0 %v5550
    %6022 = vmatpush.bf16.msra.mxu0 %v5548
    %6023 = vmatpush.bf16.msra.mxu0 %v5546
    %6024 = vmatpush.bf16.msra.mxu0 %v5544
    %6025 = vmatmul.bf16.gmra.mxu0 %v4309
    %v6026 = vpop.f32.mrf.mxu0
    %v6027 = vadd.f32 %v6014, %v6026
    %v6028 = vpop.f32.mrf.mxu0
    %6029 = vdwg.mxu0
    %6030 = vmatpush.bf16.msra.mxu0 %v5574
    %6031 = vmatpush.bf16.msra.mxu0 %v5572
    %6032 = vmatpush.bf16.msra.mxu0 %v5570
    %6033 = vmatpush.bf16.msra.mxu0 %v5568
    %6034 = vmatpush.bf16.msra.mxu0 %v5566
    %6035 = vmatpush.bf16.msra.mxu0 %v5564
    %6036 = vmatpush.bf16.msra.mxu0 %v5562
    %6037 = vmatpush.bf16.msra.mxu0 %v5560
    %6038 = vmatmul.bf16.gmra.mxu0 %v4310
    %v6039 = vpop.f32.mrf.mxu0
    %v6040 = vadd.f32 %v6027, %v6039
    %v6041 = vpop.f32.mrf.mxu0
    %6042 = vdwg.mxu0
    %6043 = vmatpush.bf16.msra.mxu0 %v5590
    %6044 = vmatpush.bf16.msra.mxu0 %v5588
    %6045 = vmatpush.bf16.msra.mxu0 %v5586
    %6046 = vmatpush.bf16.msra.mxu0 %v5584
    %6047 = vmatpush.bf16.msra.mxu0 %v5582
    %6048 = vmatpush.bf16.msra.mxu0 %v5580
    %6049 = vmatpush.bf16.msra.mxu0 %v5578
    %6050 = vmatpush.bf16.msra.mxu0 %v5576
    %6051 = vmatmul.bf16.gmra.mxu0 %v4311
    %v6052 = vpop.f32.mrf.mxu0
    %v6053 = vadd.f32 %v6040, %v6052
    %v6054 = vpop.f32.mrf.mxu0
    %6055 = vdwg.mxu0
    %6056 = vmatpush.bf16.msra.mxu0 %v5351
    %6057 = vmatpush.bf16.msra.mxu0 %v5349
    %6058 = vmatpush.bf16.msra.mxu0 %v5347
    %6059 = vmatpush.bf16.msra.mxu0 %v5345
    %6060 = vmatpush.bf16.msra.mxu0 %v5343
    %6061 = vmatpush.bf16.msra.mxu0 %v5341
    %6062 = vmatpush.bf16.msra.mxu0 %v5339
    %6063 = vmatpush.bf16.msra.mxu0 %v5337
    %6064 = vmatmul.bf16.gmra.mxu0 %v4296
    %v6065 = vpop.f32.mrf.mxu0
    %v6066 = vadd.f32 0.0, %v6065
    %v6067 = vpop.f32.mrf.mxu0
    %6068 = vdwg.mxu0
    %6069 = vmatpush.bf16.msra.mxu0 %v5367
    %6070 = vmatpush.bf16.msra.mxu0 %v5365
    %6071 = vmatpush.bf16.msra.mxu0 %v5363
    %6072 = vmatpush.bf16.msra.mxu0 %v5361
    %6073 = vmatpush.bf16.msra.mxu0 %v5359
    %6074 = vmatpush.bf16.msra.mxu0 %v5357
    %6075 = vmatpush.bf16.msra.mxu0 %v5355
    %6076 = vmatpush.bf16.msra.mxu0 %v5353
    %6077 = vmatmul.bf16.gmra.mxu0 %v4297
    %v6078 = vpop.f32.mrf.mxu0
    %v6079 = vadd.f32 %v6066, %v6078
    %v6080 = vpop.f32.mrf.mxu0
    %6081 = vdwg.mxu0
    %6082 = vmatpush.bf16.msra.mxu0 %v5383
    %6083 = vmatpush.bf16.msra.mxu0 %v5381
    %6084 = vmatpush.bf16.msra.mxu0 %v5379
    %6085 = vmatpush.bf16.msra.mxu0 %v5377
    %6086 = vmatpush.bf16.msra.mxu0 %v5375
    %6087 = vmatpush.bf16.msra.mxu0 %v5373
    %6088 = vmatpush.bf16.msra.mxu0 %v5371
    %6089 = vmatpush.bf16.msra.mxu0 %v5369
    %6090 = vmatmul.bf16.gmra.mxu0 %v4298
    %v6091 = vpop.f32.mrf.mxu0
    %v6092 = vadd.f32 %v6079, %v6091
    %v6093 = vpop.f32.mrf.mxu0
    %6094 = vdwg.mxu0
    %6095 = vmatpush.bf16.msra.mxu0 %v5399
    %6096 = vmatpush.bf16.msra.mxu0 %v5397
    %6097 = vmatpush.bf16.msra.mxu0 %v5395
    %6098 = vmatpush.bf16.msra.mxu0 %v5393
    %6099 = vmatpush.bf16.msra.mxu0 %v5391
    %6100 = vmatpush.bf16.msra.mxu0 %v5389
    %6101 = vmatpush.bf16.msra.mxu0 %v5387
    %6102 = vmatpush.bf16.msra.mxu0 %v5385
    %6103 = vmatmul.bf16.gmra.mxu0 %v4299
    %v6104 = vpop.f32.mrf.mxu0
    %v6105 = vadd.f32 %v6092, %v6104
    %v6106 = vpop.f32.mrf.mxu0
    %6107 = vdwg.mxu0
    %6108 = vmatpush.bf16.msra.mxu0 %v5415
    %6109 = vmatpush.bf16.msra.mxu0 %v5413
    %6110 = vmatpush.bf16.msra.mxu0 %v5411
    %6111 = vmatpush.bf16.msra.mxu0 %v5409
    %6112 = vmatpush.bf16.msra.mxu0 %v5407
    %6113 = vmatpush.bf16.msra.mxu0 %v5405
    %6114 = vmatpush.bf16.msra.mxu0 %v5403
    %6115 = vmatpush.bf16.msra.mxu0 %v5401
    %6116 = vmatmul.bf16.gmra.mxu0 %v4300
    %v6117 = vpop.f32.mrf.mxu0
    %v6118 = vadd.f32 %v6105, %v6117
    %v6119 = vpop.f32.mrf.mxu0
    %6120 = vdwg.mxu0
    %6121 = vmatpush.bf16.msra.mxu0 %v5431
    %6122 = vmatpush.bf16.msra.mxu0 %v5429
    %6123 = vmatpush.bf16.msra.mxu0 %v5427
    %6124 = vmatpush.bf16.msra.mxu0 %v5425
    %6125 = vmatpush.bf16.msra.mxu0 %v5423
    %6126 = vmatpush.bf16.msra.mxu0 %v5421
    %6127 = vmatpush.bf16.msra.mxu0 %v5419
    %6128 = vmatpush.bf16.msra.mxu0 %v5417
    %6129 = vmatmul.bf16.gmra.mxu0 %v4301
    %v6130 = vpop.f32.mrf.mxu0
    %v6131 = vadd.f32 %v6118, %v6130
    %v6132 = vpop.f32.mrf.mxu0
    %6133 = vdwg.mxu0
    %6134 = vmatpush.bf16.msra.mxu0 %v5447
    %6135 = vmatpush.bf16.msra.mxu0 %v5445
    %6136 = vmatpush.bf16.msra.mxu0 %v5443
    %6137 = vmatpush.bf16.msra.mxu0 %v5441
    %6138 = vmatpush.bf16.msra.mxu0 %v5439
    %6139 = vmatpush.bf16.msra.mxu0 %v5437
    %6140 = vmatpush.bf16.msra.mxu0 %v5435
    %6141 = vmatpush.bf16.msra.mxu0 %v5433
    %6142 = vmatmul.bf16.gmra.mxu0 %v4302
    %v6143 = vpop.f32.mrf.mxu0
    %v6144 = vadd.f32 %v6131, %v6143
    %v6145 = vpop.f32.mrf.mxu0
    %6146 = vdwg.mxu0
    %6147 = vmatpush.bf16.msra.mxu0 %v5463
    %6148 = vmatpush.bf16.msra.mxu0 %v5461
    %6149 = vmatpush.bf16.msra.mxu0 %v5459
    %6150 = vmatpush.bf16.msra.mxu0 %v5457
    %6151 = vmatpush.bf16.msra.mxu0 %v5455
    %6152 = vmatpush.bf16.msra.mxu0 %v5453
    %6153 = vmatpush.bf16.msra.mxu0 %v5451
    %6154 = vmatpush.bf16.msra.mxu0 %v5449
    %6155 = vmatmul.bf16.gmra.mxu0 %v4303
    %v6156 = vpop.f32.mrf.mxu0
    %v6157 = vadd.f32 %v6144, %v6156
    %v6158 = vpop.f32.mrf.mxu0
    %6159 = vdwg.mxu0
    %6160 = vmatpush.bf16.msra.mxu0 %v5479
    %6161 = vmatpush.bf16.msra.mxu0 %v5477
    %6162 = vmatpush.bf16.msra.mxu0 %v5475
    %6163 = vmatpush.bf16.msra.mxu0 %v5473
    %6164 = vmatpush.bf16.msra.mxu0 %v5471
    %6165 = vmatpush.bf16.msra.mxu0 %v5469
    %6166 = vmatpush.bf16.msra.mxu0 %v5467
    %6167 = vmatpush.bf16.msra.mxu0 %v5465
    %6168 = vmatmul.bf16.gmra.mxu0 %v4304
    %v6169 = vpop.f32.mrf.mxu0
    %v6170 = vadd.f32 %v6157, %v6169
    %v6171 = vpop.f32.mrf.mxu0
    %6172 = vdwg.mxu0
    %6173 = vmatpush.bf16.msra.mxu0 %v5495
    %6174 = vmatpush.bf16.msra.mxu0 %v5493
    %6175 = vmatpush.bf16.msra.mxu0 %v5491
    %6176 = vmatpush.bf16.msra.mxu0 %v5489
    %6177 = vmatpush.bf16.msra.mxu0 %v5487
    %6178 = vmatpush.bf16.msra.mxu0 %v5485
    %6179 = vmatpush.bf16.msra.mxu0 %v5483
    %6180 = vmatpush.bf16.msra.mxu0 %v5481
    %6181 = vmatmul.bf16.gmra.mxu0 %v4305
    %v6182 = vpop.f32.mrf.mxu0
    %v6183 = vadd.f32 %v6170, %v6182
    %v6184 = vpop.f32.mrf.mxu0
    %6185 = vdwg.mxu0
    %6186 = vmatpush.bf16.msra.mxu0 %v5511
    %6187 = vmatpush.bf16.msra.mxu0 %v5509
    %6188 = vmatpush.bf16.msra.mxu0 %v5507
    %6189 = vmatpush.bf16.msra.mxu0 %v5505
    %6190 = vmatpush.bf16.msra.mxu0 %v5503
    %6191 = vmatpush.bf16.msra.mxu0 %v5501
    %6192 = vmatpush.bf16.msra.mxu0 %v5499
    %6193 = vmatpush.bf16.msra.mxu0 %v5497
    %6194 = vmatmul.bf16.gmra.mxu0 %v4306
    %v6195 = vpop.f32.mrf.mxu0
    %v6196 = vadd.f32 %v6183, %v6195
    %v6197 = vpop.f32.mrf.mxu0
    %6198 = vdwg.mxu0
    %6199 = vmatpush.bf16.msra.mxu0 %v5527
    %6200 = vmatpush.bf16.msra.mxu0 %v5525
    %6201 = vmatpush.bf16.msra.mxu0 %v5523
    %6202 = vmatpush.bf16.msra.mxu0 %v5521
    %6203 = vmatpush.bf16.msra.mxu0 %v5519
    %6204 = vmatpush.bf16.msra.mxu0 %v5517
    %6205 = vmatpush.bf16.msra.mxu0 %v5515
    %6206 = vmatpush.bf16.msra.mxu0 %v5513
    %6207 = vmatmul.bf16.gmra.mxu0 %v4307
    %v6208 = vpop.f32.mrf.mxu0
    %v6209 = vadd.f32 %v6196, %v6208
    %v6210 = vpop.f32.mrf.mxu0
    %6211 = vdwg.mxu0
    %6212 = vmatpush.bf16.msra.mxu0 %v5543
    %6213 = vmatpush.bf16.msra.mxu0 %v5541
    %6214 = vmatpush.bf16.msra.mxu0 %v5539
    %6215 = vmatpush.bf16.msra.mxu0 %v5537
    %6216 = vmatpush.bf16.msra.mxu0 %v5535
    %6217 = vmatpush.bf16.msra.mxu0 %v5533
    %6218 = vmatpush.bf16.msra.mxu0 %v5531
    %6219 = vmatpush.bf16.msra.mxu0 %v5529
    %6220 = vmatmul.bf16.gmra.mxu0 %v4308
    %v6221 = vpop.f32.mrf.mxu0
    %v6222 = vadd.f32 %v6209, %v6221
    %v6223 = vpop.f32.mrf.mxu0
    %6224 = vdwg.mxu0
    %6225 = vmatpush.bf16.msra.mxu0 %v5559
    %6226 = vmatpush.bf16.msra.mxu0 %v5557
    %6227 = vmatpush.bf16.msra.mxu0 %v5555
    %6228 = vmatpush.bf16.msra.mxu0 %v5553
    %6229 = vmatpush.bf16.msra.mxu0 %v5551
    %6230 = vmatpush.bf16.msra.mxu0 %v5549
    %6231 = vmatpush.bf16.msra.mxu0 %v5547
    %6232 = vmatpush.bf16.msra.mxu0 %v5545
    %6233 = vmatmul.bf16.gmra.mxu0 %v4309
    %v6234 = vpop.f32.mrf.mxu0
    %v6235 = vadd.f32 %v6222, %v6234
    %v6236 = vpop.f32.mrf.mxu0
    %6237 = vdwg.mxu0
    %6238 = vmatpush.bf16.msra.mxu0 %v5575
    %6239 = vmatpush.bf16.msra.mxu0 %v5573
    %6240 = vmatpush.bf16.msra.mxu0 %v5571
    %6241 = vmatpush.bf16.msra.mxu0 %v5569
    %6242 = vmatpush.bf16.msra.mxu0 %v5567
    %6243 = vmatpush.bf16.msra.mxu0 %v5565
    %6244 = vmatpush.bf16.msra.mxu0 %v5563
    %6245 = vmatpush.bf16.msra.mxu0 %v5561
    %6246 = vmatmul.bf16.gmra.mxu0 %v4310
    %v6247 = vpop.f32.mrf.mxu0
    %v6248 = vadd.f32 %v6235, %v6247
    %v6249 = vpop.f32.mrf.mxu0
    %6250 = vdwg.mxu0
    %6251 = vmatpush.bf16.msra.mxu0 %v5591
    %6252 = vmatpush.bf16.msra.mxu0 %v5589
    %6253 = vmatpush.bf16.msra.mxu0 %v5587
    %6254 = vmatpush.bf16.msra.mxu0 %v5585
    %6255 = vmatpush.bf16.msra.mxu0 %v5583
    %6256 = vmatpush.bf16.msra.mxu0 %v5581
    %6257 = vmatpush.bf16.msra.mxu0 %v5579
    %6258 = vmatpush.bf16.msra.mxu0 %v5577
    %6259 = vmatmul.bf16.gmra.mxu0 %v4311
    %v6260 = vpop.f32.mrf.mxu0
    %v6261 = vadd.f32 %v6248, %v6260
    %v6262 = vpop.f32.mrf.mxu0
    %6263 = vdwg.mxu0
    %vm6264 = vcmask 1041408
    %v6265 = vsel %vm6264, %v6053, 0.0
    %v6266 = vrot.slane %v6265, 4
    %v6267 = vadd.f32 %v6265, %v6266
    %v6268 = vrot.slane %v6267, 2
    %v6269 = vadd.f32 %v6267, %v6268
    %v6270 = vrot.slane %v6269, 1
    %v6271 = vadd.f32 %v6269, %v6270
    %v6272 = vsel %vm6264, %v6261, 0.0
    %v6273 = vrot.slane %v6272, 4
    %v6274 = vadd.f32 %v6272, %v6273
    %v6275 = vrot.slane %v6274, 2
    %v6276 = vadd.f32 %v6274, %v6275
    %v6277 = vrot.slane %v6276, 1
    %v6278 = vadd.f32 %v6276, %v6277
    %v6279 = vrcp.pop 2.0
    %v6280 = vmul.f32 2.0, %v6279
    %v6281 = vsub.f32 1.0, %v6280
    %v6282 = vmul.f32 %v6279, %v6281
    %v6283 = vadd.f32 %v6279, %v6282
    %vm6284 = vweird.f32 %v6279
    %v6285 = vsel %vm6284, %v6279, %v6283
    %v6286 = vmul.f32 %v6271, %v6285
    %v6287 = vmul.f32 %v6278, %v6285
    %v6288 = vsub.f32 %v6053, %v6286
    %v6289 = vsub.f32 %v6261, %v6287
    %v6290 = vmul.f32 %v6288, %v6288
    %v6291 = vmul.f32 %v6289, %v6289
    %v6292 = vsel %vm6264, %v6290, 0.0
    %v6293 = vrot.slane %v6292, 4
    %v6294 = vadd.f32 %v6292, %v6293
    %v6295 = vrot.slane %v6294, 2
    %v6296 = vadd.f32 %v6294, %v6295
    %v6297 = vrot.slane %v6296, 1
    %v6298 = vadd.f32 %v6296, %v6297
    %v6299 = vsel %vm6264, %v6291, 0.0
    %v6300 = vrot.slane %v6299, 4
    %v6301 = vadd.f32 %v6299, %v6300
    %v6302 = vrot.slane %v6301, 2
    %v6303 = vadd.f32 %v6301, %v6302
    %v6304 = vrot.slane %v6303, 1
    %v6305 = vadd.f32 %v6303, %v6304
    %v6306 = vmul.f32 %v6298, %v6285
    %v6307 = vmul.f32 %v6305, %v6285
    %v6308 = vadd.f32 %v6306, 1e-05
    %v6309 = vadd.f32 %v6307, 1e-05
    %v6310 = vrsqrt.pop %v6308
    %v6311 = vmul.f32 %v6310, %v6308
    %v6312 = vmul.f32 %v6311, %v6310
    %v6313 = vmul.f32 0.5, %v6312
    %v6314 = vsub.f32 1.5, %v6313
    %v6315 = vmul.f32 %v6310, %v6314
    %vm6316 = vweird.f32 %v6308
    %vm6317 = vweird.f32 %v6310
    %vm6318 = vmor %vm6316, %vm6317
    %v6319 = vsel %vm6318, %v6310, %v6315
    %v6320 = vrsqrt.pop %v6309
    %v6321 = vmul.f32 %v6320, %v6309
    %v6322 = vmul.f32 %v6321, %v6320
    %v6323 = vmul.f32 0.5, %v6322
    %v6324 = vsub.f32 1.5, %v6323
    %v6325 = vmul.f32 %v6320, %v6324
    %vm6326 = vweird.f32 %v6309
    %vm6327 = vweird.f32 %v6320
    %vm6328 = vmor %vm6326, %vm6327
    %v6329 = vsel %vm6328, %v6320, %v6325
    %v6330 = vmul.f32 %v6288, %v6319
    %v6331 = vmul.f32 %v6289, %v6329
    %v6332 = vld [vmem:[%s14] sm:$0x3]
    %v6334 = vperm.slane %v6332, 0
    %v6335 = vperm.slane %v6332, 1
    %v6338 = vmul.f32 %v6330, %v6334
    %v6339 = vmul.f32 %v6331, %v6335
    %v6340 = vld [vmem:[%s15] sm:$0x3]
    %v6342 = vperm.slane %v6340, 0
    %v6343 = vperm.slane %v6340, 1
    %v6346 = vadd.f32 %v6338, %v6342
    %v6347 = vadd.f32 %v6339, %v6343
    %v6348 = vmax.f32 %v6346, 0.0
    %v6349 = vmax.f32 %v6347, 0.0
    %v6352 = vrot.slane %v6349, 6
    %v6353 = vsel %vm6264, %v6348, %v6352
    %6355 = vst [vmem:[%s16] sm:$0xf] %v6353
    // Predicated region
    $region74: #{patch_discriminator_forward.1} parent=1 // pred_check
      _
    $region75: #{patch_discriminator_forward.1} parent=1 // pred_check_branch
      %6357 = sbr.rel (0) target = $region77
    $region76: #{patch_discriminator_forward.1} parent=1 // pred_region
      _
    $region77: #{patch_discriminator_forward.1} parent=1 // pred_fallthru
      _
    // Predicated region
    $region78: #{patch_discriminator_forward.1} parent=1 // pred_check
      _
    $region79: #{patch_discriminator_forward.1} parent=1 // pred_check_branch
      %6359 = sbr.rel (0) target = $region81
    $region80: #{patch_discriminator_forward.1} parent=1 // pred_region
      _
    $region81: #{patch_discriminator_forward.1} parent=1 // pred_fallthru
      _
    %6360 = vsyncpa [#allocation3], 1
    %6361 = vsyncpa [#allocation5], 1

</llo_original>
